<compile_context>
chip_gen: v5e
topology: v5e:2x2
jax: 0.10.0
libtpu: 0.0.40
codegen_flags: <defaults>
</compile_context>

<pallas_src>
import jax
import jax.numpy as jnp
from jax.experimental import pallas as pl
from jax.experimental.pallas import tpu as pltpu

INPUT_SIZE = 6
HIDDEN_SIZE = 128
NUM_CLASSES = 26
NUM_LAYERS = 2  # hard-wired as 2 stacked cells inside the kernel


def lstm_classifier_kernel(x_ref, wih0_ref, b0_ref, whh0_ref, wl1_ref, b1_ref,
                           wfc_ref, bfc_ref, out_ref):
    # x_ref is time-major and pre-flattened: (T * B_pad, input_size)
    B = out_ref.shape[0]
    T = x_ref.shape[0] // B
    H = whh0_ref.shape[0]
    G = 4 * H

    # ---- hoisted layer-0 input projection (no carry dependence) ------------
    # (T*B, Din) @ (Din, 4H) + b0  ->  (T*B, 4H); b_ih0 + b_hh0 folded in here.
    xproj = (jnp.dot(x_ref[...], wih0_ref[...],
                     preferred_element_type=jnp.float32) + b0_ref[...])

    whh0 = whh0_ref[...]                               # (H, 4H)  bf16
    wl1 = wl1_ref[...]                                 # (2H, 4H) bf16 (fused layer-1)
    b1 = jnp.broadcast_to(b1_ref[...], (B, G))         # hoisted bias broadcast

    def gates_to_hc(gates, c):
        # PyTorch gate order: i, f, g, o. Elementwise gate math stays f32.
        i = jax.nn.sigmoid(gates[:, 0 * H:1 * H])
        f = jax.nn.sigmoid(gates[:, 1 * H:2 * H])
        g = jnp.tanh(gates[:, 2 * H:3 * H])
        o = jax.nn.sigmoid(gates[:, 3 * H:4 * H])
        c_new = f * c + i * g
        h_new = o * jnp.tanh(c_new)
        return h_new, c_new

    h0 = jnp.zeros((B, H), jnp.bfloat16)   # h carries in bf16 (MXU operand dtype)
    h1 = jnp.zeros((B, H), jnp.bfloat16)
    c0 = jnp.zeros((B, H), jnp.float32)    # cell state stays f32
    c1 = jnp.zeros((B, H), jnp.float32)

    # T is small and static: fully unrolled so layer-0(t+1) overlaps layer-1(t).
    for t in range(T):
        # layer 0: only the recurrent matmul is on the serial chain now
        g0 = xproj[t * B:(t + 1) * B, :] + jnp.dot(
            h0, whh0, preferred_element_type=jnp.float32)
        h0f, c0 = gates_to_hc(g0, c0)
        h0 = h0f.astype(jnp.bfloat16)

        # layer 1, fused: [h0, h1] @ [W_ih1; W_hh1]  (single K=2H contraction)
        g1 = jnp.dot(jnp.concatenate([h0, h1], axis=-1), wl1,
                     preferred_element_type=jnp.float32) + b1
        h1f, c1 = gates_to_hc(g1, c1)
        h1 = h1f.astype(jnp.bfloat16)

    # Dropout(0.3) is identity in eval/inference mode.
    # TODO(synk): training-mode stochastic dropout not modeled.
    logits = (jnp.dot(h1, wfc_ref[...], preferred_element_type=jnp.float32)
              + bfc_ref[...])
    out_ref[...] = logits.astype(out_ref.dtype)


def lstm_classifier_forward(x, params):
    """x: (B, T, input_size) float32 (batch_first, same as the PyTorch module)."""
    B, T, Din = x.shape
    H = params["w_hh0"].shape[0]
    C = params["w_fc"].shape[1]

    B_pad = ((max(B, 8) + 7) // 8) * 8     # sublane-align batch
    C_pad = ((C + 127) // 128) * 128       # lane-align FC output (unmasked store)

    # time-major, zero-pad batch, flatten (T, B_pad, Din) -> (T*B_pad, Din)
    x_tm = jnp.transpose(x, (1, 0, 2))
    x_tm = jnp.pad(x_tm, ((0, 0), (0, B_pad - B), (0, 0)))
    x2d = x_tm.reshape(T * B_pad, Din).astype(jnp.float32)

    wih0 = params["w_ih0"].astype(jnp.float32)                      # (Din, 4H), off critical path
    b0 = params["b0"].astype(jnp.float32)                           # (1, 4H)
    whh0 = params["w_hh0"].astype(jnp.bfloat16)                     # (H, 4H)
    wl1 = jnp.concatenate([params["w_ih1"], params["w_hh1"]],
                          axis=0).astype(jnp.bfloat16)              # (2H, 4H)
    b1 = params["b1"].astype(jnp.float32)                           # (1, 4H)
    wfc = jnp.pad(params["w_fc"],
                  ((0, 0), (0, C_pad - C))).astype(jnp.bfloat16)    # (H, C_pad)
    bfc = jnp.pad(params["b_fc"],
                  ((0, 0), (0, C_pad - C))).astype(jnp.float32)     # (1, C_pad)

    args = (x2d, wih0, b0, whh0, wl1, b1, wfc, bfc)

    out = pl.pallas_call(
        lstm_classifier_kernel,
        out_shape=jax.ShapeDtypeStruct((B_pad, C_pad), jnp.float32),
        in_specs=[pl.BlockSpec(memory_space=pltpu.MemorySpace.VMEM)] * len(args),
        out_specs=pl.BlockSpec(memory_space=pltpu.MemorySpace.VMEM),
    )(*args)
    return out[:B, :C]


def init_params(key, input_size=INPUT_SIZE, hidden_size=HIDDEN_SIZE,
                num_classes=NUM_CLASSES):
    """Deterministic init mirroring PyTorch's U(-1/sqrt(H), 1/sqrt(H)) shapes.

    Weights are stored pre-transposed ((in,4H)/(H,4H)/(H,C)) and the two LSTM
    biases per layer are summed (the math is identical to PyTorch's layout).
    """
    k = 1.0 / jnp.sqrt(hidden_size)
    keys = jax.random.split(key, 10)

    def u(kk, shape):
        return jax.random.uniform(kk, shape, jnp.float32, minval=-k, maxval=k)

    params = {
        # layer 0
        "w_ih0": u(keys[0], (input_size, 4 * hidden_size)),
        "w_hh0": u(keys[1], (hidden_size, 4 * hidden_size)),
        "b0": (u(keys[2], (1, 4 * hidden_size)) + u(keys[3], (1, 4 * hidden_size))),
        # layer 1 (input is hidden_size)
        "w_ih1": u(keys[4], (hidden_size, 4 * hidden_size)),
        "w_hh1": u(keys[5], (hidden_size, 4 * hidden_size)),
        "b1": (u(keys[6], (1, 4 * hidden_size)) + u(keys[7], (1, 4 * hidden_size))),
        # fc head
        "w_fc": u(keys[8], (hidden_size, num_classes)),
        "b_fc": u(keys[9], (1, num_classes)),
    }
    return params


def reference_forward(x, params):
    """Pure-JAX f32 reference of the PyTorch module semantics."""
    B, T, _ = x.shape
    H = HIDDEN_SIZE

    def cell(x_t, h, c, wih, whh, b):
        gates = x_t @ wih + h @ whh + b
        i = jax.nn.sigmoid(gates[:, 0 * H:1 * H])
        f = jax.nn.sigmoid(gates[:, 1 * H:2 * H])
        g = jnp.tanh(gates[:, 2 * H:3 * H])
        o = jax.nn.sigmoid(gates[:, 3 * H:4 * H])
        c = f * c + i * g
        return o * jnp.tanh(c), c

    h0 = c0 = h1 = c1 = jnp.zeros((B, H), jnp.float32)
    for t in range(T):
        h0, c0 = cell(x[:, t, :], h0, c0, params["w_ih0"], params["w_hh0"], params["b0"])
        h1, c1 = cell(h0, h1, c1, params["w_ih1"], params["w_hh1"], params["b1"])
    return h1 @ params["w_fc"] + params["b_fc"]


if __name__ == "__main__":
    key = jax.random.PRNGKey(0)
    k_param, k_x = jax.random.split(key)

    B, T = 2, 8
    params = init_params(k_param)
    x = jax.random.normal(k_x, (B, T, INPUT_SIZE), jnp.float32)

    out = lstm_classifier_forward(x, params)
    out = jax.block_until_ready(out)

    ref = reference_forward(x, params)
    assert out.shape == (B, NUM_CLASSES)
    # bf16 MXU operands over an 8-step recurrence -> tolerance loosened vs the
    # pure-f32 reference (drift is ~1e-2 scale here).
    assert jnp.allclose(out, ref, atol=5e-2, rtol=5e-2), (
        f"max abs err {jnp.max(jnp.abs(out - ref))}")

    print("KERNEL_OK")
</pallas_src>

<mosaic_0001>
module attributes {stable_mosaic.version = 11 : i64} {
  func.func @lstm_classifier_kernel(%arg0: memref<64x6xf32, #tpu.memory_space<vmem>>, %arg1: memref<6x512xf32, #tpu.memory_space<vmem>>, %arg2: memref<1x512xf32, #tpu.memory_space<vmem>>, %arg3: memref<128x512xbf16, #tpu.memory_space<vmem>>, %arg4: memref<256x512xbf16, #tpu.memory_space<vmem>>, %arg5: memref<1x512xf32, #tpu.memory_space<vmem>>, %arg6: memref<128x128xbf16, #tpu.memory_space<vmem>>, %arg7: memref<1x128xf32, #tpu.memory_space<vmem>>, %arg8: memref<8x128xf32, #tpu.memory_space<vmem>>) attributes {dimension_semantics = [], scalar_prefetch = 0 : i64, scratch_operands = 0 : i64, tpu.core_type = #tpu.core_type<tc>} {
    %c0 = arith.constant 0 : index
    %c0_0 = arith.constant 0 : index
    %0 = vector.load %arg0[%c0, %c0_0] : memref<64x6xf32, #tpu.memory_space<vmem>>, vector<64x6xf32>
    %c0_1 = arith.constant 0 : index
    %c0_2 = arith.constant 0 : index
    %1 = vector.load %arg1[%c0_1, %c0_2] : memref<6x512xf32, #tpu.memory_space<vmem>>, vector<6x512xf32>
    %cst = arith.constant dense<0.000000e+00> : vector<64x512xf32>
    %2 = tpu.matmul %0, %1, %cst {dimension_numbers = #tpu.dot_dimension_numbers<[1], [0], [0], [1], [0, 0, 1, 1], [], []>} : vector<64x6xf32>, vector<6x512xf32>, vector<64x512xf32> -> vector<64x512xf32>
    %c0_3 = arith.constant 0 : index
    %c0_4 = arith.constant 0 : index
    %3 = vector.load %arg2[%c0_3, %c0_4] : memref<1x512xf32, #tpu.memory_space<vmem>>, vector<1x512xf32>
    %4 = vector.broadcast %3 : vector<1x512xf32> to vector<64x512xf32>
    %5 = arith.addf %2, %4 : vector<64x512xf32>
    %c0_5 = arith.constant 0 : index
    %c0_6 = arith.constant 0 : index
    %6 = vector.load %arg3[%c0_5, %c0_6] : memref<128x512xbf16, #tpu.memory_space<vmem>>, vector<128x512xbf16>
    %c0_7 = arith.constant 0 : index
    %c0_8 = arith.constant 0 : index
    %7 = vector.load %arg4[%c0_7, %c0_8] : memref<256x512xbf16, #tpu.memory_space<vmem>>, vector<256x512xbf16>
    %c0_9 = arith.constant 0 : index
    %c0_10 = arith.constant 0 : index
    %8 = vector.load %arg5[%c0_9, %c0_10] : memref<1x512xf32, #tpu.memory_space<vmem>>, vector<1x512xf32>
    %9 = vector.shape_cast %8 : vector<1x512xf32> to vector<1x512xf32>
    %10 = vector.broadcast %9 : vector<1x512xf32> to vector<8x512xf32>
    %cst_11 = arith.constant 0.000000e+00 : bf16
    %11 = vector.broadcast %cst_11 : bf16 to vector<8x128xbf16>
    %cst_12 = arith.constant 0.000000e+00 : bf16
    %12 = vector.broadcast %cst_12 : bf16 to vector<8x128xbf16>
    %cst_13 = arith.constant 0.000000e+00 : f32
    %13 = vector.broadcast %cst_13 : f32 to vector<8x128xf32>
    %cst_14 = arith.constant 0.000000e+00 : f32
    %14 = vector.broadcast %cst_14 : f32 to vector<8x128xf32>
    %15 = vector.extract_strided_slice %5 {offsets = [0, 0], sizes = [8, 512], strides = [1, 1]} : vector<64x512xf32> to vector<8x512xf32>
    %cst_15 = arith.constant dense<0.000000e+00> : vector<8x512xf32>
    %16 = tpu.matmul %11, %6, %cst_15 {dimension_numbers = #tpu.dot_dimension_numbers<[1], [0], [0], [1], [0, 0, 1, 1], [], []>} : vector<8x128xbf16>, vector<128x512xbf16>, vector<8x512xf32> -> vector<8x512xf32>
    %17 = arith.addf %15, %16 : vector<8x512xf32>
    %18 = vector.extract_strided_slice %17 {offsets = [0, 0], sizes = [8, 128], strides = [1, 1]} : vector<8x512xf32> to vector<8x128xf32>
    %19 = arith.negf %18 : vector<8x128xf32>
    %20 = math.exp %19 : vector<8x128xf32>
    %cst_16 = arith.constant 1.000000e+00 : f32
    %21 = vector.broadcast %cst_16 : f32 to vector<8x128xf32>
    %22 = arith.addf %21, %20 : vector<8x128xf32>
    %23 = arith.divf %21, %22 : vector<8x128xf32>
    %24 = vector.extract_strided_slice %17 {offsets = [0, 128], sizes = [8, 128], strides = [1, 1]} : vector<8x512xf32> to vector<8x128xf32>
    %25 = arith.negf %24 : vector<8x128xf32>
    %26 = math.exp %25 : vector<8x128xf32>
    %cst_17 = arith.constant 1.000000e+00 : f32
    %27 = vector.broadcast %cst_17 : f32 to vector<8x128xf32>
    %28 = arith.addf %27, %26 : vector<8x128xf32>
    %29 = arith.divf %27, %28 : vector<8x128xf32>
    %30 = vector.extract_strided_slice %17 {offsets = [0, 256], sizes = [8, 128], strides = [1, 1]} : vector<8x512xf32> to vector<8x128xf32>
    %31 = math.tanh %30 : vector<8x128xf32>
    %32 = vector.extract_strided_slice %17 {offsets = [0, 384], sizes = [8, 128], strides = [1, 1]} : vector<8x512xf32> to vector<8x128xf32>
    %33 = arith.negf %32 : vector<8x128xf32>
    %34 = math.exp %33 : vector<8x128xf32>
    %cst_18 = arith.constant 1.000000e+00 : f32
    %35 = vector.broadcast %cst_18 : f32 to vector<8x128xf32>
    %36 = arith.addf %35, %34 : vector<8x128xf32>
    %37 = arith.divf %35, %36 : vector<8x128xf32>
    %38 = arith.mulf %29, %13 : vector<8x128xf32>
    %39 = arith.mulf %23, %31 : vector<8x128xf32>
    %40 = arith.addf %38, %39 : vector<8x128xf32>
    %41 = math.tanh %40 : vector<8x128xf32>
    %42 = arith.mulf %37, %41 : vector<8x128xf32>
    %43 = arith.truncf %42 : vector<8x128xf32> to vector<8x128xbf16>
    %44 = tpu.concatenate %43, %12 in 1 : vector<8x128xbf16>, vector<8x128xbf16> -> vector<8x256xbf16>
    %cst_19 = arith.constant dense<0.000000e+00> : vector<8x512xf32>
    %45 = tpu.matmul %44, %7, %cst_19 {dimension_numbers = #tpu.dot_dimension_numbers<[1], [0], [0], [1], [0, 0, 1, 1], [], []>} : vector<8x256xbf16>, vector<256x512xbf16>, vector<8x512xf32> -> vector<8x512xf32>
    %46 = arith.addf %45, %10 : vector<8x512xf32>
    %47 = vector.extract_strided_slice %46 {offsets = [0, 0], sizes = [8, 128], strides = [1, 1]} : vector<8x512xf32> to vector<8x128xf32>
    %48 = arith.negf %47 : vector<8x128xf32>
    %49 = math.exp %48 : vector<8x128xf32>
    %cst_20 = arith.constant 1.000000e+00 : f32
    %50 = vector.broadcast %cst_20 : f32 to vector<8x128xf32>
    %51 = arith.addf %50, %49 : vector<8x128xf32>
    %52 = arith.divf %50, %51 : vector<8x128xf32>
    %53 = vector.extract_strided_slice %46 {offsets = [0, 128], sizes = [8, 128], strides = [1, 1]} : vector<8x512xf32> to vector<8x128xf32>
    %54 = arith.negf %53 : vector<8x128xf32>
    %55 = math.exp %54 : vector<8x128xf32>
    %cst_21 = arith.constant 1.000000e+00 : f32
    %56 = vector.broadcast %cst_21 : f32 to vector<8x128xf32>
    %57 = arith.addf %56, %55 : vector<8x128xf32>
    %58 = arith.divf %56, %57 : vector<8x128xf32>
    %59 = vector.extract_strided_slice %46 {offsets = [0, 256], sizes = [8, 128], strides = [1, 1]} : vector<8x512xf32> to vector<8x128xf32>
    %60 = math.tanh %59 : vector<8x128xf32>
    %61 = vector.extract_strided_slice %46 {offsets = [0, 384], sizes = [8, 128], strides = [1, 1]} : vector<8x512xf32> to vector<8x128xf32>
    %62 = arith.negf %61 : vector<8x128xf32>
    %63 = math.exp %62 : vector<8x128xf32>
    %cst_22 = arith.constant 1.000000e+00 : f32
    %64 = vector.broadcast %cst_22 : f32 to vector<8x128xf32>
    %65 = arith.addf %64, %63 : vector<8x128xf32>
    %66 = arith.divf %64, %65 : vector<8x128xf32>
    %67 = arith.mulf %58, %14 : vector<8x128xf32>
    %68 = arith.mulf %52, %60 : vector<8x128xf32>
    %69 = arith.addf %67, %68 : vector<8x128xf32>
    %70 = math.tanh %69 : vector<8x128xf32>
    %71 = arith.mulf %66, %70 : vector<8x128xf32>
    %72 = arith.truncf %71 : vector<8x128xf32> to vector<8x128xbf16>
    %73 = vector.extract_strided_slice %5 {offsets = [8, 0], sizes = [8, 512], strides = [1, 1]} : vector<64x512xf32> to vector<8x512xf32>
    %cst_23 = arith.constant dense<0.000000e+00> : vector<8x512xf32>
    %74 = tpu.matmul %43, %6, %cst_23 {dimension_numbers = #tpu.dot_dimension_numbers<[1], [0], [0], [1], [0, 0, 1, 1], [], []>} : vector<8x128xbf16>, vector<128x512xbf16>, vector<8x512xf32> -> vector<8x512xf32>
    %75 = arith.addf %73, %74 : vector<8x512xf32>
    %76 = vector.extract_strided_slice %75 {offsets = [0, 0], sizes = [8, 128], strides = [1, 1]} : vector<8x512xf32> to vector<8x128xf32>
    %77 = arith.negf %76 : vector<8x128xf32>
    %78 = math.exp %77 : vector<8x128xf32>
    %cst_24 = arith.constant 1.000000e+00 : f32
    %79 = vector.broadcast %cst_24 : f32 to vector<8x128xf32>
    %80 = arith.addf %79, %78 : vector<8x128xf32>
    %81 = arith.divf %79, %80 : vector<8x128xf32>
    %82 = vector.extract_strided_slice %75 {offsets = [0, 128], sizes = [8, 128], strides = [1, 1]} : vector<8x512xf32> to vector<8x128xf32>
    %83 = arith.negf %82 : vector<8x128xf32>
    %84 = math.exp %83 : vector<8x128xf32>
    %cst_25 = arith.constant 1.000000e+00 : f32
    %85 = vector.broadcast %cst_25 : f32 to vector<8x128xf32>
    %86 = arith.addf %85, %84 : vector<8x128xf32>
    %87 = arith.divf %85, %86 : vector<8x128xf32>
    %88 = vector.extract_strided_slice %75 {offsets = [0, 256], sizes = [8, 128], strides = [1, 1]} : vector<8x512xf32> to vector<8x128xf32>
    %89 = math.tanh %88 : vector<8x128xf32>
    %90 = vector.extract_strided_slice %75 {offsets = [0, 384], sizes = [8, 128], strides = [1, 1]} : vector<8x512xf32> to vector<8x128xf32>
    %91 = arith.negf %90 : vector<8x128xf32>
    %92 = math.exp %91 : vector<8x128xf32>
    %cst_26 = arith.constant 1.000000e+00 : f32
    %93 = vector.broadcast %cst_26 : f32 to vector<8x128xf32>
    %94 = arith.addf %93, %92 : vector<8x128xf32>
    %95 = arith.divf %93, %94 : vector<8x128xf32>
    %96 = arith.mulf %87, %40 : vector<8x128xf32>
    %97 = arith.mulf %81, %89 : vector<8x128xf32>
    %98 = arith.addf %96, %97 : vector<8x128xf32>
    %99 = math.tanh %98 : vector<8x128xf32>
    %100 = arith.mulf %95, %99 : vector<8x128xf32>
    %101 = arith.truncf %100 : vector<8x128xf32> to vector<8x128xbf16>
    %102 = tpu.concatenate %101, %72 in 1 : vector<8x128xbf16>, vector<8x128xbf16> -> vector<8x256xbf16>
    %cst_27 = arith.constant dense<0.000000e+00> : vector<8x512xf32>
    %103 = tpu.matmul %102, %7, %cst_27 {dimension_numbers = #tpu.dot_dimension_numbers<[1], [0], [0], [1], [0, 0, 1, 1], [], []>} : vector<8x256xbf16>, vector<256x512xbf16>, vector<8x512xf32> -> vector<8x512xf32>
    %104 = arith.addf %103, %10 : vector<8x512xf32>
    %105 = vector.extract_strided_slice %104 {offsets = [0, 0], sizes = [8, 128], strides = [1, 1]} : vector<8x512xf32> to vector<8x128xf32>
    %106 = arith.negf %105 : vector<8x128xf32>
    %107 = math.exp %106 : vector<8x128xf32>
    %cst_28 = arith.constant 1.000000e+00 : f32
    %108 = vector.broadcast %cst_28 : f32 to vector<8x128xf32>
    %109 = arith.addf %108, %107 : vector<8x128xf32>
    %110 = arith.divf %108, %109 : vector<8x128xf32>
    %111 = vector.extract_strided_slice %104 {offsets = [0, 128], sizes = [8, 128], strides = [1, 1]} : vector<8x512xf32> to vector<8x128xf32>
    %112 = arith.negf %111 : vector<8x128xf32>
    %113 = math.exp %112 : vector<8x128xf32>
    %cst_29 = arith.constant 1.000000e+00 : f32
    %114 = vector.broadcast %cst_29 : f32 to vector<8x128xf32>
    %115 = arith.addf %114, %113 : vector<8x128xf32>
    %116 = arith.divf %114, %115 : vector<8x128xf32>
    %117 = vector.extract_strided_slice %104 {offsets = [0, 256], sizes = [8, 128], strides = [1, 1]} : vector<8x512xf32> to vector<8x128xf32>
    %118 = math.tanh %117 : vector<8x128xf32>
    %119 = vector.extract_strided_slice %104 {offsets = [0, 384], sizes = [8, 128], strides = [1, 1]} : vector<8x512xf32> to vector<8x128xf32>
    %120 = arith.negf %119 : vector<8x128xf32>
    %121 = math.exp %120 : vector<8x128xf32>
    %cst_30 = arith.constant 1.000000e+00 : f32
    %122 = vector.broadcast %cst_30 : f32 to vector<8x128xf32>
    %123 = arith.addf %122, %121 : vector<8x128xf32>
    %124 = arith.divf %122, %123 : vector<8x128xf32>
    %125 = arith.mulf %116, %69 : vector<8x128xf32>
    %126 = arith.mulf %110, %118 : vector<8x128xf32>
    %127 = arith.addf %125, %126 : vector<8x128xf32>
    %128 = math.tanh %127 : vector<8x128xf32>
    %129 = arith.mulf %124, %128 : vector<8x128xf32>
    %130 = arith.truncf %129 : vector<8x128xf32> to vector<8x128xbf16>
    %131 = vector.extract_strided_slice %5 {offsets = [16, 0], sizes = [8, 512], strides = [1, 1]} : vector<64x512xf32> to vector<8x512xf32>
    %cst_31 = arith.constant dense<0.000000e+00> : vector<8x512xf32>
    %132 = tpu.matmul %101, %6, %cst_31 {dimension_numbers = #tpu.dot_dimension_numbers<[1], [0], [0], [1], [0, 0, 1, 1], [], []>} : vector<8x128xbf16>, vector<128x512xbf16>, vector<8x512xf32> -> vector<8x512xf32>
    %133 = arith.addf %131, %132 : vector<8x512xf32>
    %134 = vector.extract_strided_slice %133 {offsets = [0, 0], sizes = [8, 128], strides = [1, 1]} : vector<8x512xf32> to vector<8x128xf32>
    %135 = arith.negf %134 : vector<8x128xf32>
    %136 = math.exp %135 : vector<8x128xf32>
    %cst_32 = arith.constant 1.000000e+00 : f32
    %137 = vector.broadcast %cst_32 : f32 to vector<8x128xf32>
    %138 = arith.addf %137, %136 : vector<8x128xf32>
    %139 = arith.divf %137, %138 : vector<8x128xf32>
    %140 = vector.extract_strided_slice %133 {offsets = [0, 128], sizes = [8, 128], strides = [1, 1]} : vector<8x512xf32> to vector<8x128xf32>
    %141 = arith.negf %140 : vector<8x128xf32>
    %142 = math.exp %141 : vector<8x128xf32>
    %cst_33 = arith.constant 1.000000e+00 : f32
    %143 = vector.broadcast %cst_33 : f32 to vector<8x128xf32>
    %144 = arith.addf %143, %142 : vector<8x128xf32>
    %145 = arith.divf %143, %144 : vector<8x128xf32>
    %146 = vector.extract_strided_slice %133 {offsets = [0, 256], sizes = [8, 128], strides = [1, 1]} : vector<8x512xf32> to vector<8x128xf32>
    %147 = math.tanh %146 : vector<8x128xf32>
    %148 = vector.extract_strided_slice %133 {offsets = [0, 384], sizes = [8, 128], strides = [1, 1]} : vector<8x512xf32> to vector<8x128xf32>
    %149 = arith.negf %148 : vector<8x128xf32>
    %150 = math.exp %149 : vector<8x128xf32>
    %cst_34 = arith.constant 1.000000e+00 : f32
    %151 = vector.broadcast %cst_34 : f32 to vector<8x128xf32>
    %152 = arith.addf %151, %150 : vector<8x128xf32>
    %153 = arith.divf %151, %152 : vector<8x128xf32>
    %154 = arith.mulf %145, %98 : vector<8x128xf32>
    %155 = arith.mulf %139, %147 : vector<8x128xf32>
    %156 = arith.addf %154, %155 : vector<8x128xf32>
    %157 = math.tanh %156 : vector<8x128xf32>
    %158 = arith.mulf %153, %157 : vector<8x128xf32>
    %159 = arith.truncf %158 : vector<8x128xf32> to vector<8x128xbf16>
    %160 = tpu.concatenate %159, %130 in 1 : vector<8x128xbf16>, vector<8x128xbf16> -> vector<8x256xbf16>
    %cst_35 = arith.constant dense<0.000000e+00> : vector<8x512xf32>
    %161 = tpu.matmul %160, %7, %cst_35 {dimension_numbers = #tpu.dot_dimension_numbers<[1], [0], [0], [1], [0, 0, 1, 1], [], []>} : vector<8x256xbf16>, vector<256x512xbf16>, vector<8x512xf32> -> vector<8x512xf32>
    %162 = arith.addf %161, %10 : vector<8x512xf32>
    %163 = vector.extract_strided_slice %162 {offsets = [0, 0], sizes = [8, 128], strides = [1, 1]} : vector<8x512xf32> to vector<8x128xf32>
    %164 = arith.negf %163 : vector<8x128xf32>
    %165 = math.exp %164 : vector<8x128xf32>
    %cst_36 = arith.constant 1.000000e+00 : f32
    %166 = vector.broadcast %cst_36 : f32 to vector<8x128xf32>
    %167 = arith.addf %166, %165 : vector<8x128xf32>
    %168 = arith.divf %166, %167 : vector<8x128xf32>
    %169 = vector.extract_strided_slice %162 {offsets = [0, 128], sizes = [8, 128], strides = [1, 1]} : vector<8x512xf32> to vector<8x128xf32>
    %170 = arith.negf %169 : vector<8x128xf32>
    %171 = math.exp %170 : vector<8x128xf32>
    %cst_37 = arith.constant 1.000000e+00 : f32
    %172 = vector.broadcast %cst_37 : f32 to vector<8x128xf32>
    %173 = arith.addf %172, %171 : vector<8x128xf32>
    %174 = arith.divf %172, %173 : vector<8x128xf32>
    %175 = vector.extract_strided_slice %162 {offsets = [0, 256], sizes = [8, 128], strides = [1, 1]} : vector<8x512xf32> to vector<8x128xf32>
    %176 = math.tanh %175 : vector<8x128xf32>
    %177 = vector.extract_strided_slice %162 {offsets = [0, 384], sizes = [8, 128], strides = [1, 1]} : vector<8x512xf32> to vector<8x128xf32>
    %178 = arith.negf %177 : vector<8x128xf32>
    %179 = math.exp %178 : vector<8x128xf32>
    %cst_38 = arith.constant 1.000000e+00 : f32
    %180 = vector.broadcast %cst_38 : f32 to vector<8x128xf32>
    %181 = arith.addf %180, %179 : vector<8x128xf32>
    %182 = arith.divf %180, %181 : vector<8x128xf32>
    %183 = arith.mulf %174, %127 : vector<8x128xf32>
    %184 = arith.mulf %168, %176 : vector<8x128xf32>
    %185 = arith.addf %183, %184 : vector<8x128xf32>
    %186 = math.tanh %185 : vector<8x128xf32>
    %187 = arith.mulf %182, %186 : vector<8x128xf32>
    %188 = arith.truncf %187 : vector<8x128xf32> to vector<8x128xbf16>
    %189 = vector.extract_strided_slice %5 {offsets = [24, 0], sizes = [8, 512], strides = [1, 1]} : vector<64x512xf32> to vector<8x512xf32>
    %cst_39 = arith.constant dense<0.000000e+00> : vector<8x512xf32>
    %190 = tpu.matmul %159, %6, %cst_39 {dimension_numbers = #tpu.dot_dimension_numbers<[1], [0], [0], [1], [0, 0, 1, 1], [], []>} : vector<8x128xbf16>, vector<128x512xbf16>, vector<8x512xf32> -> vector<8x512xf32>
    %191 = arith.addf %189, %190 : vector<8x512xf32>
    %192 = vector.extract_strided_slice %191 {offsets = [0, 0], sizes = [8, 128], strides = [1, 1]} : vector<8x512xf32> to vector<8x128xf32>
    %193 = arith.negf %192 : vector<8x128xf32>
    %194 = math.exp %193 : vector<8x128xf32>
    %cst_40 = arith.constant 1.000000e+00 : f32
    %195 = vector.broadcast %cst_40 : f32 to vector<8x128xf32>
    %196 = arith.addf %195, %194 : vector<8x128xf32>
    %197 = arith.divf %195, %196 : vector<8x128xf32>
    %198 = vector.extract_strided_slice %191 {offsets = [0, 128], sizes = [8, 128], strides = [1, 1]} : vector<8x512xf32> to vector<8x128xf32>
    %199 = arith.negf %198 : vector<8x128xf32>
    %200 = math.exp %199 : vector<8x128xf32>
    %cst_41 = arith.constant 1.000000e+00 : f32
    %201 = vector.broadcast %cst_41 : f32 to vector<8x128xf32>
    %202 = arith.addf %201, %200 : vector<8x128xf32>
    %203 = arith.divf %201, %202 : vector<8x128xf32>
    %204 = vector.extract_strided_slice %191 {offsets = [0, 256], sizes = [8, 128], strides = [1, 1]} : vector<8x512xf32> to vector<8x128xf32>
    %205 = math.tanh %204 : vector<8x128xf32>
    %206 = vector.extract_strided_slice %191 {offsets = [0, 384], sizes = [8, 128], strides = [1, 1]} : vector<8x512xf32> to vector<8x128xf32>
    %207 = arith.negf %206 : vector<8x128xf32>
    %208 = math.exp %207 : vector<8x128xf32>
    %cst_42 = arith.constant 1.000000e+00 : f32
    %209 = vector.broadcast %cst_42 : f32 to vector<8x128xf32>
    %210 = arith.addf %209, %208 : vector<8x128xf32>
    %211 = arith.divf %209, %210 : vector<8x128xf32>
    %212 = arith.mulf %203, %156 : vector<8x128xf32>
    %213 = arith.mulf %197, %205 : vector<8x128xf32>
    %214 = arith.addf %212, %213 : vector<8x128xf32>
    %215 = math.tanh %214 : vector<8x128xf32>
    %216 = arith.mulf %211, %215 : vector<8x128xf32>
    %217 = arith.truncf %216 : vector<8x128xf32> to vector<8x128xbf16>
    %218 = tpu.concatenate %217, %188 in 1 : vector<8x128xbf16>, vector<8x128xbf16> -> vector<8x256xbf16>
    %cst_43 = arith.constant dense<0.000000e+00> : vector<8x512xf32>
    %219 = tpu.matmul %218, %7, %cst_43 {dimension_numbers = #tpu.dot_dimension_numbers<[1], [0], [0], [1], [0, 0, 1, 1], [], []>} : vector<8x256xbf16>, vector<256x512xbf16>, vector<8x512xf32> -> vector<8x512xf32>
    %220 = arith.addf %219, %10 : vector<8x512xf32>
    %221 = vector.extract_strided_slice %220 {offsets = [0, 0], sizes = [8, 128], strides = [1, 1]} : vector<8x512xf32> to vector<8x128xf32>
    %222 = arith.negf %221 : vector<8x128xf32>
    %223 = math.exp %222 : vector<8x128xf32>
    %cst_44 = arith.constant 1.000000e+00 : f32
    %224 = vector.broadcast %cst_44 : f32 to vector<8x128xf32>
    %225 = arith.addf %224, %223 : vector<8x128xf32>
    %226 = arith.divf %224, %225 : vector<8x128xf32>
    %227 = vector.extract_strided_slice %220 {offsets = [0, 128], sizes = [8, 128], strides = [1, 1]} : vector<8x512xf32> to vector<8x128xf32>
    %228 = arith.negf %227 : vector<8x128xf32>
    %229 = math.exp %228 : vector<8x128xf32>
    %cst_45 = arith.constant 1.000000e+00 : f32
    %230 = vector.broadcast %cst_45 : f32 to vector<8x128xf32>
    %231 = arith.addf %230, %229 : vector<8x128xf32>
    %232 = arith.divf %230, %231 : vector<8x128xf32>
    %233 = vector.extract_strided_slice %220 {offsets = [0, 256], sizes = [8, 128], strides = [1, 1]} : vector<8x512xf32> to vector<8x128xf32>
    %234 = math.tanh %233 : vector<8x128xf32>
    %235 = vector.extract_strided_slice %220 {offsets = [0, 384], sizes = [8, 128], strides = [1, 1]} : vector<8x512xf32> to vector<8x128xf32>
    %236 = arith.negf %235 : vector<8x128xf32>
    %237 = math.exp %236 : vector<8x128xf32>
    %cst_46 = arith.constant 1.000000e+00 : f32
    %238 = vector.broadcast %cst_46 : f32 to vector<8x128xf32>
    %239 = arith.addf %238, %237 : vector<8x128xf32>
    %240 = arith.divf %238, %239 : vector<8x128xf32>
    %241 = arith.mulf %232, %185 : vector<8x128xf32>
    %242 = arith.mulf %226, %234 : vector<8x128xf32>
    %243 = arith.addf %241, %242 : vector<8x128xf32>
    %244 = math.tanh %243 : vector<8x128xf32>
    %245 = arith.mulf %240, %244 : vector<8x128xf32>
    %246 = arith.truncf %245 : vector<8x128xf32> to vector<8x128xbf16>
    %247 = vector.extract_strided_slice %5 {offsets = [32, 0], sizes = [8, 512], strides = [1, 1]} : vector<64x512xf32> to vector<8x512xf32>
    %cst_47 = arith.constant dense<0.000000e+00> : vector<8x512xf32>
    %248 = tpu.matmul %217, %6, %cst_47 {dimension_numbers = #tpu.dot_dimension_numbers<[1], [0], [0], [1], [0, 0, 1, 1], [], []>} : vector<8x128xbf16>, vector<128x512xbf16>, vector<8x512xf32> -> vector<8x512xf32>
    %249 = arith.addf %247, %248 : vector<8x512xf32>
    %250 = vector.extract_strided_slice %249 {offsets = [0, 0], sizes = [8, 128], strides = [1, 1]} : vector<8x512xf32> to vector<8x128xf32>
    %251 = arith.negf %250 : vector<8x128xf32>
    %252 = math.exp %251 : vector<8x128xf32>
    %cst_48 = arith.constant 1.000000e+00 : f32
    %253 = vector.broadcast %cst_48 : f32 to vector<8x128xf32>
    %254 = arith.addf %253, %252 : vector<8x128xf32>
    %255 = arith.divf %253, %254 : vector<8x128xf32>
    %256 = vector.extract_strided_slice %249 {offsets = [0, 128], sizes = [8, 128], strides = [1, 1]} : vector<8x512xf32> to vector<8x128xf32>
    %257 = arith.negf %256 : vector<8x128xf32>
    %258 = math.exp %257 : vector<8x128xf32>
    %cst_49 = arith.constant 1.000000e+00 : f32
    %259 = vector.broadcast %cst_49 : f32 to vector<8x128xf32>
    %260 = arith.addf %259, %258 : vector<8x128xf32>
    %261 = arith.divf %259, %260 : vector<8x128xf32>
    %262 = vector.extract_strided_slice %249 {offsets = [0, 256], sizes = [8, 128], strides = [1, 1]} : vector<8x512xf32> to vector<8x128xf32>
    %263 = math.tanh %262 : vector<8x128xf32>
    %264 = vector.extract_strided_slice %249 {offsets = [0, 384], sizes = [8, 128], strides = [1, 1]} : vector<8x512xf32> to vector<8x128xf32>
    %265 = arith.negf %264 : vector<8x128xf32>
    %266 = math.exp %265 : vector<8x128xf32>
    %cst_50 = arith.constant 1.000000e+00 : f32
    %267 = vector.broadcast %cst_50 : f32 to vector<8x128xf32>
    %268 = arith.addf %267, %266 : vector<8x128xf32>
    %269 = arith.divf %267, %268 : vector<8x128xf32>
    %270 = arith.mulf %261, %214 : vector<8x128xf32>
    %271 = arith.mulf %255, %263 : vector<8x128xf32>
    %272 = arith.addf %270, %271 : vector<8x128xf32>
    %273 = math.tanh %272 : vector<8x128xf32>
    %274 = arith.mulf %269, %273 : vector<8x128xf32>
    %275 = arith.truncf %274 : vector<8x128xf32> to vector<8x128xbf16>
    %276 = tpu.concatenate %275, %246 in 1 : vector<8x128xbf16>, vector<8x128xbf16> -> vector<8x256xbf16>
    %cst_51 = arith.constant dense<0.000000e+00> : vector<8x512xf32>
    %277 = tpu.matmul %276, %7, %cst_51 {dimension_numbers = #tpu.dot_dimension_numbers<[1], [0], [0], [1], [0, 0, 1, 1], [], []>} : vector<8x256xbf16>, vector<256x512xbf16>, vector<8x512xf32> -> vector<8x512xf32>
    %278 = arith.addf %277, %10 : vector<8x512xf32>
    %279 = vector.extract_strided_slice %278 {offsets = [0, 0], sizes = [8, 128], strides = [1, 1]} : vector<8x512xf32> to vector<8x128xf32>
    %280 = arith.negf %279 : vector<8x128xf32>
    %281 = math.exp %280 : vector<8x128xf32>
    %cst_52 = arith.constant 1.000000e+00 : f32
    %282 = vector.broadcast %cst_52 : f32 to vector<8x128xf32>
    %283 = arith.addf %282, %281 : vector<8x128xf32>
    %284 = arith.divf %282, %283 : vector<8x128xf32>
    %285 = vector.extract_strided_slice %278 {offsets = [0, 128], sizes = [8, 128], strides = [1, 1]} : vector<8x512xf32> to vector<8x128xf32>
    %286 = arith.negf %285 : vector<8x128xf32>
    %287 = math.exp %286 : vector<8x128xf32>
    %cst_53 = arith.constant 1.000000e+00 : f32
    %288 = vector.broadcast %cst_53 : f32 to vector<8x128xf32>
    %289 = arith.addf %288, %287 : vector<8x128xf32>
    %290 = arith.divf %288, %289 : vector<8x128xf32>
    %291 = vector.extract_strided_slice %278 {offsets = [0, 256], sizes = [8, 128], strides = [1, 1]} : vector<8x512xf32> to vector<8x128xf32>
    %292 = math.tanh %291 : vector<8x128xf32>
    %293 = vector.extract_strided_slice %278 {offsets = [0, 384], sizes = [8, 128], strides = [1, 1]} : vector<8x512xf32> to vector<8x128xf32>
    %294 = arith.negf %293 : vector<8x128xf32>
    %295 = math.exp %294 : vector<8x128xf32>
    %cst_54 = arith.constant 1.000000e+00 : f32
    %296 = vector.broadcast %cst_54 : f32 to vector<8x128xf32>
    %297 = arith.addf %296, %295 : vector<8x128xf32>
    %298 = arith.divf %296, %297 : vector<8x128xf32>
    %299 = arith.mulf %290, %243 : vector<8x128xf32>
    %300 = arith.mulf %284, %292 : vector<8x128xf32>
    %301 = arith.addf %299, %300 : vector<8x128xf32>
    %302 = math.tanh %301 : vector<8x128xf32>
    %303 = arith.mulf %298, %302 : vector<8x128xf32>
    %304 = arith.truncf %303 : vector<8x128xf32> to vector<8x128xbf16>
    %305 = vector.extract_strided_slice %5 {offsets = [40, 0], sizes = [8, 512], strides = [1, 1]} : vector<64x512xf32> to vector<8x512xf32>
    %cst_55 = arith.constant dense<0.000000e+00> : vector<8x512xf32>
    %306 = tpu.matmul %275, %6, %cst_55 {dimension_numbers = #tpu.dot_dimension_numbers<[1], [0], [0], [1], [0, 0, 1, 1], [], []>} : vector<8x128xbf16>, vector<128x512xbf16>, vector<8x512xf32> -> vector<8x512xf32>
    %307 = arith.addf %305, %306 : vector<8x512xf32>
    %308 = vector.extract_strided_slice %307 {offsets = [0, 0], sizes = [8, 128], strides = [1, 1]} : vector<8x512xf32> to vector<8x128xf32>
    %309 = arith.negf %308 : vector<8x128xf32>
    %310 = math.exp %309 : vector<8x128xf32>
    %cst_56 = arith.constant 1.000000e+00 : f32
    %311 = vector.broadcast %cst_56 : f32 to vector<8x128xf32>
    %312 = arith.addf %311, %310 : vector<8x128xf32>
    %313 = arith.divf %311, %312 : vector<8x128xf32>
    %314 = vector.extract_strided_slice %307 {offsets = [0, 128], sizes = [8, 128], strides = [1, 1]} : vector<8x512xf32> to vector<8x128xf32>
    %315 = arith.negf %314 : vector<8x128xf32>
    %316 = math.exp %315 : vector<8x128xf32>
    %cst_57 = arith.constant 1.000000e+00 : f32
    %317 = vector.broadcast %cst_57 : f32 to vector<8x128xf32>
    %318 = arith.addf %317, %316 : vector<8x128xf32>
    %319 = arith.divf %317, %318 : vector<8x128xf32>
    %320 = vector.extract_strided_slice %307 {offsets = [0, 256], sizes = [8, 128], strides = [1, 1]} : vector<8x512xf32> to vector<8x128xf32>
    %321 = math.tanh %320 : vector<8x128xf32>
    %322 = vector.extract_strided_slice %307 {offsets = [0, 384], sizes = [8, 128], strides = [1, 1]} : vector<8x512xf32> to vector<8x128xf32>
    %323 = arith.negf %322 : vector<8x128xf32>
    %324 = math.exp %323 : vector<8x128xf32>
    %cst_58 = arith.constant 1.000000e+00 : f32
    %325 = vector.broadcast %cst_58 : f32 to vector<8x128xf32>
    %326 = arith.addf %325, %324 : vector<8x128xf32>
    %327 = arith.divf %325, %326 : vector<8x128xf32>
    %328 = arith.mulf %319, %272 : vector<8x128xf32>
    %329 = arith.mulf %313, %321 : vector<8x128xf32>
    %330 = arith.addf %328, %329 : vector<8x128xf32>
    %331 = math.tanh %330 : vector<8x128xf32>
    %332 = arith.mulf %327, %331 : vector<8x128xf32>
    %333 = arith.truncf %332 : vector<8x128xf32> to vector<8x128xbf16>
    %334 = tpu.concatenate %333, %304 in 1 : vector<8x128xbf16>, vector<8x128xbf16> -> vector<8x256xbf16>
    %cst_59 = arith.constant dense<0.000000e+00> : vector<8x512xf32>
    %335 = tpu.matmul %334, %7, %cst_59 {dimension_numbers = #tpu.dot_dimension_numbers<[1], [0], [0], [1], [0, 0, 1, 1], [], []>} : vector<8x256xbf16>, vector<256x512xbf16>, vector<8x512xf32> -> vector<8x512xf32>
    %336 = arith.addf %335, %10 : vector<8x512xf32>
    %337 = vector.extract_strided_slice %336 {offsets = [0, 0], sizes = [8, 128], strides = [1, 1]} : vector<8x512xf32> to vector<8x128xf32>
    %338 = arith.negf %337 : vector<8x128xf32>
    %339 = math.exp %338 : vector<8x128xf32>
    %cst_60 = arith.constant 1.000000e+00 : f32
    %340 = vector.broadcast %cst_60 : f32 to vector<8x128xf32>
    %341 = arith.addf %340, %339 : vector<8x128xf32>
    %342 = arith.divf %340, %341 : vector<8x128xf32>
    %343 = vector.extract_strided_slice %336 {offsets = [0, 128], sizes = [8, 128], strides = [1, 1]} : vector<8x512xf32> to vector<8x128xf32>
    %344 = arith.negf %343 : vector<8x128xf32>
    %345 = math.exp %344 : vector<8x128xf32>
    %cst_61 = arith.constant 1.000000e+00 : f32
    %346 = vector.broadcast %cst_61 : f32 to vector<8x128xf32>
    %347 = arith.addf %346, %345 : vector<8x128xf32>
    %348 = arith.divf %346, %347 : vector<8x128xf32>
    %349 = vector.extract_strided_slice %336 {offsets = [0, 256], sizes = [8, 128], strides = [1, 1]} : vector<8x512xf32> to vector<8x128xf32>
    %350 = math.tanh %349 : vector<8x128xf32>
    %351 = vector.extract_strided_slice %336 {offsets = [0, 384], sizes = [8, 128], strides = [1, 1]} : vector<8x512xf32> to vector<8x128xf32>
    %352 = arith.negf %351 : vector<8x128xf32>
    %353 = math.exp %352 : vector<8x128xf32>
    %cst_62 = arith.constant 1.000000e+00 : f32
    %354 = vector.broadcast %cst_62 : f32 to vector<8x128xf32>
    %355 = arith.addf %354, %353 : vector<8x128xf32>
    %356 = arith.divf %354, %355 : vector<8x128xf32>
    %357 = arith.mulf %348, %301 : vector<8x128xf32>
    %358 = arith.mulf %342, %350 : vector<8x128xf32>
    %359 = arith.addf %357, %358 : vector<8x128xf32>
    %360 = math.tanh %359 : vector<8x128xf32>
    %361 = arith.mulf %356, %360 : vector<8x128xf32>
    %362 = arith.truncf %361 : vector<8x128xf32> to vector<8x128xbf16>
    %363 = vector.extract_strided_slice %5 {offsets = [48, 0], sizes = [8, 512], strides = [1, 1]} : vector<64x512xf32> to vector<8x512xf32>
    %cst_63 = arith.constant dense<0.000000e+00> : vector<8x512xf32>
    %364 = tpu.matmul %333, %6, %cst_63 {dimension_numbers = #tpu.dot_dimension_numbers<[1], [0], [0], [1], [0, 0, 1, 1], [], []>} : vector<8x128xbf16>, vector<128x512xbf16>, vector<8x512xf32> -> vector<8x512xf32>
    %365 = arith.addf %363, %364 : vector<8x512xf32>
    %366 = vector.extract_strided_slice %365 {offsets = [0, 0], sizes = [8, 128], strides = [1, 1]} : vector<8x512xf32> to vector<8x128xf32>
    %367 = arith.negf %366 : vector<8x128xf32>
    %368 = math.exp %367 : vector<8x128xf32>
    %cst_64 = arith.constant 1.000000e+00 : f32
    %369 = vector.broadcast %cst_64 : f32 to vector<8x128xf32>
    %370 = arith.addf %369, %368 : vector<8x128xf32>
    %371 = arith.divf %369, %370 : vector<8x128xf32>
    %372 = vector.extract_strided_slice %365 {offsets = [0, 128], sizes = [8, 128], strides = [1, 1]} : vector<8x512xf32> to vector<8x128xf32>
    %373 = arith.negf %372 : vector<8x128xf32>
    %374 = math.exp %373 : vector<8x128xf32>
    %cst_65 = arith.constant 1.000000e+00 : f32
    %375 = vector.broadcast %cst_65 : f32 to vector<8x128xf32>
    %376 = arith.addf %375, %374 : vector<8x128xf32>
    %377 = arith.divf %375, %376 : vector<8x128xf32>
    %378 = vector.extract_strided_slice %365 {offsets = [0, 256], sizes = [8, 128], strides = [1, 1]} : vector<8x512xf32> to vector<8x128xf32>
    %379 = math.tanh %378 : vector<8x128xf32>
    %380 = vector.extract_strided_slice %365 {offsets = [0, 384], sizes = [8, 128], strides = [1, 1]} : vector<8x512xf32> to vector<8x128xf32>
    %381 = arith.negf %380 : vector<8x128xf32>
    %382 = math.exp %381 : vector<8x128xf32>
    %cst_66 = arith.constant 1.000000e+00 : f32
    %383 = vector.broadcast %cst_66 : f32 to vector<8x128xf32>
    %384 = arith.addf %383, %382 : vector<8x128xf32>
    %385 = arith.divf %383, %384 : vector<8x128xf32>
    %386 = arith.mulf %377, %330 : vector<8x128xf32>
    %387 = arith.mulf %371, %379 : vector<8x128xf32>
    %388 = arith.addf %386, %387 : vector<8x128xf32>
    %389 = math.tanh %388 : vector<8x128xf32>
    %390 = arith.mulf %385, %389 : vector<8x128xf32>
    %391 = arith.truncf %390 : vector<8x128xf32> to vector<8x128xbf16>
    %392 = tpu.concatenate %391, %362 in 1 : vector<8x128xbf16>, vector<8x128xbf16> -> vector<8x256xbf16>
    %cst_67 = arith.constant dense<0.000000e+00> : vector<8x512xf32>
    %393 = tpu.matmul %392, %7, %cst_67 {dimension_numbers = #tpu.dot_dimension_numbers<[1], [0], [0], [1], [0, 0, 1, 1], [], []>} : vector<8x256xbf16>, vector<256x512xbf16>, vector<8x512xf32> -> vector<8x512xf32>
    %394 = arith.addf %393, %10 : vector<8x512xf32>
    %395 = vector.extract_strided_slice %394 {offsets = [0, 0], sizes = [8, 128], strides = [1, 1]} : vector<8x512xf32> to vector<8x128xf32>
    %396 = arith.negf %395 : vector<8x128xf32>
    %397 = math.exp %396 : vector<8x128xf32>
    %cst_68 = arith.constant 1.000000e+00 : f32
    %398 = vector.broadcast %cst_68 : f32 to vector<8x128xf32>
    %399 = arith.addf %398, %397 : vector<8x128xf32>
    %400 = arith.divf %398, %399 : vector<8x128xf32>
    %401 = vector.extract_strided_slice %394 {offsets = [0, 128], sizes = [8, 128], strides = [1, 1]} : vector<8x512xf32> to vector<8x128xf32>
    %402 = arith.negf %401 : vector<8x128xf32>
    %403 = math.exp %402 : vector<8x128xf32>
    %cst_69 = arith.constant 1.000000e+00 : f32
    %404 = vector.broadcast %cst_69 : f32 to vector<8x128xf32>
    %405 = arith.addf %404, %403 : vector<8x128xf32>
    %406 = arith.divf %404, %405 : vector<8x128xf32>
    %407 = vector.extract_strided_slice %394 {offsets = [0, 256], sizes = [8, 128], strides = [1, 1]} : vector<8x512xf32> to vector<8x128xf32>
    %408 = math.tanh %407 : vector<8x128xf32>
    %409 = vector.extract_strided_slice %394 {offsets = [0, 384], sizes = [8, 128], strides = [1, 1]} : vector<8x512xf32> to vector<8x128xf32>
    %410 = arith.negf %409 : vector<8x128xf32>
    %411 = math.exp %410 : vector<8x128xf32>
    %cst_70 = arith.constant 1.000000e+00 : f32
    %412 = vector.broadcast %cst_70 : f32 to vector<8x128xf32>
    %413 = arith.addf %412, %411 : vector<8x128xf32>
    %414 = arith.divf %412, %413 : vector<8x128xf32>
    %415 = arith.mulf %406, %359 : vector<8x128xf32>
    %416 = arith.mulf %400, %408 : vector<8x128xf32>
    %417 = arith.addf %415, %416 : vector<8x128xf32>
    %418 = math.tanh %417 : vector<8x128xf32>
    %419 = arith.mulf %414, %418 : vector<8x128xf32>
    %420 = arith.truncf %419 : vector<8x128xf32> to vector<8x128xbf16>
    %421 = vector.extract_strided_slice %5 {offsets = [56, 0], sizes = [8, 512], strides = [1, 1]} : vector<64x512xf32> to vector<8x512xf32>
    %cst_71 = arith.constant dense<0.000000e+00> : vector<8x512xf32>
    %422 = tpu.matmul %391, %6, %cst_71 {dimension_numbers = #tpu.dot_dimension_numbers<[1], [0], [0], [1], [0, 0, 1, 1], [], []>} : vector<8x128xbf16>, vector<128x512xbf16>, vector<8x512xf32> -> vector<8x512xf32>
    %423 = arith.addf %421, %422 : vector<8x512xf32>
    %424 = vector.extract_strided_slice %423 {offsets = [0, 0], sizes = [8, 128], strides = [1, 1]} : vector<8x512xf32> to vector<8x128xf32>
    %425 = arith.negf %424 : vector<8x128xf32>
    %426 = math.exp %425 : vector<8x128xf32>
    %cst_72 = arith.constant 1.000000e+00 : f32
    %427 = vector.broadcast %cst_72 : f32 to vector<8x128xf32>
    %428 = arith.addf %427, %426 : vector<8x128xf32>
    %429 = arith.divf %427, %428 : vector<8x128xf32>
    %430 = vector.extract_strided_slice %423 {offsets = [0, 128], sizes = [8, 128], strides = [1, 1]} : vector<8x512xf32> to vector<8x128xf32>
    %431 = arith.negf %430 : vector<8x128xf32>
    %432 = math.exp %431 : vector<8x128xf32>
    %cst_73 = arith.constant 1.000000e+00 : f32
    %433 = vector.broadcast %cst_73 : f32 to vector<8x128xf32>
    %434 = arith.addf %433, %432 : vector<8x128xf32>
    %435 = arith.divf %433, %434 : vector<8x128xf32>
    %436 = vector.extract_strided_slice %423 {offsets = [0, 256], sizes = [8, 128], strides = [1, 1]} : vector<8x512xf32> to vector<8x128xf32>
    %437 = math.tanh %436 : vector<8x128xf32>
    %438 = vector.extract_strided_slice %423 {offsets = [0, 384], sizes = [8, 128], strides = [1, 1]} : vector<8x512xf32> to vector<8x128xf32>
    %439 = arith.negf %438 : vector<8x128xf32>
    %440 = math.exp %439 : vector<8x128xf32>
    %cst_74 = arith.constant 1.000000e+00 : f32
    %441 = vector.broadcast %cst_74 : f32 to vector<8x128xf32>
    %442 = arith.addf %441, %440 : vector<8x128xf32>
    %443 = arith.divf %441, %442 : vector<8x128xf32>
    %444 = arith.mulf %435, %388 : vector<8x128xf32>
    %445 = arith.mulf %429, %437 : vector<8x128xf32>
    %446 = arith.addf %444, %445 : vector<8x128xf32>
    %447 = math.tanh %446 : vector<8x128xf32>
    %448 = arith.mulf %443, %447 : vector<8x128xf32>
    %449 = arith.truncf %448 : vector<8x128xf32> to vector<8x128xbf16>
    %450 = tpu.concatenate %449, %420 in 1 : vector<8x128xbf16>, vector<8x128xbf16> -> vector<8x256xbf16>
    %cst_75 = arith.constant dense<0.000000e+00> : vector<8x512xf32>
    %451 = tpu.matmul %450, %7, %cst_75 {dimension_numbers = #tpu.dot_dimension_numbers<[1], [0], [0], [1], [0, 0, 1, 1], [], []>} : vector<8x256xbf16>, vector<256x512xbf16>, vector<8x512xf32> -> vector<8x512xf32>
    %452 = arith.addf %451, %10 : vector<8x512xf32>
    %453 = vector.extract_strided_slice %452 {offsets = [0, 0], sizes = [8, 128], strides = [1, 1]} : vector<8x512xf32> to vector<8x128xf32>
    %454 = arith.negf %453 : vector<8x128xf32>
    %455 = math.exp %454 : vector<8x128xf32>
    %cst_76 = arith.constant 1.000000e+00 : f32
    %456 = vector.broadcast %cst_76 : f32 to vector<8x128xf32>
    %457 = arith.addf %456, %455 : vector<8x128xf32>
    %458 = arith.divf %456, %457 : vector<8x128xf32>
    %459 = vector.extract_strided_slice %452 {offsets = [0, 128], sizes = [8, 128], strides = [1, 1]} : vector<8x512xf32> to vector<8x128xf32>
    %460 = arith.negf %459 : vector<8x128xf32>
    %461 = math.exp %460 : vector<8x128xf32>
    %cst_77 = arith.constant 1.000000e+00 : f32
    %462 = vector.broadcast %cst_77 : f32 to vector<8x128xf32>
    %463 = arith.addf %462, %461 : vector<8x128xf32>
    %464 = arith.divf %462, %463 : vector<8x128xf32>
    %465 = vector.extract_strided_slice %452 {offsets = [0, 256], sizes = [8, 128], strides = [1, 1]} : vector<8x512xf32> to vector<8x128xf32>
    %466 = math.tanh %465 : vector<8x128xf32>
    %467 = vector.extract_strided_slice %452 {offsets = [0, 384], sizes = [8, 128], strides = [1, 1]} : vector<8x512xf32> to vector<8x128xf32>
    %468 = arith.negf %467 : vector<8x128xf32>
    %469 = math.exp %468 : vector<8x128xf32>
    %cst_78 = arith.constant 1.000000e+00 : f32
    %470 = vector.broadcast %cst_78 : f32 to vector<8x128xf32>
    %471 = arith.addf %470, %469 : vector<8x128xf32>
    %472 = arith.divf %470, %471 : vector<8x128xf32>
    %473 = arith.mulf %464, %417 : vector<8x128xf32>
    %474 = arith.mulf %458, %466 : vector<8x128xf32>
    %475 = arith.addf %473, %474 : vector<8x128xf32>
    %476 = math.tanh %475 : vector<8x128xf32>
    %477 = arith.mulf %472, %476 : vector<8x128xf32>
    %478 = arith.truncf %477 : vector<8x128xf32> to vector<8x128xbf16>
    %c0_79 = arith.constant 0 : index
    %c0_80 = arith.constant 0 : index
    %479 = vector.load %arg6[%c0_79, %c0_80] : memref<128x128xbf16, #tpu.memory_space<vmem>>, vector<128x128xbf16>
    %cst_81 = arith.constant dense<0.000000e+00> : vector<8x128xf32>
    %480 = tpu.matmul %478, %479, %cst_81 {dimension_numbers = #tpu.dot_dimension_numbers<[1], [0], [0], [1], [0, 0, 1, 1], [], []>} : vector<8x128xbf16>, vector<128x128xbf16>, vector<8x128xf32> -> vector<8x128xf32>
    %c0_82 = arith.constant 0 : index
    %c0_83 = arith.constant 0 : index
    %481 = vector.load %arg7[%c0_82, %c0_83] : memref<1x128xf32, #tpu.memory_space<vmem>>, vector<1x128xf32>
    %482 = vector.broadcast %481 : vector<1x128xf32> to vector<8x128xf32>
    %483 = arith.addf %480, %482 : vector<8x128xf32>
    %c0_84 = arith.constant 0 : index
    %c0_85 = arith.constant 0 : index
    %484 = vector.load %arg8[%c0_84, %c0_85] : memref<8x128xf32, #tpu.memory_space<vmem>>, vector<8x128xf32>
    tpu.vector_store %arg8[%c0_84, %c0_85], %483 {strides = array<i32>} : memref<8x128xf32, #tpu.memory_space<vmem>>, vector<8x128xf32>,
    return
  }
}

</mosaic_0001>

<llo_original>
// kernel: tpu_custom_call.1
$region0: #{tpu_custom_call.1}
  #allocation0 [shape = 'u32[]', space=smem, size = 0x4, offset = 0x4, fixed_abs, tag = 'smem constant byte address 0x4 - core index']
  #allocation1 [shape = 'u32[72,128]{1,0:T(1,128)}', space=vmem, size = 0x9000, scoped, tag = 'internal scratch']
  %s0 = inlined_call_operand.vmem [shape: f32[64,6], index: 0, kind: input, shape index: {}]
  %s1 = inlined_call_operand.hbm [shape: f32[6,512], index: 1, kind: input, shape index: {}]
  %s2 = inlined_call_operand.vmem [shape: f32[1,512], index: 2, kind: input, shape index: {}]
  %s3 = inlined_call_operand.hbm [shape: bf16[128,512], index: 3, kind: input, shape index: {}]
  %s4 = inlined_call_operand.hbm [shape: bf16[256,512], index: 4, kind: input, shape index: {}]
  %s5 = inlined_call_operand.vmem [shape: f32[1,512], index: 5, kind: input, shape index: {}]
  %s6 = inlined_call_operand.vmem [shape: bf16[128,128], index: 6, kind: input, shape index: {}]
  %s7 = inlined_call_operand.vmem [shape: f32[1,128], index: 7, kind: input, shape index: {}]
  %s8 = inlined_call_operand.hbm [shape: f32[8,128], index: 8, kind: output, shape index: {}]
  %s9 = sld [smem:[#allocation0]]
  $region54: #{tpu_custom_call.1} parent=0
    _
  %s11 = ssub.s32 1, %s9
  %s12 = scalar_select 0, %s11, %s9
  $region1: #{tpu_custom_call.1} parent=0
    #allocation2 [shape = 'u8[16384]{0}', space=vmem, size = 0x4000, scoped, tag = 'input window, operand 1, single buffered']
    #allocation3 [shape = 's32[1]{0}', space=sflag, size = 0x4, scoped, tag = 'scoped memory for tpu_custom_call.1']
    #allocation4 [shape = 's32[1]{0}', space=sflag, size = 0x4, scoped, tag = 'scoped memory for tpu_custom_call.1']
    #allocation5 [shape = 'u8[131072]{0}', space=vmem, size = 0x20000, scoped, tag = 'input window, operand 3, single buffered']
    #allocation6 [shape = 's32[1]{0}', space=sflag, size = 0x4, scoped, tag = 'scoped memory for tpu_custom_call.1']
    #allocation7 [shape = 'u8[262144]{0}', space=vmem, size = 0x40000, scoped, tag = 'input window, operand 4, single buffered']
    #allocation8 [shape = 'u8[4096]{0}', space=vmem, size = 0x1000, scoped, tag = 'output window, operand 0, single buffered']
    %13 = vsyncpa [#allocation3], 0
    %14 = vsyncpa [#allocation6], 0
    %15 = vsyncpa [#allocation4], 0
    // Predicated region
    $region2: #{tpu_custom_call.1} parent=1 // pred_check
      _
    $region3: #{tpu_custom_call.1} parent=1 // pred_check_branch
      %17 = sbr.rel (0) target = $region5
    $region4: #{tpu_custom_call.1} parent=1 // pred_region
      _
    $region5: #{tpu_custom_call.1} parent=1 // pred_fallthru
      _
    // Predicated region
    $region6: #{tpu_custom_call.1} parent=1 // pred_check
      _
    $region7: #{tpu_custom_call.1} parent=1 // pred_check_branch
      %19 = sbr.rel (0) target = $region9
    $region8: #{tpu_custom_call.1} parent=1 // pred_region
      %21 = vsyncadd [#allocation3], 0
      %s23 = sshll.u32 %s1, 4
      %s24 = int_to_ptr.hbm [resolvable:$true] %s23
      %s25 = sshll.u32 [#allocation2], 4
      %s26 = int_to_ptr.vmem [resolvable:$true] %s25
      %28 = dma.hbm_to_vmem [thread:$0]  %s24, 512, %s26, [#allocation3]
    $region9: #{tpu_custom_call.1} parent=1 // pred_fallthru
      _
    // Predicated region
    $region10: #{tpu_custom_call.1} parent=1 // pred_check
      _
    $region11: #{tpu_custom_call.1} parent=1 // pred_check_branch
      %30 = sbr.rel (0) target = $region13
    $region12: #{tpu_custom_call.1} parent=1 // pred_region
      _
    $region13: #{tpu_custom_call.1} parent=1 // pred_fallthru
      _
    // Predicated region
    $region14: #{tpu_custom_call.1} parent=1 // pred_check
      _
    $region15: #{tpu_custom_call.1} parent=1 // pred_check_branch
      %32 = sbr.rel (0) target = $region17
    $region16: #{tpu_custom_call.1} parent=1 // pred_region
      %34 = vsyncadd [#allocation6], 0
      %s35 = sshll.u32 %s3, 4
      %s36 = int_to_ptr.hbm [resolvable:$true] %s35
      %s37 = sshll.u32 [#allocation5], 4
      %s38 = int_to_ptr.vmem [resolvable:$true] %s37
      %43 = dma.hbm_to_vmem [thread:$0]  %s36, 4096, %s38, [#allocation6], 256, 256, 16
    $region17: #{tpu_custom_call.1} parent=1 // pred_fallthru
      _
    // Predicated region
    $region18: #{tpu_custom_call.1} parent=1 // pred_check
      _
    $region19: #{tpu_custom_call.1} parent=1 // pred_check_branch
      %45 = sbr.rel (0) target = $region21
    $region20: #{tpu_custom_call.1} parent=1 // pred_region
      %47 = vsyncadd [#allocation6], 0
      %s48 = sshll.u32 %s4, 4
      %s49 = int_to_ptr.hbm [resolvable:$true] %s48
      %s50 = sshll.u32 [#allocation7], 4
      %s51 = int_to_ptr.vmem [resolvable:$true] %s50
      %56 = dma.hbm_to_vmem [thread:$0]  %s49, 8192, %s51, [#allocation6], 256, 256, 16
    $region21: #{tpu_custom_call.1} parent=1 // pred_fallthru
      _
    // Predicated region
    $region22: #{tpu_custom_call.1} parent=1 // pred_check
      _
    $region23: #{tpu_custom_call.1} parent=1 // pred_check_branch
      %58 = sbr.rel (0) target = $region25
    $region24: #{tpu_custom_call.1} parent=1 // pred_region
      _
    $region25: #{tpu_custom_call.1} parent=1 // pred_fallthru
      _
    // Predicated region
    $region26: #{tpu_custom_call.1} parent=1 // pred_check
      _
    $region27: #{tpu_custom_call.1} parent=1 // pred_check_branch
      %60 = sbr.rel (0) target = $region29
    $region28: #{tpu_custom_call.1} parent=1 // pred_region
      _
    $region29: #{tpu_custom_call.1} parent=1 // pred_fallthru
      _
    // Predicated region
    $region30: #{tpu_custom_call.1} parent=1 // pred_check
      _
    $region31: #{tpu_custom_call.1} parent=1 // pred_check_branch
      %62 = sbr.rel (0) target = $region33
    $region32: #{tpu_custom_call.1} parent=1 // pred_region
      _
    $region33: #{tpu_custom_call.1} parent=1 // pred_fallthru
      _
    // Predicated region
    $region34: #{tpu_custom_call.1} parent=1 // pred_check
      _
    $region35: #{tpu_custom_call.1} parent=1 // pred_check_branch
      %64 = sbr.rel (0) target = $region37
    $region36: #{tpu_custom_call.1} parent=1 // pred_region
      %66 = dma.done [#allocation3], 512
    $region37: #{tpu_custom_call.1} parent=1 // pred_fallthru
      _
    // Predicated region
    $region38: #{tpu_custom_call.1} parent=1 // pred_check
      _
    $region39: #{tpu_custom_call.1} parent=1 // pred_check_branch
      %68 = sbr.rel (0) target = $region41
    $region40: #{tpu_custom_call.1} parent=1 // pred_region
      %70 = dma.done [#allocation6], 4096
    $region41: #{tpu_custom_call.1} parent=1 // pred_fallthru
      _
    // Predicated region
    $region42: #{tpu_custom_call.1} parent=1 // pred_check
      _
    $region43: #{tpu_custom_call.1} parent=1 // pred_check_branch
      %72 = sbr.rel (0) target = $region45
    $region44: #{tpu_custom_call.1} parent=1 // pred_region
      %74 = dma.done [#allocation6], 8192
    $region45: #{tpu_custom_call.1} parent=1 // pred_fallthru
      _
    %v76 = vld [vmem:[%s0] sm:$0xff]
    %v77 = vld [vmem:[%s0 + $0x8] sm:$0xff]
    %v78 = vld [vmem:[%s0 + $0x10] sm:$0xff]
    %v79 = vld [vmem:[%s0 + $0x18] sm:$0xff]
    %v80 = vld [vmem:[%s0 + $0x20] sm:$0xff]
    %v81 = vld [vmem:[%s0 + $0x28] sm:$0xff]
    %v82 = vld [vmem:[%s0 + $0x30] sm:$0xff]
    %v83 = vld [vmem:[%s0 + $0x38] sm:$0xff]
    %v84 = vld [vmem:[#allocation2] sm:$0x3f]
    %v85 = vld [vmem:[#allocation2 + $0x8] sm:$0x3f]
    %v86 = vld [vmem:[#allocation2 + $0x10] sm:$0x3f]
    %v87 = vld [vmem:[#allocation2 + $0x18] sm:$0x3f]
    %v88 = vld [vmem:[%s2] sm:$0xf]
    %v90 = vperm.slane %v88, 0
    %v91 = vperm.slane %v88, 1
    %v92 = vperm.slane %v88, 2
    %v93 = vperm.slane %v88, 3
    %vm98 = vcmask 48128
    %v100 = vsel %vm98, %v76, 0
    %v103 = vsel %vm98, %v77, 0
    %v106 = vsel %vm98, %v78, 0
    %v109 = vsel %vm98, %v79, 0
    %v112 = vsel %vm98, %v80, 0
    %v115 = vsel %vm98, %v81, 0
    %v118 = vsel %vm98, %v82, 0
    %v121 = vsel %vm98, %v83, 0
    %vm123 = vcmask 1045504
    %v125 = vsel %vm123, %v84, 0
    %v128 = vsel %vm123, %v85, 0
    %v131 = vsel %vm123, %v86, 0
    %v134 = vsel %vm123, %v87, 0
    %136 = vmatpush.msra.mxu0 0.0
    %137 = vmatpush.msra.mxu0 0.0
    %138 = vmatpush.msra.mxu0 0.0
    %139 = vmatpush.msra.mxu0 0.0
    %140 = vmatpush.msra.mxu0 0.0
    %141 = vmatpush.msra.mxu0 0.0
    %142 = vmatpush.msra.mxu0 0.0
    %143 = vmatpush.msra.mxu0 0.0
    %144 = vmatpush.msra.mxu0 0.0
    %145 = vmatpush.msra.mxu0 0.0
    %146 = vmatpush.msra.mxu0 0.0
    %147 = vmatpush.msra.mxu0 0.0
    %148 = vmatpush.msra.mxu0 0.0
    %149 = vmatpush.msra.mxu0 0.0
    %150 = vmatpush.msra.mxu0 0.0
    %151 = vmatpush.msra.mxu0 %v125
    %152 = vmatmul.f32.gmra.mxu0 %v100
    %v153 = vpop.f32.mrf.mxu0
    %v154 = vadd.f32 %v90, %v153
    %155 = vmatmul.f32.gmra.mxu0 %v103
    %v156 = vpop.f32.mrf.mxu0
    %v157 = vadd.f32 %v90, %v156
    %158 = vmatmul.f32.gmra.mxu0 %v106
    %v159 = vpop.f32.mrf.mxu0
    %v160 = vadd.f32 %v90, %v159
    %161 = vmatmul.f32.gmra.mxu0 %v109
    %v162 = vpop.f32.mrf.mxu0
    %v163 = vadd.f32 %v90, %v162
    %164 = vmatmul.f32.gmra.mxu0 %v112
    %v165 = vpop.f32.mrf.mxu0
    %v166 = vadd.f32 %v90, %v165
    %167 = vmatmul.f32.gmra.mxu0 %v115
    %v168 = vpop.f32.mrf.mxu0
    %v169 = vadd.f32 %v90, %v168
    %170 = vmatmul.f32.gmra.mxu0 %v118
    %v171 = vpop.f32.mrf.mxu0
    %v172 = vadd.f32 %v90, %v171
    %173 = vmatmul.f32.gmra.mxu0 %v121
    %v174 = vpop.f32.mrf.mxu0
    %v175 = vadd.f32 %v90, %v174
    %176 = vdwg.mxu0
    %177 = vmatpush.msra.mxu0 0.0
    %178 = vmatpush.msra.mxu0 0.0
    %179 = vmatpush.msra.mxu0 0.0
    %180 = vmatpush.msra.mxu0 0.0
    %181 = vmatpush.msra.mxu0 0.0
    %182 = vmatpush.msra.mxu0 0.0
    %183 = vmatpush.msra.mxu0 0.0
    %184 = vmatpush.msra.mxu0 0.0
    %185 = vmatpush.msra.mxu0 0.0
    %186 = vmatpush.msra.mxu0 0.0
    %187 = vmatpush.msra.mxu0 0.0
    %188 = vmatpush.msra.mxu0 0.0
    %189 = vmatpush.msra.mxu0 0.0
    %190 = vmatpush.msra.mxu0 0.0
    %191 = vmatpush.msra.mxu0 0.0
    %192 = vmatpush.msra.mxu0 %v128
    %193 = vmatmul.f32.gmra.mxu0 %v100
    %v194 = vpop.f32.mrf.mxu0
    %v195 = vadd.f32 %v91, %v194
    %196 = vmatmul.f32.gmra.mxu0 %v103
    %v197 = vpop.f32.mrf.mxu0
    %v198 = vadd.f32 %v91, %v197
    %199 = vmatmul.f32.gmra.mxu0 %v106
    %v200 = vpop.f32.mrf.mxu0
    %v201 = vadd.f32 %v91, %v200
    %202 = vmatmul.f32.gmra.mxu0 %v109
    %v203 = vpop.f32.mrf.mxu0
    %v204 = vadd.f32 %v91, %v203
    %205 = vmatmul.f32.gmra.mxu0 %v112
    %v206 = vpop.f32.mrf.mxu0
    %v207 = vadd.f32 %v91, %v206
    %208 = vmatmul.f32.gmra.mxu0 %v115
    %v209 = vpop.f32.mrf.mxu0
    %v210 = vadd.f32 %v91, %v209
    %211 = vmatmul.f32.gmra.mxu0 %v118
    %v212 = vpop.f32.mrf.mxu0
    %v213 = vadd.f32 %v91, %v212
    %214 = vmatmul.f32.gmra.mxu0 %v121
    %v215 = vpop.f32.mrf.mxu0
    %v216 = vadd.f32 %v91, %v215
    %217 = vdwg.mxu0
    %218 = vmatpush.msra.mxu0 0.0
    %219 = vmatpush.msra.mxu0 0.0
    %220 = vmatpush.msra.mxu0 0.0
    %221 = vmatpush.msra.mxu0 0.0
    %222 = vmatpush.msra.mxu0 0.0
    %223 = vmatpush.msra.mxu0 0.0
    %224 = vmatpush.msra.mxu0 0.0
    %225 = vmatpush.msra.mxu0 0.0
    %226 = vmatpush.msra.mxu0 0.0
    %227 = vmatpush.msra.mxu0 0.0
    %228 = vmatpush.msra.mxu0 0.0
    %229 = vmatpush.msra.mxu0 0.0
    %230 = vmatpush.msra.mxu0 0.0
    %231 = vmatpush.msra.mxu0 0.0
    %232 = vmatpush.msra.mxu0 0.0
    %233 = vmatpush.msra.mxu0 %v131
    %234 = vmatmul.f32.gmra.mxu0 %v100
    %v235 = vpop.f32.mrf.mxu0
    %v236 = vadd.f32 %v92, %v235
    %237 = vmatmul.f32.gmra.mxu0 %v103
    %v238 = vpop.f32.mrf.mxu0
    %v239 = vadd.f32 %v92, %v238
    %240 = vmatmul.f32.gmra.mxu0 %v106
    %v241 = vpop.f32.mrf.mxu0
    %v242 = vadd.f32 %v92, %v241
    %243 = vmatmul.f32.gmra.mxu0 %v109
    %v244 = vpop.f32.mrf.mxu0
    %v245 = vadd.f32 %v92, %v244
    %246 = vmatmul.f32.gmra.mxu0 %v112
    %v247 = vpop.f32.mrf.mxu0
    %v248 = vadd.f32 %v92, %v247
    %249 = vmatmul.f32.gmra.mxu0 %v115
    %v250 = vpop.f32.mrf.mxu0
    %v251 = vadd.f32 %v92, %v250
    %252 = vmatmul.f32.gmra.mxu0 %v118
    %v253 = vpop.f32.mrf.mxu0
    %v254 = vadd.f32 %v92, %v253
    %255 = vmatmul.f32.gmra.mxu0 %v121
    %v256 = vpop.f32.mrf.mxu0
    %v257 = vadd.f32 %v92, %v256
    %258 = vdwg.mxu0
    %259 = vmatpush.msra.mxu0 0.0
    %260 = vmatpush.msra.mxu0 0.0
    %261 = vmatpush.msra.mxu0 0.0
    %262 = vmatpush.msra.mxu0 0.0
    %263 = vmatpush.msra.mxu0 0.0
    %264 = vmatpush.msra.mxu0 0.0
    %265 = vmatpush.msra.mxu0 0.0
    %266 = vmatpush.msra.mxu0 0.0
    %267 = vmatpush.msra.mxu0 0.0
    %268 = vmatpush.msra.mxu0 0.0
    %269 = vmatpush.msra.mxu0 0.0
    %270 = vmatpush.msra.mxu0 0.0
    %271 = vmatpush.msra.mxu0 0.0
    %272 = vmatpush.msra.mxu0 0.0
    %273 = vmatpush.msra.mxu0 0.0
    %274 = vmatpush.msra.mxu0 %v134
    %275 = vmatmul.f32.gmra.mxu0 %v100
    %v276 = vpop.f32.mrf.mxu0
    %v277 = vadd.f32 %v93, %v276
    %278 = vmatmul.f32.gmra.mxu0 %v103
    %v279 = vpop.f32.mrf.mxu0
    %v280 = vadd.f32 %v93, %v279
    %281 = vmatmul.f32.gmra.mxu0 %v106
    %v282 = vpop.f32.mrf.mxu0
    %v283 = vadd.f32 %v93, %v282
    %284 = vmatmul.f32.gmra.mxu0 %v109
    %v285 = vpop.f32.mrf.mxu0
    %v286 = vadd.f32 %v93, %v285
    %287 = vmatmul.f32.gmra.mxu0 %v112
    %v288 = vpop.f32.mrf.mxu0
    %v289 = vadd.f32 %v93, %v288
    %290 = vmatmul.f32.gmra.mxu0 %v115
    %v291 = vpop.f32.mrf.mxu0
    %v292 = vadd.f32 %v93, %v291
    %293 = vmatmul.f32.gmra.mxu0 %v118
    %v294 = vpop.f32.mrf.mxu0
    %v295 = vadd.f32 %v93, %v294
    %296 = vmatmul.f32.gmra.mxu0 %v121
    %v297 = vpop.f32.mrf.mxu0
    %v298 = vadd.f32 %v93, %v297
    %299 = vdwg.mxu0
    %v300 = vld [vmem:[#allocation5] sm:$0xff]
    %v301 = vld [vmem:[#allocation5 + $0x8] sm:$0xff]
    %v302 = vld [vmem:[#allocation5 + $0x10] sm:$0xff]
    %v303 = vld [vmem:[#allocation5 + $0x18] sm:$0xff]
    %v304 = vld [vmem:[#allocation5 + $0x20] sm:$0xff]
    %v305 = vld [vmem:[#allocation5 + $0x28] sm:$0xff]
    %v306 = vld [vmem:[#allocation5 + $0x30] sm:$0xff]
    %v307 = vld [vmem:[#allocation5 + $0x38] sm:$0xff]
    %v308 = vld [vmem:[#allocation5 + $0x40] sm:$0xff]
    %v309 = vld [vmem:[#allocation5 + $0x48] sm:$0xff]
    %v310 = vld [vmem:[#allocation5 + $0x50] sm:$0xff]
    %v311 = vld [vmem:[#allocation5 + $0x58] sm:$0xff]
    %v312 = vld [vmem:[#allocation5 + $0x60] sm:$0xff]
    %v313 = vld [vmem:[#allocation5 + $0x68] sm:$0xff]
    %v314 = vld [vmem:[#allocation5 + $0x70] sm:$0xff]
    %v315 = vld [vmem:[#allocation5 + $0x78] sm:$0xff]
    %v316 = vld [vmem:[#allocation5 + $0x80] sm:$0xff]
    %v317 = vld [vmem:[#allocation5 + $0x88] sm:$0xff]
    %v318 = vld [vmem:[#allocation5 + $0x90] sm:$0xff]
    %v319 = vld [vmem:[#allocation5 + $0x98] sm:$0xff]
    %v320 = vld [vmem:[#allocation5 + $0xa0] sm:$0xff]
    %v321 = vld [vmem:[#allocation5 + $0xa8] sm:$0xff]
    %v322 = vld [vmem:[#allocation5 + $0xb0] sm:$0xff]
    %v323 = vld [vmem:[#allocation5 + $0xb8] sm:$0xff]
    %v324 = vld [vmem:[#allocation5 + $0xc0] sm:$0xff]
    %v325 = vld [vmem:[#allocation5 + $0xc8] sm:$0xff]
    %v326 = vld [vmem:[#allocation5 + $0xd0] sm:$0xff]
    %v327 = vld [vmem:[#allocation5 + $0xd8] sm:$0xff]
    %v328 = vld [vmem:[#allocation5 + $0xe0] sm:$0xff]
    %v329 = vld [vmem:[#allocation5 + $0xe8] sm:$0xff]
    %v330 = vld [vmem:[#allocation5 + $0xf0] sm:$0xff]
    %v331 = vld [vmem:[#allocation5 + $0xf8] sm:$0xff]
    %v332 = vld [vmem:[#allocation7] sm:$0xff]
    %v333 = vld [vmem:[#allocation7 + $0x8] sm:$0xff]
    %v334 = vld [vmem:[#allocation7 + $0x10] sm:$0xff]
    %v335 = vld [vmem:[#allocation7 + $0x18] sm:$0xff]
    %v336 = vld [vmem:[#allocation7 + $0x20] sm:$0xff]
    %v337 = vld [vmem:[#allocation7 + $0x28] sm:$0xff]
    %v338 = vld [vmem:[#allocation7 + $0x30] sm:$0xff]
    %v339 = vld [vmem:[#allocation7 + $0x38] sm:$0xff]
    %v340 = vld [vmem:[#allocation7 + $0x40] sm:$0xff]
    %v341 = vld [vmem:[#allocation7 + $0x48] sm:$0xff]
    %v342 = vld [vmem:[#allocation7 + $0x50] sm:$0xff]
    %v343 = vld [vmem:[#allocation7 + $0x58] sm:$0xff]
    %v344 = vld [vmem:[#allocation7 + $0x60] sm:$0xff]
    %v345 = vld [vmem:[#allocation7 + $0x68] sm:$0xff]
    %v346 = vld [vmem:[#allocation7 + $0x70] sm:$0xff]
    %v347 = vld [vmem:[#allocation7 + $0x78] sm:$0xff]
    %v348 = vld [vmem:[#allocation7 + $0x80] sm:$0xff]
    %v349 = vld [vmem:[#allocation7 + $0x88] sm:$0xff]
    %v350 = vld [vmem:[#allocation7 + $0x90] sm:$0xff]
    %v351 = vld [vmem:[#allocation7 + $0x98] sm:$0xff]
    %v352 = vld [vmem:[#allocation7 + $0xa0] sm:$0xff]
    %v353 = vld [vmem:[#allocation7 + $0xa8] sm:$0xff]
    %v354 = vld [vmem:[#allocation7 + $0xb0] sm:$0xff]
    %v355 = vld [vmem:[#allocation7 + $0xb8] sm:$0xff]
    %v356 = vld [vmem:[#allocation7 + $0xc0] sm:$0xff]
    %v357 = vld [vmem:[#allocation7 + $0xc8] sm:$0xff]
    %v358 = vld [vmem:[#allocation7 + $0xd0] sm:$0xff]
    %v359 = vld [vmem:[#allocation7 + $0xd8] sm:$0xff]
    %v360 = vld [vmem:[#allocation7 + $0xe0] sm:$0xff]
    %v361 = vld [vmem:[#allocation7 + $0xe8] sm:$0xff]
    %v362 = vld [vmem:[#allocation7 + $0xf0] sm:$0xff]
    %v363 = vld [vmem:[#allocation7 + $0xf8] sm:$0xff]
    %v364 = vld [vmem:[#allocation7 + $0x100] sm:$0xff]
    %v365 = vld [vmem:[#allocation7 + $0x108] sm:$0xff]
    %v366 = vld [vmem:[#allocation7 + $0x110] sm:$0xff]
    %v367 = vld [vmem:[#allocation7 + $0x118] sm:$0xff]
    %v368 = vld [vmem:[#allocation7 + $0x120] sm:$0xff]
    %v369 = vld [vmem:[#allocation7 + $0x128] sm:$0xff]
    %v370 = vld [vmem:[#allocation7 + $0x130] sm:$0xff]
    %v371 = vld [vmem:[#allocation7 + $0x138] sm:$0xff]
    %v372 = vld [vmem:[#allocation7 + $0x140] sm:$0xff]
    %v373 = vld [vmem:[#allocation7 + $0x148] sm:$0xff]
    %v374 = vld [vmem:[#allocation7 + $0x150] sm:$0xff]
    %v375 = vld [vmem:[#allocation7 + $0x158] sm:$0xff]
    %v376 = vld [vmem:[#allocation7 + $0x160] sm:$0xff]
    %v377 = vld [vmem:[#allocation7 + $0x168] sm:$0xff]
    %v378 = vld [vmem:[#allocation7 + $0x170] sm:$0xff]
    %v379 = vld [vmem:[#allocation7 + $0x178] sm:$0xff]
    %v380 = vld [vmem:[#allocation7 + $0x180] sm:$0xff]
    %v381 = vld [vmem:[#allocation7 + $0x188] sm:$0xff]
    %v382 = vld [vmem:[#allocation7 + $0x190] sm:$0xff]
    %v383 = vld [vmem:[#allocation7 + $0x198] sm:$0xff]
    %v384 = vld [vmem:[#allocation7 + $0x1a0] sm:$0xff]
    %v385 = vld [vmem:[#allocation7 + $0x1a8] sm:$0xff]
    %v386 = vld [vmem:[#allocation7 + $0x1b0] sm:$0xff]
    %v387 = vld [vmem:[#allocation7 + $0x1b8] sm:$0xff]
    %v388 = vld [vmem:[#allocation7 + $0x1c0] sm:$0xff]
    %v389 = vld [vmem:[#allocation7 + $0x1c8] sm:$0xff]
    %v390 = vld [vmem:[#allocation7 + $0x1d0] sm:$0xff]
    %v391 = vld [vmem:[#allocation7 + $0x1d8] sm:$0xff]
    %v392 = vld [vmem:[#allocation7 + $0x1e0] sm:$0xff]
    %v393 = vld [vmem:[#allocation7 + $0x1e8] sm:$0xff]
    %v394 = vld [vmem:[#allocation7 + $0x1f0] sm:$0xff]
    %v395 = vld [vmem:[#allocation7 + $0x1f8] sm:$0xff]
    %v396 = vld [vmem:[%s5] sm:$0xf]
    %v398 = vperm.slane %v396, 0
    %v399 = vperm.slane %v396, 1
    %v400 = vperm.slane %v396, 2
    %v401 = vperm.slane %v396, 3
    %v438 = vunpack.c.l.b16 %v300
    %v439 = vunpack.c.h.b16 %v300
    %v440 = vunpack.c.l.b16 %v301
    %v441 = vunpack.c.h.b16 %v301
    %v442 = vunpack.c.l.b16 %v302
    %v443 = vunpack.c.h.b16 %v302
    %v444 = vunpack.c.l.b16 %v303
    %v445 = vunpack.c.h.b16 %v303
    %v446 = vunpack.c.l.b16 %v304
    %v447 = vunpack.c.h.b16 %v304
    %v448 = vunpack.c.l.b16 %v305
    %v449 = vunpack.c.h.b16 %v305
    %v450 = vunpack.c.l.b16 %v306
    %v451 = vunpack.c.h.b16 %v306
    %v452 = vunpack.c.l.b16 %v307
    %v453 = vunpack.c.h.b16 %v307
    %v454 = vunpack.c.l.b16 %v308
    %v455 = vunpack.c.h.b16 %v308
    %v456 = vunpack.c.l.b16 %v309
    %v457 = vunpack.c.h.b16 %v309
    %v458 = vunpack.c.l.b16 %v310
    %v459 = vunpack.c.h.b16 %v310
    %v460 = vunpack.c.l.b16 %v311
    %v461 = vunpack.c.h.b16 %v311
    %v462 = vunpack.c.l.b16 %v312
    %v463 = vunpack.c.h.b16 %v312
    %v464 = vunpack.c.l.b16 %v313
    %v465 = vunpack.c.h.b16 %v313
    %v466 = vunpack.c.l.b16 %v314
    %v467 = vunpack.c.h.b16 %v314
    %v468 = vunpack.c.l.b16 %v315
    %v469 = vunpack.c.h.b16 %v315
    %v470 = vunpack.c.l.b16 %v316
    %v471 = vunpack.c.h.b16 %v316
    %v472 = vunpack.c.l.b16 %v317
    %v473 = vunpack.c.h.b16 %v317
    %v474 = vunpack.c.l.b16 %v318
    %v475 = vunpack.c.h.b16 %v318
    %v476 = vunpack.c.l.b16 %v319
    %v477 = vunpack.c.h.b16 %v319
    %v478 = vunpack.c.l.b16 %v320
    %v479 = vunpack.c.h.b16 %v320
    %v480 = vunpack.c.l.b16 %v321
    %v481 = vunpack.c.h.b16 %v321
    %v482 = vunpack.c.l.b16 %v322
    %v483 = vunpack.c.h.b16 %v322
    %v484 = vunpack.c.l.b16 %v323
    %v485 = vunpack.c.h.b16 %v323
    %v486 = vunpack.c.l.b16 %v324
    %v487 = vunpack.c.h.b16 %v324
    %v488 = vunpack.c.l.b16 %v325
    %v489 = vunpack.c.h.b16 %v325
    %v490 = vunpack.c.l.b16 %v326
    %v491 = vunpack.c.h.b16 %v326
    %v492 = vunpack.c.l.b16 %v327
    %v493 = vunpack.c.h.b16 %v327
    %v494 = vunpack.c.l.b16 %v328
    %v495 = vunpack.c.h.b16 %v328
    %v496 = vunpack.c.l.b16 %v329
    %v497 = vunpack.c.h.b16 %v329
    %v498 = vunpack.c.l.b16 %v330
    %v499 = vunpack.c.h.b16 %v330
    %v500 = vunpack.c.l.b16 %v331
    %v501 = vunpack.c.h.b16 %v331
    %v502 = vpack.c.b16 %v442, %v438
    %v503 = vpack.c.b16 %v443, %v439
    %v504 = vpack.c.b16 %v444, %v440
    %v505 = vpack.c.b16 %v445, %v441
    %v506 = vpack.c.b16 %v450, %v446
    %v507 = vpack.c.b16 %v451, %v447
    %v508 = vpack.c.b16 %v452, %v448
    %v509 = vpack.c.b16 %v453, %v449
    %v510 = vpack.c.b16 %v458, %v454
    %v511 = vpack.c.b16 %v459, %v455
    %v512 = vpack.c.b16 %v460, %v456
    %v513 = vpack.c.b16 %v461, %v457
    %v514 = vpack.c.b16 %v466, %v462
    %v515 = vpack.c.b16 %v467, %v463
    %v516 = vpack.c.b16 %v468, %v464
    %v517 = vpack.c.b16 %v469, %v465
    %v518 = vpack.c.b16 %v474, %v470
    %v519 = vpack.c.b16 %v475, %v471
    %v520 = vpack.c.b16 %v476, %v472
    %v521 = vpack.c.b16 %v477, %v473
    %v522 = vpack.c.b16 %v482, %v478
    %v523 = vpack.c.b16 %v483, %v479
    %v524 = vpack.c.b16 %v484, %v480
    %v525 = vpack.c.b16 %v485, %v481
    %v526 = vpack.c.b16 %v490, %v486
    %v527 = vpack.c.b16 %v491, %v487
    %v528 = vpack.c.b16 %v492, %v488
    %v529 = vpack.c.b16 %v493, %v489
    %v530 = vpack.c.b16 %v498, %v494
    %v531 = vpack.c.b16 %v499, %v495
    %v532 = vpack.c.b16 %v500, %v496
    %v533 = vpack.c.b16 %v501, %v497
    %566 = vmatpush.bf16.msra.mxu0 %v530
    %567 = vmatpush.bf16.msra.mxu0 %v526
    %568 = vmatpush.bf16.msra.mxu0 %v522
    %569 = vmatpush.bf16.msra.mxu0 %v518
    %570 = vmatpush.bf16.msra.mxu0 %v514
    %571 = vmatpush.bf16.msra.mxu0 %v510
    %572 = vmatpush.bf16.msra.mxu0 %v506
    %573 = vmatpush.bf16.msra.mxu0 %v502
    %574 = vmatmul.bf16.gmra.mxu0 0
    %v575 = vpop.f32.mrf.mxu0
    %v576 = vadd.f32 0.0, %v575
    %v577 = vpop.f32.mrf.mxu0
    %578 = vdwg.mxu0
    %579 = vmatpush.bf16.msra.mxu0 %v531
    %580 = vmatpush.bf16.msra.mxu0 %v527
    %581 = vmatpush.bf16.msra.mxu0 %v523
    %582 = vmatpush.bf16.msra.mxu0 %v519
    %583 = vmatpush.bf16.msra.mxu0 %v515
    %584 = vmatpush.bf16.msra.mxu0 %v511
    %585 = vmatpush.bf16.msra.mxu0 %v507
    %586 = vmatpush.bf16.msra.mxu0 %v503
    %587 = vmatmul.bf16.gmra.mxu0 0
    %v588 = vpop.f32.mrf.mxu0
    %v589 = vadd.f32 0.0, %v588
    %v590 = vpop.f32.mrf.mxu0
    %591 = vdwg.mxu0
    %592 = vmatpush.bf16.msra.mxu0 %v532
    %593 = vmatpush.bf16.msra.mxu0 %v528
    %594 = vmatpush.bf16.msra.mxu0 %v524
    %595 = vmatpush.bf16.msra.mxu0 %v520
    %596 = vmatpush.bf16.msra.mxu0 %v516
    %597 = vmatpush.bf16.msra.mxu0 %v512
    %598 = vmatpush.bf16.msra.mxu0 %v508
    %599 = vmatpush.bf16.msra.mxu0 %v504
    %600 = vmatmul.bf16.gmra.mxu0 0
    %v601 = vpop.f32.mrf.mxu0
    %v602 = vadd.f32 0.0, %v601
    %v603 = vpop.f32.mrf.mxu0
    %604 = vdwg.mxu0
    %605 = vmatpush.bf16.msra.mxu0 %v533
    %606 = vmatpush.bf16.msra.mxu0 %v529
    %607 = vmatpush.bf16.msra.mxu0 %v525
    %608 = vmatpush.bf16.msra.mxu0 %v521
    %609 = vmatpush.bf16.msra.mxu0 %v517
    %610 = vmatpush.bf16.msra.mxu0 %v513
    %611 = vmatpush.bf16.msra.mxu0 %v509
    %612 = vmatpush.bf16.msra.mxu0 %v505
    %613 = vmatmul.bf16.gmra.mxu0 0
    %v614 = vpop.f32.mrf.mxu0
    %v615 = vadd.f32 0.0, %v614
    %v616 = vpop.f32.mrf.mxu0
    %617 = vdwg.mxu0
    %v618 = vadd.f32 %v154, %v576
    %v619 = vadd.f32 %v195, %v589
    %v620 = vadd.f32 %v236, %v602
    %v621 = vadd.f32 %v277, %v615
    %v622 = vxor.u32 %v618, 2147483648
    %v623 = vmul.f32 %v622, 1.442695
    %v624 = vpow.pop %v623
    %v625 = vadd.f32 %v624, 1.0
    %v626 = vrcp.pop %v625
    %v627 = vmul.f32 %v625, %v626
    %v628 = vsub.f32 1.0, %v627
    %v629 = vmul.f32 %v626, %v628
    %v630 = vadd.f32 %v626, %v629
    %vm631 = vweird.f32 %v625
    %vm632 = vweird.f32 %v626
    %vm633 = vmor %vm631, %vm632
    %v634 = vsel %vm633, %v626, %v630
    %v635 = vand.u32 2147483647, %v625
    %vm636 = vcmp.eq.f32.partialorder %v635, 8.507059e+37
    %v637 = vand.u32 %v625, 2147483648
    %v638 = vor.u32 1.1754944e-38, %v637
    %v639 = vsel %vm636, %v638, %v634
    %v640 = vmul.f32 1.0, %v639
    %v641 = vxor.u32 %v619, 2147483648
    %v642 = vmul.f32 %v641, 1.442695
    %v643 = vpow.pop %v642
    %v644 = vadd.f32 %v643, 1.0
    %v645 = vrcp.pop %v644
    %v646 = vmul.f32 %v644, %v645
    %v647 = vsub.f32 1.0, %v646
    %v648 = vmul.f32 %v645, %v647
    %v649 = vadd.f32 %v645, %v648
    %vm650 = vweird.f32 %v644
    %vm651 = vweird.f32 %v645
    %vm652 = vmor %vm650, %vm651
    %v653 = vsel %vm652, %v645, %v649
    %v654 = vand.u32 2147483647, %v644
    %vm655 = vcmp.eq.f32.partialorder %v654, 8.507059e+37
    %v656 = vand.u32 %v644, 2147483648
    %v657 = vor.u32 1.1754944e-38, %v656
    %v658 = vsel %vm655, %v657, %v653
    %v659 = vmul.f32 1.0, %v658
    %v660 = vtanh.pop %v620
    %v661 = vxor.u32 %v621, 2147483648
    %v662 = vmul.f32 %v661, 1.442695
    %v663 = vpow.pop %v662
    %v664 = vadd.f32 %v663, 1.0
    %v665 = vrcp.pop %v664
    %v666 = vmul.f32 %v664, %v665
    %v667 = vsub.f32 1.0, %v666
    %v668 = vmul.f32 %v665, %v667
    %v669 = vadd.f32 %v665, %v668
    %vm670 = vweird.f32 %v664
    %vm671 = vweird.f32 %v665
    %vm672 = vmor %vm670, %vm671
    %v673 = vsel %vm672, %v665, %v669
    %v674 = vand.u32 2147483647, %v664
    %vm675 = vcmp.eq.f32.partialorder %v674, 8.507059e+37
    %v676 = vand.u32 %v664, 2147483648
    %v677 = vor.u32 1.1754944e-38, %v676
    %v678 = vsel %vm675, %v677, %v673
    %v679 = vmul.f32 1.0, %v678
    %v680 = vmul.f32 %v659, 0.0
    %v681 = vmul.f32 %v640, %v660
    %v682 = vadd.f32 %v680, %v681
    %v683 = vtanh.pop %v682
    %v684 = vmul.f32 %v679, %v683
    %v685 = vpack.c.bf16 %v684, %v684
    %v750 = vunpack.c.l.b16 %v332
    %v751 = vunpack.c.h.b16 %v332
    %v752 = vunpack.c.l.b16 %v333
    %v753 = vunpack.c.h.b16 %v333
    %v754 = vunpack.c.l.b16 %v334
    %v755 = vunpack.c.h.b16 %v334
    %v756 = vunpack.c.l.b16 %v335
    %v757 = vunpack.c.h.b16 %v335
    %v758 = vunpack.c.l.b16 %v336
    %v759 = vunpack.c.h.b16 %v336
    %v760 = vunpack.c.l.b16 %v337
    %v761 = vunpack.c.h.b16 %v337
    %v762 = vunpack.c.l.b16 %v338
    %v763 = vunpack.c.h.b16 %v338
    %v764 = vunpack.c.l.b16 %v339
    %v765 = vunpack.c.h.b16 %v339
    %v766 = vunpack.c.l.b16 %v340
    %v767 = vunpack.c.h.b16 %v340
    %v768 = vunpack.c.l.b16 %v341
    %v769 = vunpack.c.h.b16 %v341
    %v770 = vunpack.c.l.b16 %v342
    %v771 = vunpack.c.h.b16 %v342
    %v772 = vunpack.c.l.b16 %v343
    %v773 = vunpack.c.h.b16 %v343
    %v774 = vunpack.c.l.b16 %v344
    %v775 = vunpack.c.h.b16 %v344
    %v776 = vunpack.c.l.b16 %v345
    %v777 = vunpack.c.h.b16 %v345
    %v778 = vunpack.c.l.b16 %v346
    %v779 = vunpack.c.h.b16 %v346
    %v780 = vunpack.c.l.b16 %v347
    %v781 = vunpack.c.h.b16 %v347
    %v782 = vunpack.c.l.b16 %v348
    %v783 = vunpack.c.h.b16 %v348
    %v784 = vunpack.c.l.b16 %v349
    %v785 = vunpack.c.h.b16 %v349
    %v786 = vunpack.c.l.b16 %v350
    %v787 = vunpack.c.h.b16 %v350
    %v788 = vunpack.c.l.b16 %v351
    %v789 = vunpack.c.h.b16 %v351
    %v790 = vunpack.c.l.b16 %v352
    %v791 = vunpack.c.h.b16 %v352
    %v792 = vunpack.c.l.b16 %v353
    %v793 = vunpack.c.h.b16 %v353
    %v794 = vunpack.c.l.b16 %v354
    %v795 = vunpack.c.h.b16 %v354
    %v796 = vunpack.c.l.b16 %v355
    %v797 = vunpack.c.h.b16 %v355
    %v798 = vunpack.c.l.b16 %v356
    %v799 = vunpack.c.h.b16 %v356
    %v800 = vunpack.c.l.b16 %v357
    %v801 = vunpack.c.h.b16 %v357
    %v802 = vunpack.c.l.b16 %v358
    %v803 = vunpack.c.h.b16 %v358
    %v804 = vunpack.c.l.b16 %v359
    %v805 = vunpack.c.h.b16 %v359
    %v806 = vunpack.c.l.b16 %v360
    %v807 = vunpack.c.h.b16 %v360
    %v808 = vunpack.c.l.b16 %v361
    %v809 = vunpack.c.h.b16 %v361
    %v810 = vunpack.c.l.b16 %v362
    %v811 = vunpack.c.h.b16 %v362
    %v812 = vunpack.c.l.b16 %v363
    %v813 = vunpack.c.h.b16 %v363
    %v814 = vunpack.c.l.b16 %v364
    %v815 = vunpack.c.h.b16 %v364
    %v816 = vunpack.c.l.b16 %v365
    %v817 = vunpack.c.h.b16 %v365
    %v818 = vunpack.c.l.b16 %v366
    %v819 = vunpack.c.h.b16 %v366
    %v820 = vunpack.c.l.b16 %v367
    %v821 = vunpack.c.h.b16 %v367
    %v822 = vunpack.c.l.b16 %v368
    %v823 = vunpack.c.h.b16 %v368
    %v824 = vunpack.c.l.b16 %v369
    %v825 = vunpack.c.h.b16 %v369
    %v826 = vunpack.c.l.b16 %v370
    %v827 = vunpack.c.h.b16 %v370
    %v828 = vunpack.c.l.b16 %v371
    %v829 = vunpack.c.h.b16 %v371
    %v830 = vunpack.c.l.b16 %v372
    %v831 = vunpack.c.h.b16 %v372
    %v832 = vunpack.c.l.b16 %v373
    %v833 = vunpack.c.h.b16 %v373
    %v834 = vunpack.c.l.b16 %v374
    %v835 = vunpack.c.h.b16 %v374
    %v836 = vunpack.c.l.b16 %v375
    %v837 = vunpack.c.h.b16 %v375
    %v838 = vunpack.c.l.b16 %v376
    %v839 = vunpack.c.h.b16 %v376
    %v840 = vunpack.c.l.b16 %v377
    %v841 = vunpack.c.h.b16 %v377
    %v842 = vunpack.c.l.b16 %v378
    %v843 = vunpack.c.h.b16 %v378
    %v844 = vunpack.c.l.b16 %v379
    %v845 = vunpack.c.h.b16 %v379
    %v846 = vunpack.c.l.b16 %v380
    %v847 = vunpack.c.h.b16 %v380
    %v848 = vunpack.c.l.b16 %v381
    %v849 = vunpack.c.h.b16 %v381
    %v850 = vunpack.c.l.b16 %v382
    %v851 = vunpack.c.h.b16 %v382
    %v852 = vunpack.c.l.b16 %v383
    %v853 = vunpack.c.h.b16 %v383
    %v854 = vunpack.c.l.b16 %v384
    %v855 = vunpack.c.h.b16 %v384
    %v856 = vunpack.c.l.b16 %v385
    %v857 = vunpack.c.h.b16 %v385
    %v858 = vunpack.c.l.b16 %v386
    %v859 = vunpack.c.h.b16 %v386
    %v860 = vunpack.c.l.b16 %v387
    %v861 = vunpack.c.h.b16 %v387
    %v862 = vunpack.c.l.b16 %v388
    %v863 = vunpack.c.h.b16 %v388
    %v864 = vunpack.c.l.b16 %v389
    %v865 = vunpack.c.h.b16 %v389
    %v866 = vunpack.c.l.b16 %v390
    %v867 = vunpack.c.h.b16 %v390
    %v868 = vunpack.c.l.b16 %v391
    %v869 = vunpack.c.h.b16 %v391
    %v870 = vunpack.c.l.b16 %v392
    %v871 = vunpack.c.h.b16 %v392
    %v872 = vunpack.c.l.b16 %v393
    %v873 = vunpack.c.h.b16 %v393
    %v874 = vunpack.c.l.b16 %v394
    %v875 = vunpack.c.h.b16 %v394
    %v876 = vunpack.c.l.b16 %v395
    %v877 = vunpack.c.h.b16 %v395
    %v878 = vpack.c.b16 %v754, %v750
    %v879 = vpack.c.b16 %v755, %v751
    %v880 = vpack.c.b16 %v756, %v752
    %v881 = vpack.c.b16 %v757, %v753
    %v882 = vpack.c.b16 %v762, %v758
    %v883 = vpack.c.b16 %v763, %v759
    %v884 = vpack.c.b16 %v764, %v760
    %v885 = vpack.c.b16 %v765, %v761
    %v886 = vpack.c.b16 %v770, %v766
    %v887 = vpack.c.b16 %v771, %v767
    %v888 = vpack.c.b16 %v772, %v768
    %v889 = vpack.c.b16 %v773, %v769
    %v890 = vpack.c.b16 %v778, %v774
    %v891 = vpack.c.b16 %v779, %v775
    %v892 = vpack.c.b16 %v780, %v776
    %v893 = vpack.c.b16 %v781, %v777
    %v894 = vpack.c.b16 %v786, %v782
    %v895 = vpack.c.b16 %v787, %v783
    %v896 = vpack.c.b16 %v788, %v784
    %v897 = vpack.c.b16 %v789, %v785
    %v898 = vpack.c.b16 %v794, %v790
    %v899 = vpack.c.b16 %v795, %v791
    %v900 = vpack.c.b16 %v796, %v792
    %v901 = vpack.c.b16 %v797, %v793
    %v902 = vpack.c.b16 %v802, %v798
    %v903 = vpack.c.b16 %v803, %v799
    %v904 = vpack.c.b16 %v804, %v800
    %v905 = vpack.c.b16 %v805, %v801
    %v906 = vpack.c.b16 %v810, %v806
    %v907 = vpack.c.b16 %v811, %v807
    %v908 = vpack.c.b16 %v812, %v808
    %v909 = vpack.c.b16 %v813, %v809
    %v910 = vpack.c.b16 %v818, %v814
    %v911 = vpack.c.b16 %v819, %v815
    %v912 = vpack.c.b16 %v820, %v816
    %v913 = vpack.c.b16 %v821, %v817
    %v914 = vpack.c.b16 %v826, %v822
    %v915 = vpack.c.b16 %v827, %v823
    %v916 = vpack.c.b16 %v828, %v824
    %v917 = vpack.c.b16 %v829, %v825
    %v918 = vpack.c.b16 %v834, %v830
    %v919 = vpack.c.b16 %v835, %v831
    %v920 = vpack.c.b16 %v836, %v832
    %v921 = vpack.c.b16 %v837, %v833
    %v922 = vpack.c.b16 %v842, %v838
    %v923 = vpack.c.b16 %v843, %v839
    %v924 = vpack.c.b16 %v844, %v840
    %v925 = vpack.c.b16 %v845, %v841
    %v926 = vpack.c.b16 %v850, %v846
    %v927 = vpack.c.b16 %v851, %v847
    %v928 = vpack.c.b16 %v852, %v848
    %v929 = vpack.c.b16 %v853, %v849
    %v930 = vpack.c.b16 %v858, %v854
    %v931 = vpack.c.b16 %v859, %v855
    %v932 = vpack.c.b16 %v860, %v856
    %v933 = vpack.c.b16 %v861, %v857
    %v934 = vpack.c.b16 %v866, %v862
    %v935 = vpack.c.b16 %v867, %v863
    %v936 = vpack.c.b16 %v868, %v864
    %v937 = vpack.c.b16 %v869, %v865
    %v938 = vpack.c.b16 %v874, %v870
    %v939 = vpack.c.b16 %v875, %v871
    %v940 = vpack.c.b16 %v876, %v872
    %v941 = vpack.c.b16 %v877, %v873
    %1006 = vmatpush.bf16.msra.mxu0 %v906
    %1007 = vmatpush.bf16.msra.mxu0 %v902
    %1008 = vmatpush.bf16.msra.mxu0 %v898
    %1009 = vmatpush.bf16.msra.mxu0 %v894
    %1010 = vmatpush.bf16.msra.mxu0 %v890
    %1011 = vmatpush.bf16.msra.mxu0 %v886
    %1012 = vmatpush.bf16.msra.mxu0 %v882
    %1013 = vmatpush.bf16.msra.mxu0 %v878
    %1014 = vmatmul.bf16.gmra.mxu0 %v685
    %v1015 = vpop.f32.mrf.mxu0
    %v1016 = vadd.f32 %v398, %v1015
    %v1017 = vpop.f32.mrf.mxu0
    %1018 = vdwg.mxu0
    %1019 = vmatpush.bf16.msra.mxu0 %v938
    %1020 = vmatpush.bf16.msra.mxu0 %v934
    %1021 = vmatpush.bf16.msra.mxu0 %v930
    %1022 = vmatpush.bf16.msra.mxu0 %v926
    %1023 = vmatpush.bf16.msra.mxu0 %v922
    %1024 = vmatpush.bf16.msra.mxu0 %v918
    %1025 = vmatpush.bf16.msra.mxu0 %v914
    %1026 = vmatpush.bf16.msra.mxu0 %v910
    %1027 = vmatmul.bf16.gmra.mxu0 0
    %v1028 = vpop.f32.mrf.mxu0
    %v1029 = vadd.f32 %v1016, %v1028
    %v1030 = vpop.f32.mrf.mxu0
    %1031 = vdwg.mxu0
    %1032 = vmatpush.bf16.msra.mxu0 %v907
    %1033 = vmatpush.bf16.msra.mxu0 %v903
    %1034 = vmatpush.bf16.msra.mxu0 %v899
    %1035 = vmatpush.bf16.msra.mxu0 %v895
    %1036 = vmatpush.bf16.msra.mxu0 %v891
    %1037 = vmatpush.bf16.msra.mxu0 %v887
    %1038 = vmatpush.bf16.msra.mxu0 %v883
    %1039 = vmatpush.bf16.msra.mxu0 %v879
    %1040 = vmatmul.bf16.gmra.mxu0 %v685
    %v1041 = vpop.f32.mrf.mxu0
    %v1042 = vadd.f32 %v399, %v1041
    %v1043 = vpop.f32.mrf.mxu0
    %1044 = vdwg.mxu0
    %1045 = vmatpush.bf16.msra.mxu0 %v939
    %1046 = vmatpush.bf16.msra.mxu0 %v935
    %1047 = vmatpush.bf16.msra.mxu0 %v931
    %1048 = vmatpush.bf16.msra.mxu0 %v927
    %1049 = vmatpush.bf16.msra.mxu0 %v923
    %1050 = vmatpush.bf16.msra.mxu0 %v919
    %1051 = vmatpush.bf16.msra.mxu0 %v915
    %1052 = vmatpush.bf16.msra.mxu0 %v911
    %1053 = vmatmul.bf16.gmra.mxu0 0
    %v1054 = vpop.f32.mrf.mxu0
    %v1055 = vadd.f32 %v1042, %v1054
    %v1056 = vpop.f32.mrf.mxu0
    %1057 = vdwg.mxu0
    %1058 = vmatpush.bf16.msra.mxu0 %v908
    %1059 = vmatpush.bf16.msra.mxu0 %v904
    %1060 = vmatpush.bf16.msra.mxu0 %v900
    %1061 = vmatpush.bf16.msra.mxu0 %v896
    %1062 = vmatpush.bf16.msra.mxu0 %v892
    %1063 = vmatpush.bf16.msra.mxu0 %v888
    %1064 = vmatpush.bf16.msra.mxu0 %v884
    %1065 = vmatpush.bf16.msra.mxu0 %v880
    %1066 = vmatmul.bf16.gmra.mxu0 %v685
    %v1067 = vpop.f32.mrf.mxu0
    %v1068 = vadd.f32 %v400, %v1067
    %v1069 = vpop.f32.mrf.mxu0
    %1070 = vdwg.mxu0
    %1071 = vmatpush.bf16.msra.mxu0 %v940
    %1072 = vmatpush.bf16.msra.mxu0 %v936
    %1073 = vmatpush.bf16.msra.mxu0 %v932
    %1074 = vmatpush.bf16.msra.mxu0 %v928
    %1075 = vmatpush.bf16.msra.mxu0 %v924
    %1076 = vmatpush.bf16.msra.mxu0 %v920
    %1077 = vmatpush.bf16.msra.mxu0 %v916
    %1078 = vmatpush.bf16.msra.mxu0 %v912
    %1079 = vmatmul.bf16.gmra.mxu0 0
    %v1080 = vpop.f32.mrf.mxu0
    %v1081 = vadd.f32 %v1068, %v1080
    %v1082 = vpop.f32.mrf.mxu0
    %1083 = vdwg.mxu0
    %1084 = vmatpush.bf16.msra.mxu0 %v909
    %1085 = vmatpush.bf16.msra.mxu0 %v905
    %1086 = vmatpush.bf16.msra.mxu0 %v901
    %1087 = vmatpush.bf16.msra.mxu0 %v897
    %1088 = vmatpush.bf16.msra.mxu0 %v893
    %1089 = vmatpush.bf16.msra.mxu0 %v889
    %1090 = vmatpush.bf16.msra.mxu0 %v885
    %1091 = vmatpush.bf16.msra.mxu0 %v881
    %1092 = vmatmul.bf16.gmra.mxu0 %v685
    %v1093 = vpop.f32.mrf.mxu0
    %v1094 = vadd.f32 %v401, %v1093
    %v1095 = vpop.f32.mrf.mxu0
    %1096 = vdwg.mxu0
    %1097 = vmatpush.bf16.msra.mxu0 %v941
    %1098 = vmatpush.bf16.msra.mxu0 %v937
    %1099 = vmatpush.bf16.msra.mxu0 %v933
    %1100 = vmatpush.bf16.msra.mxu0 %v929
    %1101 = vmatpush.bf16.msra.mxu0 %v925
    %1102 = vmatpush.bf16.msra.mxu0 %v921
    %1103 = vmatpush.bf16.msra.mxu0 %v917
    %1104 = vmatpush.bf16.msra.mxu0 %v913
    %1105 = vmatmul.bf16.gmra.mxu0 0
    %v1106 = vpop.f32.mrf.mxu0
    %v1107 = vadd.f32 %v1094, %v1106
    %v1108 = vpop.f32.mrf.mxu0
    %1109 = vdwg.mxu0
    %v1110 = vxor.u32 %v1029, 2147483648
    %v1111 = vmul.f32 %v1110, 1.442695
    %v1112 = vpow.pop %v1111
    %v1113 = vadd.f32 %v1112, 1.0
    %v1114 = vrcp.pop %v1113
    %v1115 = vmul.f32 %v1113, %v1114
    %v1116 = vsub.f32 1.0, %v1115
    %v1117 = vmul.f32 %v1114, %v1116
    %v1118 = vadd.f32 %v1114, %v1117
    %vm1119 = vweird.f32 %v1113
    %vm1120 = vweird.f32 %v1114
    %vm1121 = vmor %vm1119, %vm1120
    %v1122 = vsel %vm1121, %v1114, %v1118
    %v1123 = vand.u32 2147483647, %v1113
    %vm1124 = vcmp.eq.f32.partialorder %v1123, 8.507059e+37
    %v1125 = vand.u32 %v1113, 2147483648
    %v1126 = vor.u32 1.1754944e-38, %v1125
    %v1127 = vsel %vm1124, %v1126, %v1122
    %v1128 = vmul.f32 1.0, %v1127
    %v1129 = vxor.u32 %v1055, 2147483648
    %v1130 = vmul.f32 %v1129, 1.442695
    %v1131 = vpow.pop %v1130
    %v1132 = vadd.f32 %v1131, 1.0
    %v1133 = vrcp.pop %v1132
    %v1134 = vmul.f32 %v1132, %v1133
    %v1135 = vsub.f32 1.0, %v1134
    %v1136 = vmul.f32 %v1133, %v1135
    %v1137 = vadd.f32 %v1133, %v1136
    %vm1138 = vweird.f32 %v1132
    %vm1139 = vweird.f32 %v1133
    %vm1140 = vmor %vm1138, %vm1139
    %v1141 = vsel %vm1140, %v1133, %v1137
    %v1142 = vand.u32 2147483647, %v1132
    %vm1143 = vcmp.eq.f32.partialorder %v1142, 8.507059e+37
    %v1144 = vand.u32 %v1132, 2147483648
    %v1145 = vor.u32 1.1754944e-38, %v1144
    %v1146 = vsel %vm1143, %v1145, %v1141
    %v1147 = vmul.f32 1.0, %v1146
    %v1148 = vtanh.pop %v1081
    %v1149 = vxor.u32 %v1107, 2147483648
    %v1150 = vmul.f32 %v1149, 1.442695
    %v1151 = vpow.pop %v1150
    %v1152 = vadd.f32 %v1151, 1.0
    %v1153 = vrcp.pop %v1152
    %v1154 = vmul.f32 %v1152, %v1153
    %v1155 = vsub.f32 1.0, %v1154
    %v1156 = vmul.f32 %v1153, %v1155
    %v1157 = vadd.f32 %v1153, %v1156
    %vm1158 = vweird.f32 %v1152
    %vm1159 = vweird.f32 %v1153
    %vm1160 = vmor %vm1158, %vm1159
    %v1161 = vsel %vm1160, %v1153, %v1157
    %v1162 = vand.u32 2147483647, %v1152
    %vm1163 = vcmp.eq.f32.partialorder %v1162, 8.507059e+37
    %v1164 = vand.u32 %v1152, 2147483648
    %v1165 = vor.u32 1.1754944e-38, %v1164
    %v1166 = vsel %vm1163, %v1165, %v1161
    %v1167 = vmul.f32 1.0, %v1166
    %v1168 = vmul.f32 %v1147, 0.0
    %v1169 = vmul.f32 %v1128, %v1148
    %v1170 = vadd.f32 %v1168, %v1169
    %v1171 = vtanh.pop %v1170
    %v1172 = vmul.f32 %v1167, %v1171
    %v1173 = vpack.c.bf16 %v1172, %v1172
    %1174 = vmatpush.bf16.msra.mxu0 %v530
    %1175 = vmatpush.bf16.msra.mxu0 %v526
    %1176 = vmatpush.bf16.msra.mxu0 %v522
    %1177 = vmatpush.bf16.msra.mxu0 %v518
    %1178 = vmatpush.bf16.msra.mxu0 %v514
    %1179 = vmatpush.bf16.msra.mxu0 %v510
    %1180 = vmatpush.bf16.msra.mxu0 %v506
    %1181 = vmatpush.bf16.msra.mxu0 %v502
    %1182 = vmatmul.bf16.gmra.mxu0 %v685
    %v1183 = vpop.f32.mrf.mxu0
    %v1184 = vadd.f32 0.0, %v1183
    %v1185 = vpop.f32.mrf.mxu0
    %1186 = vdwg.mxu0
    %1187 = vmatpush.bf16.msra.mxu0 %v531
    %1188 = vmatpush.bf16.msra.mxu0 %v527
    %1189 = vmatpush.bf16.msra.mxu0 %v523
    %1190 = vmatpush.bf16.msra.mxu0 %v519
    %1191 = vmatpush.bf16.msra.mxu0 %v515
    %1192 = vmatpush.bf16.msra.mxu0 %v511
    %1193 = vmatpush.bf16.msra.mxu0 %v507
    %1194 = vmatpush.bf16.msra.mxu0 %v503
    %1195 = vmatmul.bf16.gmra.mxu0 %v685
    %v1196 = vpop.f32.mrf.mxu0
    %v1197 = vadd.f32 0.0, %v1196
    %v1198 = vpop.f32.mrf.mxu0
    %1199 = vdwg.mxu0
    %1200 = vmatpush.bf16.msra.mxu0 %v532
    %1201 = vmatpush.bf16.msra.mxu0 %v528
    %1202 = vmatpush.bf16.msra.mxu0 %v524
    %1203 = vmatpush.bf16.msra.mxu0 %v520
    %1204 = vmatpush.bf16.msra.mxu0 %v516
    %1205 = vmatpush.bf16.msra.mxu0 %v512
    %1206 = vmatpush.bf16.msra.mxu0 %v508
    %1207 = vmatpush.bf16.msra.mxu0 %v504
    %1208 = vmatmul.bf16.gmra.mxu0 %v685
    %v1209 = vpop.f32.mrf.mxu0
    %v1210 = vadd.f32 0.0, %v1209
    %v1211 = vpop.f32.mrf.mxu0
    %1212 = vdwg.mxu0
    %1213 = vmatpush.bf16.msra.mxu0 %v533
    %1214 = vmatpush.bf16.msra.mxu0 %v529
    %1215 = vmatpush.bf16.msra.mxu0 %v525
    %1216 = vmatpush.bf16.msra.mxu0 %v521
    %1217 = vmatpush.bf16.msra.mxu0 %v517
    %1218 = vmatpush.bf16.msra.mxu0 %v513
    %1219 = vmatpush.bf16.msra.mxu0 %v509
    %1220 = vmatpush.bf16.msra.mxu0 %v505
    %1221 = vmatmul.bf16.gmra.mxu0 %v685
    %v1222 = vpop.f32.mrf.mxu0
    %v1223 = vadd.f32 0.0, %v1222
    %v1224 = vpop.f32.mrf.mxu0
    %1225 = vdwg.mxu0
    %v1226 = vadd.f32 %v157, %v1184
    %v1227 = vadd.f32 %v198, %v1197
    %v1228 = vadd.f32 %v239, %v1210
    %v1229 = vadd.f32 %v280, %v1223
    %v1230 = vxor.u32 %v1226, 2147483648
    %v1231 = vmul.f32 %v1230, 1.442695
    %v1232 = vpow.pop %v1231
    %v1233 = vadd.f32 %v1232, 1.0
    %v1234 = vrcp.pop %v1233
    %v1235 = vmul.f32 %v1233, %v1234
    %v1236 = vsub.f32 1.0, %v1235
    %v1237 = vmul.f32 %v1234, %v1236
    %v1238 = vadd.f32 %v1234, %v1237
    %vm1239 = vweird.f32 %v1233
    %vm1240 = vweird.f32 %v1234
    %vm1241 = vmor %vm1239, %vm1240
    %v1242 = vsel %vm1241, %v1234, %v1238
    %v1243 = vand.u32 2147483647, %v1233
    %vm1244 = vcmp.eq.f32.partialorder %v1243, 8.507059e+37
    %v1245 = vand.u32 %v1233, 2147483648
    %v1246 = vor.u32 1.1754944e-38, %v1245
    %v1247 = vsel %vm1244, %v1246, %v1242
    %v1248 = vmul.f32 1.0, %v1247
    %v1249 = vxor.u32 %v1227, 2147483648
    %v1250 = vmul.f32 %v1249, 1.442695
    %v1251 = vpow.pop %v1250
    %v1252 = vadd.f32 %v1251, 1.0
    %v1253 = vrcp.pop %v1252
    %v1254 = vmul.f32 %v1252, %v1253
    %v1255 = vsub.f32 1.0, %v1254
    %v1256 = vmul.f32 %v1253, %v1255
    %v1257 = vadd.f32 %v1253, %v1256
    %vm1258 = vweird.f32 %v1252
    %vm1259 = vweird.f32 %v1253
    %vm1260 = vmor %vm1258, %vm1259
    %v1261 = vsel %vm1260, %v1253, %v1257
    %v1262 = vand.u32 2147483647, %v1252
    %vm1263 = vcmp.eq.f32.partialorder %v1262, 8.507059e+37
    %v1264 = vand.u32 %v1252, 2147483648
    %v1265 = vor.u32 1.1754944e-38, %v1264
    %v1266 = vsel %vm1263, %v1265, %v1261
    %v1267 = vmul.f32 1.0, %v1266
    %v1268 = vtanh.pop %v1228
    %v1269 = vxor.u32 %v1229, 2147483648
    %v1270 = vmul.f32 %v1269, 1.442695
    %v1271 = vpow.pop %v1270
    %v1272 = vadd.f32 %v1271, 1.0
    %v1273 = vrcp.pop %v1272
    %v1274 = vmul.f32 %v1272, %v1273
    %v1275 = vsub.f32 1.0, %v1274
    %v1276 = vmul.f32 %v1273, %v1275
    %v1277 = vadd.f32 %v1273, %v1276
    %vm1278 = vweird.f32 %v1272
    %vm1279 = vweird.f32 %v1273
    %vm1280 = vmor %vm1278, %vm1279
    %v1281 = vsel %vm1280, %v1273, %v1277
    %v1282 = vand.u32 2147483647, %v1272
    %vm1283 = vcmp.eq.f32.partialorder %v1282, 8.507059e+37
    %v1284 = vand.u32 %v1272, 2147483648
    %v1285 = vor.u32 1.1754944e-38, %v1284
    %v1286 = vsel %vm1283, %v1285, %v1281
    %v1287 = vmul.f32 1.0, %v1286
    %v1288 = vmul.f32 %v1267, %v682
    %v1289 = vmul.f32 %v1248, %v1268
    %v1290 = vadd.f32 %v1288, %v1289
    %v1291 = vtanh.pop %v1290
    %v1292 = vmul.f32 %v1287, %v1291
    %v1293 = vpack.c.bf16 %v1292, %v1292
    %1294 = vmatpush.bf16.msra.mxu0 %v906
    %1295 = vmatpush.bf16.msra.mxu0 %v902
    %1296 = vmatpush.bf16.msra.mxu0 %v898
    %1297 = vmatpush.bf16.msra.mxu0 %v894
    %1298 = vmatpush.bf16.msra.mxu0 %v890
    %1299 = vmatpush.bf16.msra.mxu0 %v886
    %1300 = vmatpush.bf16.msra.mxu0 %v882
    %1301 = vmatpush.bf16.msra.mxu0 %v878
    %1302 = vmatmul.bf16.gmra.mxu0 %v1293
    %v1303 = vpop.f32.mrf.mxu0
    %v1304 = vadd.f32 %v398, %v1303
    %v1305 = vpop.f32.mrf.mxu0
    %1306 = vdwg.mxu0
    %1307 = vmatpush.bf16.msra.mxu0 %v938
    %1308 = vmatpush.bf16.msra.mxu0 %v934
    %1309 = vmatpush.bf16.msra.mxu0 %v930
    %1310 = vmatpush.bf16.msra.mxu0 %v926
    %1311 = vmatpush.bf16.msra.mxu0 %v922
    %1312 = vmatpush.bf16.msra.mxu0 %v918
    %1313 = vmatpush.bf16.msra.mxu0 %v914
    %1314 = vmatpush.bf16.msra.mxu0 %v910
    %1315 = vmatmul.bf16.gmra.mxu0 %v1173
    %v1316 = vpop.f32.mrf.mxu0
    %v1317 = vadd.f32 %v1304, %v1316
    %v1318 = vpop.f32.mrf.mxu0
    %1319 = vdwg.mxu0
    %1320 = vmatpush.bf16.msra.mxu0 %v907
    %1321 = vmatpush.bf16.msra.mxu0 %v903
    %1322 = vmatpush.bf16.msra.mxu0 %v899
    %1323 = vmatpush.bf16.msra.mxu0 %v895
    %1324 = vmatpush.bf16.msra.mxu0 %v891
    %1325 = vmatpush.bf16.msra.mxu0 %v887
    %1326 = vmatpush.bf16.msra.mxu0 %v883
    %1327 = vmatpush.bf16.msra.mxu0 %v879
    %1328 = vmatmul.bf16.gmra.mxu0 %v1293
    %v1329 = vpop.f32.mrf.mxu0
    %v1330 = vadd.f32 %v399, %v1329
    %v1331 = vpop.f32.mrf.mxu0
    %1332 = vdwg.mxu0
    %1333 = vmatpush.bf16.msra.mxu0 %v939
    %1334 = vmatpush.bf16.msra.mxu0 %v935
    %1335 = vmatpush.bf16.msra.mxu0 %v931
    %1336 = vmatpush.bf16.msra.mxu0 %v927
    %1337 = vmatpush.bf16.msra.mxu0 %v923
    %1338 = vmatpush.bf16.msra.mxu0 %v919
    %1339 = vmatpush.bf16.msra.mxu0 %v915
    %1340 = vmatpush.bf16.msra.mxu0 %v911
    %1341 = vmatmul.bf16.gmra.mxu0 %v1173
    %v1342 = vpop.f32.mrf.mxu0
    %v1343 = vadd.f32 %v1330, %v1342
    %v1344 = vpop.f32.mrf.mxu0
    %1345 = vdwg.mxu0
    %1346 = vmatpush.bf16.msra.mxu0 %v908
    %1347 = vmatpush.bf16.msra.mxu0 %v904
    %1348 = vmatpush.bf16.msra.mxu0 %v900
    %1349 = vmatpush.bf16.msra.mxu0 %v896
    %1350 = vmatpush.bf16.msra.mxu0 %v892
    %1351 = vmatpush.bf16.msra.mxu0 %v888
    %1352 = vmatpush.bf16.msra.mxu0 %v884
    %1353 = vmatpush.bf16.msra.mxu0 %v880
    %1354 = vmatmul.bf16.gmra.mxu0 %v1293
    %v1355 = vpop.f32.mrf.mxu0
    %v1356 = vadd.f32 %v400, %v1355
    %v1357 = vpop.f32.mrf.mxu0
    %1358 = vdwg.mxu0
    %1359 = vmatpush.bf16.msra.mxu0 %v940
    %1360 = vmatpush.bf16.msra.mxu0 %v936
    %1361 = vmatpush.bf16.msra.mxu0 %v932
    %1362 = vmatpush.bf16.msra.mxu0 %v928
    %1363 = vmatpush.bf16.msra.mxu0 %v924
    %1364 = vmatpush.bf16.msra.mxu0 %v920
    %1365 = vmatpush.bf16.msra.mxu0 %v916
    %1366 = vmatpush.bf16.msra.mxu0 %v912
    %1367 = vmatmul.bf16.gmra.mxu0 %v1173
    %v1368 = vpop.f32.mrf.mxu0
    %v1369 = vadd.f32 %v1356, %v1368
    %v1370 = vpop.f32.mrf.mxu0
    %1371 = vdwg.mxu0
    %1372 = vmatpush.bf16.msra.mxu0 %v909
    %1373 = vmatpush.bf16.msra.mxu0 %v905
    %1374 = vmatpush.bf16.msra.mxu0 %v901
    %1375 = vmatpush.bf16.msra.mxu0 %v897
    %1376 = vmatpush.bf16.msra.mxu0 %v893
    %1377 = vmatpush.bf16.msra.mxu0 %v889
    %1378 = vmatpush.bf16.msra.mxu0 %v885
    %1379 = vmatpush.bf16.msra.mxu0 %v881
    %1380 = vmatmul.bf16.gmra.mxu0 %v1293
    %v1381 = vpop.f32.mrf.mxu0
    %v1382 = vadd.f32 %v401, %v1381
    %v1383 = vpop.f32.mrf.mxu0
    %1384 = vdwg.mxu0
    %1385 = vmatpush.bf16.msra.mxu0 %v941
    %1386 = vmatpush.bf16.msra.mxu0 %v937
    %1387 = vmatpush.bf16.msra.mxu0 %v933
    %1388 = vmatpush.bf16.msra.mxu0 %v929
    %1389 = vmatpush.bf16.msra.mxu0 %v925
    %1390 = vmatpush.bf16.msra.mxu0 %v921
    %1391 = vmatpush.bf16.msra.mxu0 %v917
    %1392 = vmatpush.bf16.msra.mxu0 %v913
    %1393 = vmatmul.bf16.gmra.mxu0 %v1173
    %v1394 = vpop.f32.mrf.mxu0
    %v1395 = vadd.f32 %v1382, %v1394
    %v1396 = vpop.f32.mrf.mxu0
    %1397 = vdwg.mxu0
    %v1398 = vxor.u32 %v1317, 2147483648
    %v1399 = vmul.f32 %v1398, 1.442695
    %v1400 = vpow.pop %v1399
    %v1401 = vadd.f32 %v1400, 1.0
    %v1402 = vrcp.pop %v1401
    %v1403 = vmul.f32 %v1401, %v1402
    %v1404 = vsub.f32 1.0, %v1403
    %v1405 = vmul.f32 %v1402, %v1404
    %v1406 = vadd.f32 %v1402, %v1405
    %vm1407 = vweird.f32 %v1401
    %vm1408 = vweird.f32 %v1402
    %vm1409 = vmor %vm1407, %vm1408
    %v1410 = vsel %vm1409, %v1402, %v1406
    %v1411 = vand.u32 2147483647, %v1401
    %vm1412 = vcmp.eq.f32.partialorder %v1411, 8.507059e+37
    %v1413 = vand.u32 %v1401, 2147483648
    %v1414 = vor.u32 1.1754944e-38, %v1413
    %v1415 = vsel %vm1412, %v1414, %v1410
    %v1416 = vmul.f32 1.0, %v1415
    %v1417 = vxor.u32 %v1343, 2147483648
    %v1418 = vmul.f32 %v1417, 1.442695
    %v1419 = vpow.pop %v1418
    %v1420 = vadd.f32 %v1419, 1.0
    %v1421 = vrcp.pop %v1420
    %v1422 = vmul.f32 %v1420, %v1421
    %v1423 = vsub.f32 1.0, %v1422
    %v1424 = vmul.f32 %v1421, %v1423
    %v1425 = vadd.f32 %v1421, %v1424
    %vm1426 = vweird.f32 %v1420
    %vm1427 = vweird.f32 %v1421
    %vm1428 = vmor %vm1426, %vm1427
    %v1429 = vsel %vm1428, %v1421, %v1425
    %v1430 = vand.u32 2147483647, %v1420
    %vm1431 = vcmp.eq.f32.partialorder %v1430, 8.507059e+37
    %v1432 = vand.u32 %v1420, 2147483648
    %v1433 = vor.u32 1.1754944e-38, %v1432
    %v1434 = vsel %vm1431, %v1433, %v1429
    %v1435 = vmul.f32 1.0, %v1434
    %v1436 = vtanh.pop %v1369
    %v1437 = vxor.u32 %v1395, 2147483648
    %v1438 = vmul.f32 %v1437, 1.442695
    %v1439 = vpow.pop %v1438
    %v1440 = vadd.f32 %v1439, 1.0
    %v1441 = vrcp.pop %v1440
    %v1442 = vmul.f32 %v1440, %v1441
    %v1443 = vsub.f32 1.0, %v1442
    %v1444 = vmul.f32 %v1441, %v1443
    %v1445 = vadd.f32 %v1441, %v1444
    %vm1446 = vweird.f32 %v1440
    %vm1447 = vweird.f32 %v1441
    %vm1448 = vmor %vm1446, %vm1447
    %v1449 = vsel %vm1448, %v1441, %v1445
    %v1450 = vand.u32 2147483647, %v1440
    %vm1451 = vcmp.eq.f32.partialorder %v1450, 8.507059e+37
    %v1452 = vand.u32 %v1440, 2147483648
    %v1453 = vor.u32 1.1754944e-38, %v1452
    %v1454 = vsel %vm1451, %v1453, %v1449
    %v1455 = vmul.f32 1.0, %v1454
    %v1456 = vmul.f32 %v1435, %v1170
    %v1457 = vmul.f32 %v1416, %v1436
    %v1458 = vadd.f32 %v1456, %v1457
    %v1459 = vtanh.pop %v1458
    %v1460 = vmul.f32 %v1455, %v1459
    %v1461 = vpack.c.bf16 %v1460, %v1460
    %1462 = vmatpush.bf16.msra.mxu0 %v530
    %1463 = vmatpush.bf16.msra.mxu0 %v526
    %1464 = vmatpush.bf16.msra.mxu0 %v522
    %1465 = vmatpush.bf16.msra.mxu0 %v518
    %1466 = vmatpush.bf16.msra.mxu0 %v514
    %1467 = vmatpush.bf16.msra.mxu0 %v510
    %1468 = vmatpush.bf16.msra.mxu0 %v506
    %1469 = vmatpush.bf16.msra.mxu0 %v502
    %1470 = vmatmul.bf16.gmra.mxu0 %v1293
    %v1471 = vpop.f32.mrf.mxu0
    %v1472 = vadd.f32 0.0, %v1471
    %v1473 = vpop.f32.mrf.mxu0
    %1474 = vdwg.mxu0
    %1475 = vmatpush.bf16.msra.mxu0 %v531
    %1476 = vmatpush.bf16.msra.mxu0 %v527
    %1477 = vmatpush.bf16.msra.mxu0 %v523
    %1478 = vmatpush.bf16.msra.mxu0 %v519
    %1479 = vmatpush.bf16.msra.mxu0 %v515
    %1480 = vmatpush.bf16.msra.mxu0 %v511
    %1481 = vmatpush.bf16.msra.mxu0 %v507
    %1482 = vmatpush.bf16.msra.mxu0 %v503
    %1483 = vmatmul.bf16.gmra.mxu0 %v1293
    %v1484 = vpop.f32.mrf.mxu0
    %v1485 = vadd.f32 0.0, %v1484
    %v1486 = vpop.f32.mrf.mxu0
    %1487 = vdwg.mxu0
    %1488 = vmatpush.bf16.msra.mxu0 %v532
    %1489 = vmatpush.bf16.msra.mxu0 %v528
    %1490 = vmatpush.bf16.msra.mxu0 %v524
    %1491 = vmatpush.bf16.msra.mxu0 %v520
    %1492 = vmatpush.bf16.msra.mxu0 %v516
    %1493 = vmatpush.bf16.msra.mxu0 %v512
    %1494 = vmatpush.bf16.msra.mxu0 %v508
    %1495 = vmatpush.bf16.msra.mxu0 %v504
    %1496 = vmatmul.bf16.gmra.mxu0 %v1293
    %v1497 = vpop.f32.mrf.mxu0
    %v1498 = vadd.f32 0.0, %v1497
    %v1499 = vpop.f32.mrf.mxu0
    %1500 = vdwg.mxu0
    %1501 = vmatpush.bf16.msra.mxu0 %v533
    %1502 = vmatpush.bf16.msra.mxu0 %v529
    %1503 = vmatpush.bf16.msra.mxu0 %v525
    %1504 = vmatpush.bf16.msra.mxu0 %v521
    %1505 = vmatpush.bf16.msra.mxu0 %v517
    %1506 = vmatpush.bf16.msra.mxu0 %v513
    %1507 = vmatpush.bf16.msra.mxu0 %v509
    %1508 = vmatpush.bf16.msra.mxu0 %v505
    %1509 = vmatmul.bf16.gmra.mxu0 %v1293
    %v1510 = vpop.f32.mrf.mxu0
    %v1511 = vadd.f32 0.0, %v1510
    %v1512 = vpop.f32.mrf.mxu0
    %1513 = vdwg.mxu0
    %v1514 = vadd.f32 %v160, %v1472
    %v1515 = vadd.f32 %v201, %v1485
    %v1516 = vadd.f32 %v242, %v1498
    %v1517 = vadd.f32 %v283, %v1511
    %v1518 = vxor.u32 %v1514, 2147483648
    %v1519 = vmul.f32 %v1518, 1.442695
    %v1520 = vpow.pop %v1519
    %v1521 = vadd.f32 %v1520, 1.0
    %v1522 = vrcp.pop %v1521
    %v1523 = vmul.f32 %v1521, %v1522
    %v1524 = vsub.f32 1.0, %v1523
    %v1525 = vmul.f32 %v1522, %v1524
    %v1526 = vadd.f32 %v1522, %v1525
    %vm1527 = vweird.f32 %v1521
    %vm1528 = vweird.f32 %v1522
    %vm1529 = vmor %vm1527, %vm1528
    %v1530 = vsel %vm1529, %v1522, %v1526
    %v1531 = vand.u32 2147483647, %v1521
    %vm1532 = vcmp.eq.f32.partialorder %v1531, 8.507059e+37
    %v1533 = vand.u32 %v1521, 2147483648
    %v1534 = vor.u32 1.1754944e-38, %v1533
    %v1535 = vsel %vm1532, %v1534, %v1530
    %v1536 = vmul.f32 1.0, %v1535
    %v1537 = vxor.u32 %v1515, 2147483648
    %v1538 = vmul.f32 %v1537, 1.442695
    %v1539 = vpow.pop %v1538
    %v1540 = vadd.f32 %v1539, 1.0
    %v1541 = vrcp.pop %v1540
    %v1542 = vmul.f32 %v1540, %v1541
    %v1543 = vsub.f32 1.0, %v1542
    %v1544 = vmul.f32 %v1541, %v1543
    %v1545 = vadd.f32 %v1541, %v1544
    %vm1546 = vweird.f32 %v1540
    %vm1547 = vweird.f32 %v1541
    %vm1548 = vmor %vm1546, %vm1547
    %v1549 = vsel %vm1548, %v1541, %v1545
    %v1550 = vand.u32 2147483647, %v1540
    %vm1551 = vcmp.eq.f32.partialorder %v1550, 8.507059e+37
    %v1552 = vand.u32 %v1540, 2147483648
    %v1553 = vor.u32 1.1754944e-38, %v1552
    %v1554 = vsel %vm1551, %v1553, %v1549
    %v1555 = vmul.f32 1.0, %v1554
    %v1556 = vtanh.pop %v1516
    %v1557 = vxor.u32 %v1517, 2147483648
    %v1558 = vmul.f32 %v1557, 1.442695
    %v1559 = vpow.pop %v1558
    %v1560 = vadd.f32 %v1559, 1.0
    %v1561 = vrcp.pop %v1560
    %v1562 = vmul.f32 %v1560, %v1561
    %v1563 = vsub.f32 1.0, %v1562
    %v1564 = vmul.f32 %v1561, %v1563
    %v1565 = vadd.f32 %v1561, %v1564
    %vm1566 = vweird.f32 %v1560
    %vm1567 = vweird.f32 %v1561
    %vm1568 = vmor %vm1566, %vm1567
    %v1569 = vsel %vm1568, %v1561, %v1565
    %v1570 = vand.u32 2147483647, %v1560
    %vm1571 = vcmp.eq.f32.partialorder %v1570, 8.507059e+37
    %v1572 = vand.u32 %v1560, 2147483648
    %v1573 = vor.u32 1.1754944e-38, %v1572
    %v1574 = vsel %vm1571, %v1573, %v1569
    %v1575 = vmul.f32 1.0, %v1574
    %v1576 = vmul.f32 %v1555, %v1290
    %v1577 = vmul.f32 %v1536, %v1556
    %v1578 = vadd.f32 %v1576, %v1577
    %v1579 = vtanh.pop %v1578
    %v1580 = vmul.f32 %v1575, %v1579
    %v1581 = vpack.c.bf16 %v1580, %v1580
    %1582 = vmatpush.bf16.msra.mxu0 %v906
    %1583 = vmatpush.bf16.msra.mxu0 %v902
    %1584 = vmatpush.bf16.msra.mxu0 %v898
    %1585 = vmatpush.bf16.msra.mxu0 %v894
    %1586 = vmatpush.bf16.msra.mxu0 %v890
    %1587 = vmatpush.bf16.msra.mxu0 %v886
    %1588 = vmatpush.bf16.msra.mxu0 %v882
    %1589 = vmatpush.bf16.msra.mxu0 %v878
    %1590 = vmatmul.bf16.gmra.mxu0 %v1581
    %v1591 = vpop.f32.mrf.mxu0
    %v1592 = vadd.f32 %v398, %v1591
    %v1593 = vpop.f32.mrf.mxu0
    %1594 = vdwg.mxu0
    %1595 = vmatpush.bf16.msra.mxu0 %v938
    %1596 = vmatpush.bf16.msra.mxu0 %v934
    %1597 = vmatpush.bf16.msra.mxu0 %v930
    %1598 = vmatpush.bf16.msra.mxu0 %v926
    %1599 = vmatpush.bf16.msra.mxu0 %v922
    %1600 = vmatpush.bf16.msra.mxu0 %v918
    %1601 = vmatpush.bf16.msra.mxu0 %v914
    %1602 = vmatpush.bf16.msra.mxu0 %v910
    %1603 = vmatmul.bf16.gmra.mxu0 %v1461
    %v1604 = vpop.f32.mrf.mxu0
    %v1605 = vadd.f32 %v1592, %v1604
    %v1606 = vpop.f32.mrf.mxu0
    %1607 = vdwg.mxu0
    %1608 = vmatpush.bf16.msra.mxu0 %v907
    %1609 = vmatpush.bf16.msra.mxu0 %v903
    %1610 = vmatpush.bf16.msra.mxu0 %v899
    %1611 = vmatpush.bf16.msra.mxu0 %v895
    %1612 = vmatpush.bf16.msra.mxu0 %v891
    %1613 = vmatpush.bf16.msra.mxu0 %v887
    %1614 = vmatpush.bf16.msra.mxu0 %v883
    %1615 = vmatpush.bf16.msra.mxu0 %v879
    %1616 = vmatmul.bf16.gmra.mxu0 %v1581
    %v1617 = vpop.f32.mrf.mxu0
    %v1618 = vadd.f32 %v399, %v1617
    %v1619 = vpop.f32.mrf.mxu0
    %1620 = vdwg.mxu0
    %1621 = vmatpush.bf16.msra.mxu0 %v939
    %1622 = vmatpush.bf16.msra.mxu0 %v935
    %1623 = vmatpush.bf16.msra.mxu0 %v931
    %1624 = vmatpush.bf16.msra.mxu0 %v927
    %1625 = vmatpush.bf16.msra.mxu0 %v923
    %1626 = vmatpush.bf16.msra.mxu0 %v919
    %1627 = vmatpush.bf16.msra.mxu0 %v915
    %1628 = vmatpush.bf16.msra.mxu0 %v911
    %1629 = vmatmul.bf16.gmra.mxu0 %v1461
    %v1630 = vpop.f32.mrf.mxu0
    %v1631 = vadd.f32 %v1618, %v1630
    %v1632 = vpop.f32.mrf.mxu0
    %1633 = vdwg.mxu0
    %1634 = vmatpush.bf16.msra.mxu0 %v908
    %1635 = vmatpush.bf16.msra.mxu0 %v904
    %1636 = vmatpush.bf16.msra.mxu0 %v900
    %1637 = vmatpush.bf16.msra.mxu0 %v896
    %1638 = vmatpush.bf16.msra.mxu0 %v892
    %1639 = vmatpush.bf16.msra.mxu0 %v888
    %1640 = vmatpush.bf16.msra.mxu0 %v884
    %1641 = vmatpush.bf16.msra.mxu0 %v880
    %1642 = vmatmul.bf16.gmra.mxu0 %v1581
    %v1643 = vpop.f32.mrf.mxu0
    %v1644 = vadd.f32 %v400, %v1643
    %v1645 = vpop.f32.mrf.mxu0
    %1646 = vdwg.mxu0
    %1647 = vmatpush.bf16.msra.mxu0 %v940
    %1648 = vmatpush.bf16.msra.mxu0 %v936
    %1649 = vmatpush.bf16.msra.mxu0 %v932
    %1650 = vmatpush.bf16.msra.mxu0 %v928
    %1651 = vmatpush.bf16.msra.mxu0 %v924
    %1652 = vmatpush.bf16.msra.mxu0 %v920
    %1653 = vmatpush.bf16.msra.mxu0 %v916
    %1654 = vmatpush.bf16.msra.mxu0 %v912
    %1655 = vmatmul.bf16.gmra.mxu0 %v1461
    %v1656 = vpop.f32.mrf.mxu0
    %v1657 = vadd.f32 %v1644, %v1656
    %v1658 = vpop.f32.mrf.mxu0
    %1659 = vdwg.mxu0
    %1660 = vmatpush.bf16.msra.mxu0 %v909
    %1661 = vmatpush.bf16.msra.mxu0 %v905
    %1662 = vmatpush.bf16.msra.mxu0 %v901
    %1663 = vmatpush.bf16.msra.mxu0 %v897
    %1664 = vmatpush.bf16.msra.mxu0 %v893
    %1665 = vmatpush.bf16.msra.mxu0 %v889
    %1666 = vmatpush.bf16.msra.mxu0 %v885
    %1667 = vmatpush.bf16.msra.mxu0 %v881
    %1668 = vmatmul.bf16.gmra.mxu0 %v1581
    %v1669 = vpop.f32.mrf.mxu0
    %v1670 = vadd.f32 %v401, %v1669
    %v1671 = vpop.f32.mrf.mxu0
    %1672 = vdwg.mxu0
    %1673 = vmatpush.bf16.msra.mxu0 %v941
    %1674 = vmatpush.bf16.msra.mxu0 %v937
    %1675 = vmatpush.bf16.msra.mxu0 %v933
    %1676 = vmatpush.bf16.msra.mxu0 %v929
    %1677 = vmatpush.bf16.msra.mxu0 %v925
    %1678 = vmatpush.bf16.msra.mxu0 %v921
    %1679 = vmatpush.bf16.msra.mxu0 %v917
    %1680 = vmatpush.bf16.msra.mxu0 %v913
    %1681 = vmatmul.bf16.gmra.mxu0 %v1461
    %v1682 = vpop.f32.mrf.mxu0
    %v1683 = vadd.f32 %v1670, %v1682
    %v1684 = vpop.f32.mrf.mxu0
    %1685 = vdwg.mxu0
    %v1686 = vxor.u32 %v1605, 2147483648
    %v1687 = vmul.f32 %v1686, 1.442695
    %v1688 = vpow.pop %v1687
    %v1689 = vadd.f32 %v1688, 1.0
    %v1690 = vrcp.pop %v1689
    %v1691 = vmul.f32 %v1689, %v1690
    %v1692 = vsub.f32 1.0, %v1691
    %v1693 = vmul.f32 %v1690, %v1692
    %v1694 = vadd.f32 %v1690, %v1693
    %vm1695 = vweird.f32 %v1689
    %vm1696 = vweird.f32 %v1690
    %vm1697 = vmor %vm1695, %vm1696
    %v1698 = vsel %vm1697, %v1690, %v1694
    %v1699 = vand.u32 2147483647, %v1689
    %vm1700 = vcmp.eq.f32.partialorder %v1699, 8.507059e+37
    %v1701 = vand.u32 %v1689, 2147483648
    %v1702 = vor.u32 1.1754944e-38, %v1701
    %v1703 = vsel %vm1700, %v1702, %v1698
    %v1704 = vmul.f32 1.0, %v1703
    %v1705 = vxor.u32 %v1631, 2147483648
    %v1706 = vmul.f32 %v1705, 1.442695
    %v1707 = vpow.pop %v1706
    %v1708 = vadd.f32 %v1707, 1.0
    %v1709 = vrcp.pop %v1708
    %v1710 = vmul.f32 %v1708, %v1709
    %v1711 = vsub.f32 1.0, %v1710
    %v1712 = vmul.f32 %v1709, %v1711
    %v1713 = vadd.f32 %v1709, %v1712
    %vm1714 = vweird.f32 %v1708
    %vm1715 = vweird.f32 %v1709
    %vm1716 = vmor %vm1714, %vm1715
    %v1717 = vsel %vm1716, %v1709, %v1713
    %v1718 = vand.u32 2147483647, %v1708
    %vm1719 = vcmp.eq.f32.partialorder %v1718, 8.507059e+37
    %v1720 = vand.u32 %v1708, 2147483648
    %v1721 = vor.u32 1.1754944e-38, %v1720
    %v1722 = vsel %vm1719, %v1721, %v1717
    %v1723 = vmul.f32 1.0, %v1722
    %v1724 = vtanh.pop %v1657
    %v1725 = vxor.u32 %v1683, 2147483648
    %v1726 = vmul.f32 %v1725, 1.442695
    %v1727 = vpow.pop %v1726
    %v1728 = vadd.f32 %v1727, 1.0
    %v1729 = vrcp.pop %v1728
    %v1730 = vmul.f32 %v1728, %v1729
    %v1731 = vsub.f32 1.0, %v1730
    %v1732 = vmul.f32 %v1729, %v1731
    %v1733 = vadd.f32 %v1729, %v1732
    %vm1734 = vweird.f32 %v1728
    %vm1735 = vweird.f32 %v1729
    %vm1736 = vmor %vm1734, %vm1735
    %v1737 = vsel %vm1736, %v1729, %v1733
    %v1738 = vand.u32 2147483647, %v1728
    %vm1739 = vcmp.eq.f32.partialorder %v1738, 8.507059e+37
    %v1740 = vand.u32 %v1728, 2147483648
    %v1741 = vor.u32 1.1754944e-38, %v1740
    %v1742 = vsel %vm1739, %v1741, %v1737
    %v1743 = vmul.f32 1.0, %v1742
    %v1744 = vmul.f32 %v1723, %v1458
    %v1745 = vmul.f32 %v1704, %v1724
    %v1746 = vadd.f32 %v1744, %v1745
    %v1747 = vtanh.pop %v1746
    %v1748 = vmul.f32 %v1743, %v1747
    %v1749 = vpack.c.bf16 %v1748, %v1748
    %1750 = vmatpush.bf16.msra.mxu0 %v530
    %1751 = vmatpush.bf16.msra.mxu0 %v526
    %1752 = vmatpush.bf16.msra.mxu0 %v522
    %1753 = vmatpush.bf16.msra.mxu0 %v518
    %1754 = vmatpush.bf16.msra.mxu0 %v514
    %1755 = vmatpush.bf16.msra.mxu0 %v510
    %1756 = vmatpush.bf16.msra.mxu0 %v506
    %1757 = vmatpush.bf16.msra.mxu0 %v502
    %1758 = vmatmul.bf16.gmra.mxu0 %v1581
    %v1759 = vpop.f32.mrf.mxu0
    %v1760 = vadd.f32 0.0, %v1759
    %v1761 = vpop.f32.mrf.mxu0
    %1762 = vdwg.mxu0
    %1763 = vmatpush.bf16.msra.mxu0 %v531
    %1764 = vmatpush.bf16.msra.mxu0 %v527
    %1765 = vmatpush.bf16.msra.mxu0 %v523
    %1766 = vmatpush.bf16.msra.mxu0 %v519
    %1767 = vmatpush.bf16.msra.mxu0 %v515
    %1768 = vmatpush.bf16.msra.mxu0 %v511
    %1769 = vmatpush.bf16.msra.mxu0 %v507
    %1770 = vmatpush.bf16.msra.mxu0 %v503
    %1771 = vmatmul.bf16.gmra.mxu0 %v1581
    %v1772 = vpop.f32.mrf.mxu0
    %v1773 = vadd.f32 0.0, %v1772
    %v1774 = vpop.f32.mrf.mxu0
    %1775 = vdwg.mxu0
    %1776 = vmatpush.bf16.msra.mxu0 %v532
    %1777 = vmatpush.bf16.msra.mxu0 %v528
    %1778 = vmatpush.bf16.msra.mxu0 %v524
    %1779 = vmatpush.bf16.msra.mxu0 %v520
    %1780 = vmatpush.bf16.msra.mxu0 %v516
    %1781 = vmatpush.bf16.msra.mxu0 %v512
    %1782 = vmatpush.bf16.msra.mxu0 %v508
    %1783 = vmatpush.bf16.msra.mxu0 %v504
    %1784 = vmatmul.bf16.gmra.mxu0 %v1581
    %v1785 = vpop.f32.mrf.mxu0
    %v1786 = vadd.f32 0.0, %v1785
    %v1787 = vpop.f32.mrf.mxu0
    %1788 = vdwg.mxu0
    %1789 = vmatpush.bf16.msra.mxu0 %v533
    %1790 = vmatpush.bf16.msra.mxu0 %v529
    %1791 = vmatpush.bf16.msra.mxu0 %v525
    %1792 = vmatpush.bf16.msra.mxu0 %v521
    %1793 = vmatpush.bf16.msra.mxu0 %v517
    %1794 = vmatpush.bf16.msra.mxu0 %v513
    %1795 = vmatpush.bf16.msra.mxu0 %v509
    %1796 = vmatpush.bf16.msra.mxu0 %v505
    %1797 = vmatmul.bf16.gmra.mxu0 %v1581
    %v1798 = vpop.f32.mrf.mxu0
    %v1799 = vadd.f32 0.0, %v1798
    %v1800 = vpop.f32.mrf.mxu0
    %1801 = vdwg.mxu0
    %v1802 = vadd.f32 %v163, %v1760
    %v1803 = vadd.f32 %v204, %v1773
    %v1804 = vadd.f32 %v245, %v1786
    %v1805 = vadd.f32 %v286, %v1799
    %v1806 = vxor.u32 %v1802, 2147483648
    %v1807 = vmul.f32 %v1806, 1.442695
    %v1808 = vpow.pop %v1807
    %v1809 = vadd.f32 %v1808, 1.0
    %v1810 = vrcp.pop %v1809
    %v1811 = vmul.f32 %v1809, %v1810
    %v1812 = vsub.f32 1.0, %v1811
    %v1813 = vmul.f32 %v1810, %v1812
    %v1814 = vadd.f32 %v1810, %v1813
    %vm1815 = vweird.f32 %v1809
    %vm1816 = vweird.f32 %v1810
    %vm1817 = vmor %vm1815, %vm1816
    %v1818 = vsel %vm1817, %v1810, %v1814
    %v1819 = vand.u32 2147483647, %v1809
    %vm1820 = vcmp.eq.f32.partialorder %v1819, 8.507059e+37
    %v1821 = vand.u32 %v1809, 2147483648
    %v1822 = vor.u32 1.1754944e-38, %v1821
    %v1823 = vsel %vm1820, %v1822, %v1818
    %v1824 = vmul.f32 1.0, %v1823
    %v1825 = vxor.u32 %v1803, 2147483648
    %v1826 = vmul.f32 %v1825, 1.442695
    %v1827 = vpow.pop %v1826
    %v1828 = vadd.f32 %v1827, 1.0
    %v1829 = vrcp.pop %v1828
    %v1830 = vmul.f32 %v1828, %v1829
    %v1831 = vsub.f32 1.0, %v1830
    %v1832 = vmul.f32 %v1829, %v1831
    %v1833 = vadd.f32 %v1829, %v1832
    %vm1834 = vweird.f32 %v1828
    %vm1835 = vweird.f32 %v1829
    %vm1836 = vmor %vm1834, %vm1835
    %v1837 = vsel %vm1836, %v1829, %v1833
    %v1838 = vand.u32 2147483647, %v1828
    %vm1839 = vcmp.eq.f32.partialorder %v1838, 8.507059e+37
    %v1840 = vand.u32 %v1828, 2147483648
    %v1841 = vor.u32 1.1754944e-38, %v1840
    %v1842 = vsel %vm1839, %v1841, %v1837
    %v1843 = vmul.f32 1.0, %v1842
    %v1844 = vtanh.pop %v1804
    %v1845 = vxor.u32 %v1805, 2147483648
    %v1846 = vmul.f32 %v1845, 1.442695
    %v1847 = vpow.pop %v1846
    %v1848 = vadd.f32 %v1847, 1.0
    %v1849 = vrcp.pop %v1848
    %v1850 = vmul.f32 %v1848, %v1849
    %v1851 = vsub.f32 1.0, %v1850
    %v1852 = vmul.f32 %v1849, %v1851
    %v1853 = vadd.f32 %v1849, %v1852
    %vm1854 = vweird.f32 %v1848
    %vm1855 = vweird.f32 %v1849
    %vm1856 = vmor %vm1854, %vm1855
    %v1857 = vsel %vm1856, %v1849, %v1853
    %v1858 = vand.u32 2147483647, %v1848
    %vm1859 = vcmp.eq.f32.partialorder %v1858, 8.507059e+37
    %v1860 = vand.u32 %v1848, 2147483648
    %v1861 = vor.u32 1.1754944e-38, %v1860
    %v1862 = vsel %vm1859, %v1861, %v1857
    %v1863 = vmul.f32 1.0, %v1862
    %v1864 = vmul.f32 %v1843, %v1578
    %v1865 = vmul.f32 %v1824, %v1844
    %v1866 = vadd.f32 %v1864, %v1865
    %v1867 = vtanh.pop %v1866
    %v1868 = vmul.f32 %v1863, %v1867
    %v1869 = vpack.c.bf16 %v1868, %v1868
    %1870 = vmatpush.bf16.msra.mxu0 %v906
    %1871 = vmatpush.bf16.msra.mxu0 %v902
    %1872 = vmatpush.bf16.msra.mxu0 %v898
    %1873 = vmatpush.bf16.msra.mxu0 %v894
    %1874 = vmatpush.bf16.msra.mxu0 %v890
    %1875 = vmatpush.bf16.msra.mxu0 %v886
    %1876 = vmatpush.bf16.msra.mxu0 %v882
    %1877 = vmatpush.bf16.msra.mxu0 %v878
    %1878 = vmatmul.bf16.gmra.mxu0 %v1869
    %v1879 = vpop.f32.mrf.mxu0
    %v1880 = vadd.f32 %v398, %v1879
    %v1881 = vpop.f32.mrf.mxu0
    %1882 = vdwg.mxu0
    %1883 = vmatpush.bf16.msra.mxu0 %v938
    %1884 = vmatpush.bf16.msra.mxu0 %v934
    %1885 = vmatpush.bf16.msra.mxu0 %v930
    %1886 = vmatpush.bf16.msra.mxu0 %v926
    %1887 = vmatpush.bf16.msra.mxu0 %v922
    %1888 = vmatpush.bf16.msra.mxu0 %v918
    %1889 = vmatpush.bf16.msra.mxu0 %v914
    %1890 = vmatpush.bf16.msra.mxu0 %v910
    %1891 = vmatmul.bf16.gmra.mxu0 %v1749
    %v1892 = vpop.f32.mrf.mxu0
    %v1893 = vadd.f32 %v1880, %v1892
    %v1894 = vpop.f32.mrf.mxu0
    %1895 = vdwg.mxu0
    %1896 = vmatpush.bf16.msra.mxu0 %v907
    %1897 = vmatpush.bf16.msra.mxu0 %v903
    %1898 = vmatpush.bf16.msra.mxu0 %v899
    %1899 = vmatpush.bf16.msra.mxu0 %v895
    %1900 = vmatpush.bf16.msra.mxu0 %v891
    %1901 = vmatpush.bf16.msra.mxu0 %v887
    %1902 = vmatpush.bf16.msra.mxu0 %v883
    %1903 = vmatpush.bf16.msra.mxu0 %v879
    %1904 = vmatmul.bf16.gmra.mxu0 %v1869
    %v1905 = vpop.f32.mrf.mxu0
    %v1906 = vadd.f32 %v399, %v1905
    %v1907 = vpop.f32.mrf.mxu0
    %1908 = vdwg.mxu0
    %1909 = vmatpush.bf16.msra.mxu0 %v939
    %1910 = vmatpush.bf16.msra.mxu0 %v935
    %1911 = vmatpush.bf16.msra.mxu0 %v931
    %1912 = vmatpush.bf16.msra.mxu0 %v927
    %1913 = vmatpush.bf16.msra.mxu0 %v923
    %1914 = vmatpush.bf16.msra.mxu0 %v919
    %1915 = vmatpush.bf16.msra.mxu0 %v915
    %1916 = vmatpush.bf16.msra.mxu0 %v911
    %1917 = vmatmul.bf16.gmra.mxu0 %v1749
    %v1918 = vpop.f32.mrf.mxu0
    %v1919 = vadd.f32 %v1906, %v1918
    %v1920 = vpop.f32.mrf.mxu0
    %1921 = vdwg.mxu0
    %1922 = vmatpush.bf16.msra.mxu0 %v908
    %1923 = vmatpush.bf16.msra.mxu0 %v904
    %1924 = vmatpush.bf16.msra.mxu0 %v900
    %1925 = vmatpush.bf16.msra.mxu0 %v896
    %1926 = vmatpush.bf16.msra.mxu0 %v892
    %1927 = vmatpush.bf16.msra.mxu0 %v888
    %1928 = vmatpush.bf16.msra.mxu0 %v884
    %1929 = vmatpush.bf16.msra.mxu0 %v880
    %1930 = vmatmul.bf16.gmra.mxu0 %v1869
    %v1931 = vpop.f32.mrf.mxu0
    %v1932 = vadd.f32 %v400, %v1931
    %v1933 = vpop.f32.mrf.mxu0
    %1934 = vdwg.mxu0
    %1935 = vmatpush.bf16.msra.mxu0 %v940
    %1936 = vmatpush.bf16.msra.mxu0 %v936
    %1937 = vmatpush.bf16.msra.mxu0 %v932
    %1938 = vmatpush.bf16.msra.mxu0 %v928
    %1939 = vmatpush.bf16.msra.mxu0 %v924
    %1940 = vmatpush.bf16.msra.mxu0 %v920
    %1941 = vmatpush.bf16.msra.mxu0 %v916
    %1942 = vmatpush.bf16.msra.mxu0 %v912
    %1943 = vmatmul.bf16.gmra.mxu0 %v1749
    %v1944 = vpop.f32.mrf.mxu0
    %v1945 = vadd.f32 %v1932, %v1944
    %v1946 = vpop.f32.mrf.mxu0
    %1947 = vdwg.mxu0
    %1948 = vmatpush.bf16.msra.mxu0 %v909
    %1949 = vmatpush.bf16.msra.mxu0 %v905
    %1950 = vmatpush.bf16.msra.mxu0 %v901
    %1951 = vmatpush.bf16.msra.mxu0 %v897
    %1952 = vmatpush.bf16.msra.mxu0 %v893
    %1953 = vmatpush.bf16.msra.mxu0 %v889
    %1954 = vmatpush.bf16.msra.mxu0 %v885
    %1955 = vmatpush.bf16.msra.mxu0 %v881
    %1956 = vmatmul.bf16.gmra.mxu0 %v1869
    %v1957 = vpop.f32.mrf.mxu0
    %v1958 = vadd.f32 %v401, %v1957
    %v1959 = vpop.f32.mrf.mxu0
    %1960 = vdwg.mxu0
    %1961 = vmatpush.bf16.msra.mxu0 %v941
    %1962 = vmatpush.bf16.msra.mxu0 %v937
    %1963 = vmatpush.bf16.msra.mxu0 %v933
    %1964 = vmatpush.bf16.msra.mxu0 %v929
    %1965 = vmatpush.bf16.msra.mxu0 %v925
    %1966 = vmatpush.bf16.msra.mxu0 %v921
    %1967 = vmatpush.bf16.msra.mxu0 %v917
    %1968 = vmatpush.bf16.msra.mxu0 %v913
    %1969 = vmatmul.bf16.gmra.mxu0 %v1749
    %v1970 = vpop.f32.mrf.mxu0
    %v1971 = vadd.f32 %v1958, %v1970
    %v1972 = vpop.f32.mrf.mxu0
    %1973 = vdwg.mxu0
    %v1974 = vxor.u32 %v1893, 2147483648
    %v1975 = vmul.f32 %v1974, 1.442695
    %v1976 = vpow.pop %v1975
    %v1977 = vadd.f32 %v1976, 1.0
    %v1978 = vrcp.pop %v1977
    %v1979 = vmul.f32 %v1977, %v1978
    %v1980 = vsub.f32 1.0, %v1979
    %v1981 = vmul.f32 %v1978, %v1980
    %v1982 = vadd.f32 %v1978, %v1981
    %vm1983 = vweird.f32 %v1977
    %vm1984 = vweird.f32 %v1978
    %vm1985 = vmor %vm1983, %vm1984
    %v1986 = vsel %vm1985, %v1978, %v1982
    %v1987 = vand.u32 2147483647, %v1977
    %vm1988 = vcmp.eq.f32.partialorder %v1987, 8.507059e+37
    %v1989 = vand.u32 %v1977, 2147483648
    %v1990 = vor.u32 1.1754944e-38, %v1989
    %v1991 = vsel %vm1988, %v1990, %v1986
    %v1992 = vmul.f32 1.0, %v1991
    %v1993 = vxor.u32 %v1919, 2147483648
    %v1994 = vmul.f32 %v1993, 1.442695
    %v1995 = vpow.pop %v1994
    %v1996 = vadd.f32 %v1995, 1.0
    %v1997 = vrcp.pop %v1996
    %v1998 = vmul.f32 %v1996, %v1997
    %v1999 = vsub.f32 1.0, %v1998
    %v2000 = vmul.f32 %v1997, %v1999
    %v2001 = vadd.f32 %v1997, %v2000
    %vm2002 = vweird.f32 %v1996
    %vm2003 = vweird.f32 %v1997
    %vm2004 = vmor %vm2002, %vm2003
    %v2005 = vsel %vm2004, %v1997, %v2001
    %v2006 = vand.u32 2147483647, %v1996
    %vm2007 = vcmp.eq.f32.partialorder %v2006, 8.507059e+37
    %v2008 = vand.u32 %v1996, 2147483648
    %v2009 = vor.u32 1.1754944e-38, %v2008
    %v2010 = vsel %vm2007, %v2009, %v2005
    %v2011 = vmul.f32 1.0, %v2010
    %v2012 = vtanh.pop %v1945
    %v2013 = vxor.u32 %v1971, 2147483648
    %v2014 = vmul.f32 %v2013, 1.442695
    %v2015 = vpow.pop %v2014
    %v2016 = vadd.f32 %v2015, 1.0
    %v2017 = vrcp.pop %v2016
    %v2018 = vmul.f32 %v2016, %v2017
    %v2019 = vsub.f32 1.0, %v2018
    %v2020 = vmul.f32 %v2017, %v2019
    %v2021 = vadd.f32 %v2017, %v2020
    %vm2022 = vweird.f32 %v2016
    %vm2023 = vweird.f32 %v2017
    %vm2024 = vmor %vm2022, %vm2023
    %v2025 = vsel %vm2024, %v2017, %v2021
    %v2026 = vand.u32 2147483647, %v2016
    %vm2027 = vcmp.eq.f32.partialorder %v2026, 8.507059e+37
    %v2028 = vand.u32 %v2016, 2147483648
    %v2029 = vor.u32 1.1754944e-38, %v2028
    %v2030 = vsel %vm2027, %v2029, %v2025
    %v2031 = vmul.f32 1.0, %v2030
    %v2032 = vmul.f32 %v2011, %v1746
    %v2033 = vmul.f32 %v1992, %v2012
    %v2034 = vadd.f32 %v2032, %v2033
    %v2035 = vtanh.pop %v2034
    %v2036 = vmul.f32 %v2031, %v2035
    %v2037 = vpack.c.bf16 %v2036, %v2036
    %2038 = vmatpush.bf16.msra.mxu0 %v530
    %2039 = vmatpush.bf16.msra.mxu0 %v526
    %2040 = vmatpush.bf16.msra.mxu0 %v522
    %2041 = vmatpush.bf16.msra.mxu0 %v518
    %2042 = vmatpush.bf16.msra.mxu0 %v514
    %2043 = vmatpush.bf16.msra.mxu0 %v510
    %2044 = vmatpush.bf16.msra.mxu0 %v506
    %2045 = vmatpush.bf16.msra.mxu0 %v502
    %2046 = vmatmul.bf16.gmra.mxu0 %v1869
    %v2047 = vpop.f32.mrf.mxu0
    %v2048 = vadd.f32 0.0, %v2047
    %v2049 = vpop.f32.mrf.mxu0
    %2050 = vdwg.mxu0
    %2051 = vmatpush.bf16.msra.mxu0 %v531
    %2052 = vmatpush.bf16.msra.mxu0 %v527
    %2053 = vmatpush.bf16.msra.mxu0 %v523
    %2054 = vmatpush.bf16.msra.mxu0 %v519
    %2055 = vmatpush.bf16.msra.mxu0 %v515
    %2056 = vmatpush.bf16.msra.mxu0 %v511
    %2057 = vmatpush.bf16.msra.mxu0 %v507
    %2058 = vmatpush.bf16.msra.mxu0 %v503
    %2059 = vmatmul.bf16.gmra.mxu0 %v1869
    %v2060 = vpop.f32.mrf.mxu0
    %v2061 = vadd.f32 0.0, %v2060
    %v2062 = vpop.f32.mrf.mxu0
    %2063 = vdwg.mxu0
    %2064 = vmatpush.bf16.msra.mxu0 %v532
    %2065 = vmatpush.bf16.msra.mxu0 %v528
    %2066 = vmatpush.bf16.msra.mxu0 %v524
    %2067 = vmatpush.bf16.msra.mxu0 %v520
    %2068 = vmatpush.bf16.msra.mxu0 %v516
    %2069 = vmatpush.bf16.msra.mxu0 %v512
    %2070 = vmatpush.bf16.msra.mxu0 %v508
    %2071 = vmatpush.bf16.msra.mxu0 %v504
    %2072 = vmatmul.bf16.gmra.mxu0 %v1869
    %v2073 = vpop.f32.mrf.mxu0
    %v2074 = vadd.f32 0.0, %v2073
    %v2075 = vpop.f32.mrf.mxu0
    %2076 = vdwg.mxu0
    %2077 = vmatpush.bf16.msra.mxu0 %v533
    %2078 = vmatpush.bf16.msra.mxu0 %v529
    %2079 = vmatpush.bf16.msra.mxu0 %v525
    %2080 = vmatpush.bf16.msra.mxu0 %v521
    %2081 = vmatpush.bf16.msra.mxu0 %v517
    %2082 = vmatpush.bf16.msra.mxu0 %v513
    %2083 = vmatpush.bf16.msra.mxu0 %v509
    %2084 = vmatpush.bf16.msra.mxu0 %v505
    %2085 = vmatmul.bf16.gmra.mxu0 %v1869
    %v2086 = vpop.f32.mrf.mxu0
    %v2087 = vadd.f32 0.0, %v2086
    %v2088 = vpop.f32.mrf.mxu0
    %2089 = vdwg.mxu0
    %v2090 = vadd.f32 %v166, %v2048
    %v2091 = vadd.f32 %v207, %v2061
    %v2092 = vadd.f32 %v248, %v2074
    %v2093 = vadd.f32 %v289, %v2087
    %v2094 = vxor.u32 %v2090, 2147483648
    %v2095 = vmul.f32 %v2094, 1.442695
    %v2096 = vpow.pop %v2095
    %v2097 = vadd.f32 %v2096, 1.0
    %v2098 = vrcp.pop %v2097
    %v2099 = vmul.f32 %v2097, %v2098
    %v2100 = vsub.f32 1.0, %v2099
    %v2101 = vmul.f32 %v2098, %v2100
    %v2102 = vadd.f32 %v2098, %v2101
    %vm2103 = vweird.f32 %v2097
    %vm2104 = vweird.f32 %v2098
    %vm2105 = vmor %vm2103, %vm2104
    %v2106 = vsel %vm2105, %v2098, %v2102
    %v2107 = vand.u32 2147483647, %v2097
    %vm2108 = vcmp.eq.f32.partialorder %v2107, 8.507059e+37
    %v2109 = vand.u32 %v2097, 2147483648
    %v2110 = vor.u32 1.1754944e-38, %v2109
    %v2111 = vsel %vm2108, %v2110, %v2106
    %v2112 = vmul.f32 1.0, %v2111
    %v2113 = vxor.u32 %v2091, 2147483648
    %v2114 = vmul.f32 %v2113, 1.442695
    %v2115 = vpow.pop %v2114
    %v2116 = vadd.f32 %v2115, 1.0
    %v2117 = vrcp.pop %v2116
    %v2118 = vmul.f32 %v2116, %v2117
    %v2119 = vsub.f32 1.0, %v2118
    %v2120 = vmul.f32 %v2117, %v2119
    %v2121 = vadd.f32 %v2117, %v2120
    %vm2122 = vweird.f32 %v2116
    %vm2123 = vweird.f32 %v2117
    %vm2124 = vmor %vm2122, %vm2123
    %v2125 = vsel %vm2124, %v2117, %v2121
    %v2126 = vand.u32 2147483647, %v2116
    %vm2127 = vcmp.eq.f32.partialorder %v2126, 8.507059e+37
    %v2128 = vand.u32 %v2116, 2147483648
    %v2129 = vor.u32 1.1754944e-38, %v2128
    %v2130 = vsel %vm2127, %v2129, %v2125
    %v2131 = vmul.f32 1.0, %v2130
    %v2132 = vtanh.pop %v2092
    %v2133 = vxor.u32 %v2093, 2147483648
    %v2134 = vmul.f32 %v2133, 1.442695
    %v2135 = vpow.pop %v2134
    %v2136 = vadd.f32 %v2135, 1.0
    %v2137 = vrcp.pop %v2136
    %v2138 = vmul.f32 %v2136, %v2137
    %v2139 = vsub.f32 1.0, %v2138
    %v2140 = vmul.f32 %v2137, %v2139
    %v2141 = vadd.f32 %v2137, %v2140
    %vm2142 = vweird.f32 %v2136
    %vm2143 = vweird.f32 %v2137
    %vm2144 = vmor %vm2142, %vm2143
    %v2145 = vsel %vm2144, %v2137, %v2141
    %v2146 = vand.u32 2147483647, %v2136
    %vm2147 = vcmp.eq.f32.partialorder %v2146, 8.507059e+37
    %v2148 = vand.u32 %v2136, 2147483648
    %v2149 = vor.u32 1.1754944e-38, %v2148
    %v2150 = vsel %vm2147, %v2149, %v2145
    %v2151 = vmul.f32 1.0, %v2150
    %v2152 = vmul.f32 %v2131, %v1866
    %v2153 = vmul.f32 %v2112, %v2132
    %v2154 = vadd.f32 %v2152, %v2153
    %v2155 = vtanh.pop %v2154
    %v2156 = vmul.f32 %v2151, %v2155
    %v2157 = vpack.c.bf16 %v2156, %v2156
    %2158 = vmatpush.bf16.msra.mxu0 %v906
    %2159 = vmatpush.bf16.msra.mxu0 %v902
    %2160 = vmatpush.bf16.msra.mxu0 %v898
    %2161 = vmatpush.bf16.msra.mxu0 %v894
    %2162 = vmatpush.bf16.msra.mxu0 %v890
    %2163 = vmatpush.bf16.msra.mxu0 %v886
    %2164 = vmatpush.bf16.msra.mxu0 %v882
    %2165 = vmatpush.bf16.msra.mxu0 %v878
    %2166 = vmatmul.bf16.gmra.mxu0 %v2157
    %v2167 = vpop.f32.mrf.mxu0
    %v2168 = vadd.f32 %v398, %v2167
    %v2169 = vpop.f32.mrf.mxu0
    %2170 = vdwg.mxu0
    %2171 = vmatpush.bf16.msra.mxu0 %v938
    %2172 = vmatpush.bf16.msra.mxu0 %v934
    %2173 = vmatpush.bf16.msra.mxu0 %v930
    %2174 = vmatpush.bf16.msra.mxu0 %v926
    %2175 = vmatpush.bf16.msra.mxu0 %v922
    %2176 = vmatpush.bf16.msra.mxu0 %v918
    %2177 = vmatpush.bf16.msra.mxu0 %v914
    %2178 = vmatpush.bf16.msra.mxu0 %v910
    %2179 = vmatmul.bf16.gmra.mxu0 %v2037
    %v2180 = vpop.f32.mrf.mxu0
    %v2181 = vadd.f32 %v2168, %v2180
    %v2182 = vpop.f32.mrf.mxu0
    %2183 = vdwg.mxu0
    %2184 = vmatpush.bf16.msra.mxu0 %v907
    %2185 = vmatpush.bf16.msra.mxu0 %v903
    %2186 = vmatpush.bf16.msra.mxu0 %v899
    %2187 = vmatpush.bf16.msra.mxu0 %v895
    %2188 = vmatpush.bf16.msra.mxu0 %v891
    %2189 = vmatpush.bf16.msra.mxu0 %v887
    %2190 = vmatpush.bf16.msra.mxu0 %v883
    %2191 = vmatpush.bf16.msra.mxu0 %v879
    %2192 = vmatmul.bf16.gmra.mxu0 %v2157
    %v2193 = vpop.f32.mrf.mxu0
    %v2194 = vadd.f32 %v399, %v2193
    %v2195 = vpop.f32.mrf.mxu0
    %2196 = vdwg.mxu0
    %2197 = vmatpush.bf16.msra.mxu0 %v939
    %2198 = vmatpush.bf16.msra.mxu0 %v935
    %2199 = vmatpush.bf16.msra.mxu0 %v931
    %2200 = vmatpush.bf16.msra.mxu0 %v927
    %2201 = vmatpush.bf16.msra.mxu0 %v923
    %2202 = vmatpush.bf16.msra.mxu0 %v919
    %2203 = vmatpush.bf16.msra.mxu0 %v915
    %2204 = vmatpush.bf16.msra.mxu0 %v911
    %2205 = vmatmul.bf16.gmra.mxu0 %v2037
    %v2206 = vpop.f32.mrf.mxu0
    %v2207 = vadd.f32 %v2194, %v2206
    %v2208 = vpop.f32.mrf.mxu0
    %2209 = vdwg.mxu0
    %2210 = vmatpush.bf16.msra.mxu0 %v908
    %2211 = vmatpush.bf16.msra.mxu0 %v904
    %2212 = vmatpush.bf16.msra.mxu0 %v900
    %2213 = vmatpush.bf16.msra.mxu0 %v896
    %2214 = vmatpush.bf16.msra.mxu0 %v892
    %2215 = vmatpush.bf16.msra.mxu0 %v888
    %2216 = vmatpush.bf16.msra.mxu0 %v884
    %2217 = vmatpush.bf16.msra.mxu0 %v880
    %2218 = vmatmul.bf16.gmra.mxu0 %v2157
    %v2219 = vpop.f32.mrf.mxu0
    %v2220 = vadd.f32 %v400, %v2219
    %v2221 = vpop.f32.mrf.mxu0
    %2222 = vdwg.mxu0
    %2223 = vmatpush.bf16.msra.mxu0 %v940
    %2224 = vmatpush.bf16.msra.mxu0 %v936
    %2225 = vmatpush.bf16.msra.mxu0 %v932
    %2226 = vmatpush.bf16.msra.mxu0 %v928
    %2227 = vmatpush.bf16.msra.mxu0 %v924
    %2228 = vmatpush.bf16.msra.mxu0 %v920
    %2229 = vmatpush.bf16.msra.mxu0 %v916
    %2230 = vmatpush.bf16.msra.mxu0 %v912
    %2231 = vmatmul.bf16.gmra.mxu0 %v2037
    %v2232 = vpop.f32.mrf.mxu0
    %v2233 = vadd.f32 %v2220, %v2232
    %v2234 = vpop.f32.mrf.mxu0
    %2235 = vdwg.mxu0
    %2236 = vmatpush.bf16.msra.mxu0 %v909
    %2237 = vmatpush.bf16.msra.mxu0 %v905
    %2238 = vmatpush.bf16.msra.mxu0 %v901
    %2239 = vmatpush.bf16.msra.mxu0 %v897
    %2240 = vmatpush.bf16.msra.mxu0 %v893
    %2241 = vmatpush.bf16.msra.mxu0 %v889
    %2242 = vmatpush.bf16.msra.mxu0 %v885
    %2243 = vmatpush.bf16.msra.mxu0 %v881
    %2244 = vmatmul.bf16.gmra.mxu0 %v2157
    %v2245 = vpop.f32.mrf.mxu0
    %v2246 = vadd.f32 %v401, %v2245
    %v2247 = vpop.f32.mrf.mxu0
    %2248 = vdwg.mxu0
    %2249 = vmatpush.bf16.msra.mxu0 %v941
    %2250 = vmatpush.bf16.msra.mxu0 %v937
    %2251 = vmatpush.bf16.msra.mxu0 %v933
    %2252 = vmatpush.bf16.msra.mxu0 %v929
    %2253 = vmatpush.bf16.msra.mxu0 %v925
    %2254 = vmatpush.bf16.msra.mxu0 %v921
    %2255 = vmatpush.bf16.msra.mxu0 %v917
    %2256 = vmatpush.bf16.msra.mxu0 %v913
    %2257 = vmatmul.bf16.gmra.mxu0 %v2037
    %v2258 = vpop.f32.mrf.mxu0
    %v2259 = vadd.f32 %v2246, %v2258
    %v2260 = vpop.f32.mrf.mxu0
    %2261 = vdwg.mxu0
    %v2262 = vxor.u32 %v2181, 2147483648
    %v2263 = vmul.f32 %v2262, 1.442695
    %v2264 = vpow.pop %v2263
    %v2265 = vadd.f32 %v2264, 1.0
    %v2266 = vrcp.pop %v2265
    %v2267 = vmul.f32 %v2265, %v2266
    %v2268 = vsub.f32 1.0, %v2267
    %v2269 = vmul.f32 %v2266, %v2268
    %v2270 = vadd.f32 %v2266, %v2269
    %vm2271 = vweird.f32 %v2265
    %vm2272 = vweird.f32 %v2266
    %vm2273 = vmor %vm2271, %vm2272
    %v2274 = vsel %vm2273, %v2266, %v2270
    %v2275 = vand.u32 2147483647, %v2265
    %vm2276 = vcmp.eq.f32.partialorder %v2275, 8.507059e+37
    %v2277 = vand.u32 %v2265, 2147483648
    %v2278 = vor.u32 1.1754944e-38, %v2277
    %v2279 = vsel %vm2276, %v2278, %v2274
    %v2280 = vmul.f32 1.0, %v2279
    %v2281 = vxor.u32 %v2207, 2147483648
    %v2282 = vmul.f32 %v2281, 1.442695
    %v2283 = vpow.pop %v2282
    %v2284 = vadd.f32 %v2283, 1.0
    %v2285 = vrcp.pop %v2284
    %v2286 = vmul.f32 %v2284, %v2285
    %v2287 = vsub.f32 1.0, %v2286
    %v2288 = vmul.f32 %v2285, %v2287
    %v2289 = vadd.f32 %v2285, %v2288
    %vm2290 = vweird.f32 %v2284
    %vm2291 = vweird.f32 %v2285
    %vm2292 = vmor %vm2290, %vm2291
    %v2293 = vsel %vm2292, %v2285, %v2289
    %v2294 = vand.u32 2147483647, %v2284
    %vm2295 = vcmp.eq.f32.partialorder %v2294, 8.507059e+37
    %v2296 = vand.u32 %v2284, 2147483648
    %v2297 = vor.u32 1.1754944e-38, %v2296
    %v2298 = vsel %vm2295, %v2297, %v2293
    %v2299 = vmul.f32 1.0, %v2298
    %v2300 = vtanh.pop %v2233
    %v2301 = vxor.u32 %v2259, 2147483648
    %v2302 = vmul.f32 %v2301, 1.442695
    %v2303 = vpow.pop %v2302
    %v2304 = vadd.f32 %v2303, 1.0
    %v2305 = vrcp.pop %v2304
    %v2306 = vmul.f32 %v2304, %v2305
    %v2307 = vsub.f32 1.0, %v2306
    %v2308 = vmul.f32 %v2305, %v2307
    %v2309 = vadd.f32 %v2305, %v2308
    %vm2310 = vweird.f32 %v2304
    %vm2311 = vweird.f32 %v2305
    %vm2312 = vmor %vm2310, %vm2311
    %v2313 = vsel %vm2312, %v2305, %v2309
    %v2314 = vand.u32 2147483647, %v2304
    %vm2315 = vcmp.eq.f32.partialorder %v2314, 8.507059e+37
    %v2316 = vand.u32 %v2304, 2147483648
    %v2317 = vor.u32 1.1754944e-38, %v2316
    %v2318 = vsel %vm2315, %v2317, %v2313
    %v2319 = vmul.f32 1.0, %v2318
    %v2320 = vmul.f32 %v2299, %v2034
    %v2321 = vmul.f32 %v2280, %v2300
    %v2322 = vadd.f32 %v2320, %v2321
    %v2323 = vtanh.pop %v2322
    %v2324 = vmul.f32 %v2319, %v2323
    %v2325 = vpack.c.bf16 %v2324, %v2324
    %2326 = vmatpush.bf16.msra.mxu0 %v530
    %2327 = vmatpush.bf16.msra.mxu0 %v526
    %2328 = vmatpush.bf16.msra.mxu0 %v522
    %2329 = vmatpush.bf16.msra.mxu0 %v518
    %2330 = vmatpush.bf16.msra.mxu0 %v514
    %2331 = vmatpush.bf16.msra.mxu0 %v510
    %2332 = vmatpush.bf16.msra.mxu0 %v506
    %2333 = vmatpush.bf16.msra.mxu0 %v502
    %2334 = vmatmul.bf16.gmra.mxu0 %v2157
    %v2335 = vpop.f32.mrf.mxu0
    %v2336 = vadd.f32 0.0, %v2335
    %v2337 = vpop.f32.mrf.mxu0
    %2338 = vdwg.mxu0
    %2339 = vmatpush.bf16.msra.mxu0 %v531
    %2340 = vmatpush.bf16.msra.mxu0 %v527
    %2341 = vmatpush.bf16.msra.mxu0 %v523
    %2342 = vmatpush.bf16.msra.mxu0 %v519
    %2343 = vmatpush.bf16.msra.mxu0 %v515
    %2344 = vmatpush.bf16.msra.mxu0 %v511
    %2345 = vmatpush.bf16.msra.mxu0 %v507
    %2346 = vmatpush.bf16.msra.mxu0 %v503
    %2347 = vmatmul.bf16.gmra.mxu0 %v2157
    %v2348 = vpop.f32.mrf.mxu0
    %v2349 = vadd.f32 0.0, %v2348
    %v2350 = vpop.f32.mrf.mxu0
    %2351 = vdwg.mxu0
    %2352 = vmatpush.bf16.msra.mxu0 %v532
    %2353 = vmatpush.bf16.msra.mxu0 %v528
    %2354 = vmatpush.bf16.msra.mxu0 %v524
    %2355 = vmatpush.bf16.msra.mxu0 %v520
    %2356 = vmatpush.bf16.msra.mxu0 %v516
    %2357 = vmatpush.bf16.msra.mxu0 %v512
    %2358 = vmatpush.bf16.msra.mxu0 %v508
    %2359 = vmatpush.bf16.msra.mxu0 %v504
    %2360 = vmatmul.bf16.gmra.mxu0 %v2157
    %v2361 = vpop.f32.mrf.mxu0
    %v2362 = vadd.f32 0.0, %v2361
    %v2363 = vpop.f32.mrf.mxu0
    %2364 = vdwg.mxu0
    %2365 = vmatpush.bf16.msra.mxu0 %v533
    %2366 = vmatpush.bf16.msra.mxu0 %v529
    %2367 = vmatpush.bf16.msra.mxu0 %v525
    %2368 = vmatpush.bf16.msra.mxu0 %v521
    %2369 = vmatpush.bf16.msra.mxu0 %v517
    %2370 = vmatpush.bf16.msra.mxu0 %v513
    %2371 = vmatpush.bf16.msra.mxu0 %v509
    %2372 = vmatpush.bf16.msra.mxu0 %v505
    %2373 = vmatmul.bf16.gmra.mxu0 %v2157
    %v2374 = vpop.f32.mrf.mxu0
    %v2375 = vadd.f32 0.0, %v2374
    %v2376 = vpop.f32.mrf.mxu0
    %2377 = vdwg.mxu0
    %v2378 = vadd.f32 %v169, %v2336
    %v2379 = vadd.f32 %v210, %v2349
    %v2380 = vadd.f32 %v251, %v2362
    %v2381 = vadd.f32 %v292, %v2375
    %v2382 = vxor.u32 %v2378, 2147483648
    %v2383 = vmul.f32 %v2382, 1.442695
    %v2384 = vpow.pop %v2383
    %v2385 = vadd.f32 %v2384, 1.0
    %v2386 = vrcp.pop %v2385
    %v2387 = vmul.f32 %v2385, %v2386
    %v2388 = vsub.f32 1.0, %v2387
    %v2389 = vmul.f32 %v2386, %v2388
    %v2390 = vadd.f32 %v2386, %v2389
    %vm2391 = vweird.f32 %v2385
    %vm2392 = vweird.f32 %v2386
    %vm2393 = vmor %vm2391, %vm2392
    %v2394 = vsel %vm2393, %v2386, %v2390
    %v2395 = vand.u32 2147483647, %v2385
    %vm2396 = vcmp.eq.f32.partialorder %v2395, 8.507059e+37
    %v2397 = vand.u32 %v2385, 2147483648
    %v2398 = vor.u32 1.1754944e-38, %v2397
    %v2399 = vsel %vm2396, %v2398, %v2394
    %v2400 = vmul.f32 1.0, %v2399
    %v2401 = vxor.u32 %v2379, 2147483648
    %v2402 = vmul.f32 %v2401, 1.442695
    %v2403 = vpow.pop %v2402
    %v2404 = vadd.f32 %v2403, 1.0
    %v2405 = vrcp.pop %v2404
    %v2406 = vmul.f32 %v2404, %v2405
    %v2407 = vsub.f32 1.0, %v2406
    %v2408 = vmul.f32 %v2405, %v2407
    %v2409 = vadd.f32 %v2405, %v2408
    %vm2410 = vweird.f32 %v2404
    %vm2411 = vweird.f32 %v2405
    %vm2412 = vmor %vm2410, %vm2411
    %v2413 = vsel %vm2412, %v2405, %v2409
    %v2414 = vand.u32 2147483647, %v2404
    %vm2415 = vcmp.eq.f32.partialorder %v2414, 8.507059e+37
    %v2416 = vand.u32 %v2404, 2147483648
    %v2417 = vor.u32 1.1754944e-38, %v2416
    %v2418 = vsel %vm2415, %v2417, %v2413
    %v2419 = vmul.f32 1.0, %v2418
    %v2420 = vtanh.pop %v2380
    %v2421 = vxor.u32 %v2381, 2147483648
    %v2422 = vmul.f32 %v2421, 1.442695
    %v2423 = vpow.pop %v2422
    %v2424 = vadd.f32 %v2423, 1.0
    %v2425 = vrcp.pop %v2424
    %v2426 = vmul.f32 %v2424, %v2425
    %v2427 = vsub.f32 1.0, %v2426
    %v2428 = vmul.f32 %v2425, %v2427
    %v2429 = vadd.f32 %v2425, %v2428
    %vm2430 = vweird.f32 %v2424
    %vm2431 = vweird.f32 %v2425
    %vm2432 = vmor %vm2430, %vm2431
    %v2433 = vsel %vm2432, %v2425, %v2429
    %v2434 = vand.u32 2147483647, %v2424
    %vm2435 = vcmp.eq.f32.partialorder %v2434, 8.507059e+37
    %v2436 = vand.u32 %v2424, 2147483648
    %v2437 = vor.u32 1.1754944e-38, %v2436
    %v2438 = vsel %vm2435, %v2437, %v2433
    %v2439 = vmul.f32 1.0, %v2438
    %v2440 = vmul.f32 %v2419, %v2154
    %v2441 = vmul.f32 %v2400, %v2420
    %v2442 = vadd.f32 %v2440, %v2441
    %v2443 = vtanh.pop %v2442
    %v2444 = vmul.f32 %v2439, %v2443
    %v2445 = vpack.c.bf16 %v2444, %v2444
    %2446 = vmatpush.bf16.msra.mxu0 %v906
    %2447 = vmatpush.bf16.msra.mxu0 %v902
    %2448 = vmatpush.bf16.msra.mxu0 %v898
    %2449 = vmatpush.bf16.msra.mxu0 %v894
    %2450 = vmatpush.bf16.msra.mxu0 %v890
    %2451 = vmatpush.bf16.msra.mxu0 %v886
    %2452 = vmatpush.bf16.msra.mxu0 %v882
    %2453 = vmatpush.bf16.msra.mxu0 %v878
    %2454 = vmatmul.bf16.gmra.mxu0 %v2445
    %v2455 = vpop.f32.mrf.mxu0
    %v2456 = vadd.f32 %v398, %v2455
    %v2457 = vpop.f32.mrf.mxu0
    %2458 = vdwg.mxu0
    %2459 = vmatpush.bf16.msra.mxu0 %v938
    %2460 = vmatpush.bf16.msra.mxu0 %v934
    %2461 = vmatpush.bf16.msra.mxu0 %v930
    %2462 = vmatpush.bf16.msra.mxu0 %v926
    %2463 = vmatpush.bf16.msra.mxu0 %v922
    %2464 = vmatpush.bf16.msra.mxu0 %v918
    %2465 = vmatpush.bf16.msra.mxu0 %v914
    %2466 = vmatpush.bf16.msra.mxu0 %v910
    %2467 = vmatmul.bf16.gmra.mxu0 %v2325
    %v2468 = vpop.f32.mrf.mxu0
    %v2469 = vadd.f32 %v2456, %v2468
    %v2470 = vpop.f32.mrf.mxu0
    %2471 = vdwg.mxu0
    %2472 = vmatpush.bf16.msra.mxu0 %v907
    %2473 = vmatpush.bf16.msra.mxu0 %v903
    %2474 = vmatpush.bf16.msra.mxu0 %v899
    %2475 = vmatpush.bf16.msra.mxu0 %v895
    %2476 = vmatpush.bf16.msra.mxu0 %v891
    %2477 = vmatpush.bf16.msra.mxu0 %v887
    %2478 = vmatpush.bf16.msra.mxu0 %v883
    %2479 = vmatpush.bf16.msra.mxu0 %v879
    %2480 = vmatmul.bf16.gmra.mxu0 %v2445
    %v2481 = vpop.f32.mrf.mxu0
    %v2482 = vadd.f32 %v399, %v2481
    %v2483 = vpop.f32.mrf.mxu0
    %2484 = vdwg.mxu0
    %2485 = vmatpush.bf16.msra.mxu0 %v939
    %2486 = vmatpush.bf16.msra.mxu0 %v935
    %2487 = vmatpush.bf16.msra.mxu0 %v931
    %2488 = vmatpush.bf16.msra.mxu0 %v927
    %2489 = vmatpush.bf16.msra.mxu0 %v923
    %2490 = vmatpush.bf16.msra.mxu0 %v919
    %2491 = vmatpush.bf16.msra.mxu0 %v915
    %2492 = vmatpush.bf16.msra.mxu0 %v911
    %2493 = vmatmul.bf16.gmra.mxu0 %v2325
    %v2494 = vpop.f32.mrf.mxu0
    %v2495 = vadd.f32 %v2482, %v2494
    %v2496 = vpop.f32.mrf.mxu0
    %2497 = vdwg.mxu0
    %2498 = vmatpush.bf16.msra.mxu0 %v908
    %2499 = vmatpush.bf16.msra.mxu0 %v904
    %2500 = vmatpush.bf16.msra.mxu0 %v900
    %2501 = vmatpush.bf16.msra.mxu0 %v896
    %2502 = vmatpush.bf16.msra.mxu0 %v892
    %2503 = vmatpush.bf16.msra.mxu0 %v888
    %2504 = vmatpush.bf16.msra.mxu0 %v884
    %2505 = vmatpush.bf16.msra.mxu0 %v880
    %2506 = vmatmul.bf16.gmra.mxu0 %v2445
    %v2507 = vpop.f32.mrf.mxu0
    %v2508 = vadd.f32 %v400, %v2507
    %v2509 = vpop.f32.mrf.mxu0
    %2510 = vdwg.mxu0
    %2511 = vmatpush.bf16.msra.mxu0 %v940
    %2512 = vmatpush.bf16.msra.mxu0 %v936
    %2513 = vmatpush.bf16.msra.mxu0 %v932
    %2514 = vmatpush.bf16.msra.mxu0 %v928
    %2515 = vmatpush.bf16.msra.mxu0 %v924
    %2516 = vmatpush.bf16.msra.mxu0 %v920
    %2517 = vmatpush.bf16.msra.mxu0 %v916
    %2518 = vmatpush.bf16.msra.mxu0 %v912
    %2519 = vmatmul.bf16.gmra.mxu0 %v2325
    %v2520 = vpop.f32.mrf.mxu0
    %v2521 = vadd.f32 %v2508, %v2520
    %v2522 = vpop.f32.mrf.mxu0
    %2523 = vdwg.mxu0
    %2524 = vmatpush.bf16.msra.mxu0 %v909
    %2525 = vmatpush.bf16.msra.mxu0 %v905
    %2526 = vmatpush.bf16.msra.mxu0 %v901
    %2527 = vmatpush.bf16.msra.mxu0 %v897
    %2528 = vmatpush.bf16.msra.mxu0 %v893
    %2529 = vmatpush.bf16.msra.mxu0 %v889
    %2530 = vmatpush.bf16.msra.mxu0 %v885
    %2531 = vmatpush.bf16.msra.mxu0 %v881
    %2532 = vmatmul.bf16.gmra.mxu0 %v2445
    %v2533 = vpop.f32.mrf.mxu0
    %v2534 = vadd.f32 %v401, %v2533
    %v2535 = vpop.f32.mrf.mxu0
    %2536 = vdwg.mxu0
    %2537 = vmatpush.bf16.msra.mxu0 %v941
    %2538 = vmatpush.bf16.msra.mxu0 %v937
    %2539 = vmatpush.bf16.msra.mxu0 %v933
    %2540 = vmatpush.bf16.msra.mxu0 %v929
    %2541 = vmatpush.bf16.msra.mxu0 %v925
    %2542 = vmatpush.bf16.msra.mxu0 %v921
    %2543 = vmatpush.bf16.msra.mxu0 %v917
    %2544 = vmatpush.bf16.msra.mxu0 %v913
    %2545 = vmatmul.bf16.gmra.mxu0 %v2325
    %v2546 = vpop.f32.mrf.mxu0
    %v2547 = vadd.f32 %v2534, %v2546
    %v2548 = vpop.f32.mrf.mxu0
    %2549 = vdwg.mxu0
    %v2550 = vxor.u32 %v2469, 2147483648
    %v2551 = vmul.f32 %v2550, 1.442695
    %v2552 = vpow.pop %v2551
    %v2553 = vadd.f32 %v2552, 1.0
    %v2554 = vrcp.pop %v2553
    %v2555 = vmul.f32 %v2553, %v2554
    %v2556 = vsub.f32 1.0, %v2555
    %v2557 = vmul.f32 %v2554, %v2556
    %v2558 = vadd.f32 %v2554, %v2557
    %vm2559 = vweird.f32 %v2553
    %vm2560 = vweird.f32 %v2554
    %vm2561 = vmor %vm2559, %vm2560
    %v2562 = vsel %vm2561, %v2554, %v2558
    %v2563 = vand.u32 2147483647, %v2553
    %vm2564 = vcmp.eq.f32.partialorder %v2563, 8.507059e+37
    %v2565 = vand.u32 %v2553, 2147483648
    %v2566 = vor.u32 1.1754944e-38, %v2565
    %v2567 = vsel %vm2564, %v2566, %v2562
    %v2568 = vmul.f32 1.0, %v2567
    %v2569 = vxor.u32 %v2495, 2147483648
    %v2570 = vmul.f32 %v2569, 1.442695
    %v2571 = vpow.pop %v2570
    %v2572 = vadd.f32 %v2571, 1.0
    %v2573 = vrcp.pop %v2572
    %v2574 = vmul.f32 %v2572, %v2573
    %v2575 = vsub.f32 1.0, %v2574
    %v2576 = vmul.f32 %v2573, %v2575
    %v2577 = vadd.f32 %v2573, %v2576
    %vm2578 = vweird.f32 %v2572
    %vm2579 = vweird.f32 %v2573
    %vm2580 = vmor %vm2578, %vm2579
    %v2581 = vsel %vm2580, %v2573, %v2577
    %v2582 = vand.u32 2147483647, %v2572
    %vm2583 = vcmp.eq.f32.partialorder %v2582, 8.507059e+37
    %v2584 = vand.u32 %v2572, 2147483648
    %v2585 = vor.u32 1.1754944e-38, %v2584
    %v2586 = vsel %vm2583, %v2585, %v2581
    %v2587 = vmul.f32 1.0, %v2586
    %v2588 = vtanh.pop %v2521
    %v2589 = vxor.u32 %v2547, 2147483648
    %v2590 = vmul.f32 %v2589, 1.442695
    %v2591 = vpow.pop %v2590
    %v2592 = vadd.f32 %v2591, 1.0
    %v2593 = vrcp.pop %v2592
    %v2594 = vmul.f32 %v2592, %v2593
    %v2595 = vsub.f32 1.0, %v2594
    %v2596 = vmul.f32 %v2593, %v2595
    %v2597 = vadd.f32 %v2593, %v2596
    %vm2598 = vweird.f32 %v2592
    %vm2599 = vweird.f32 %v2593
    %vm2600 = vmor %vm2598, %vm2599
    %v2601 = vsel %vm2600, %v2593, %v2597
    %v2602 = vand.u32 2147483647, %v2592
    %vm2603 = vcmp.eq.f32.partialorder %v2602, 8.507059e+37
    %v2604 = vand.u32 %v2592, 2147483648
    %v2605 = vor.u32 1.1754944e-38, %v2604
    %v2606 = vsel %vm2603, %v2605, %v2601
    %v2607 = vmul.f32 1.0, %v2606
    %v2608 = vmul.f32 %v2587, %v2322
    %v2609 = vmul.f32 %v2568, %v2588
    %v2610 = vadd.f32 %v2608, %v2609
    %v2611 = vtanh.pop %v2610
    %v2612 = vmul.f32 %v2607, %v2611
    %v2613 = vpack.c.bf16 %v2612, %v2612
    %2614 = vmatpush.bf16.msra.mxu0 %v530
    %2615 = vmatpush.bf16.msra.mxu0 %v526
    %2616 = vmatpush.bf16.msra.mxu0 %v522
    %2617 = vmatpush.bf16.msra.mxu0 %v518
    %2618 = vmatpush.bf16.msra.mxu0 %v514
    %2619 = vmatpush.bf16.msra.mxu0 %v510
    %2620 = vmatpush.bf16.msra.mxu0 %v506
    %2621 = vmatpush.bf16.msra.mxu0 %v502
    %2622 = vmatmul.bf16.gmra.mxu0 %v2445
    %v2623 = vpop.f32.mrf.mxu0
    %v2624 = vadd.f32 0.0, %v2623
    %v2625 = vpop.f32.mrf.mxu0
    %2626 = vdwg.mxu0
    %2627 = vmatpush.bf16.msra.mxu0 %v531
    %2628 = vmatpush.bf16.msra.mxu0 %v527
    %2629 = vmatpush.bf16.msra.mxu0 %v523
    %2630 = vmatpush.bf16.msra.mxu0 %v519
    %2631 = vmatpush.bf16.msra.mxu0 %v515
    %2632 = vmatpush.bf16.msra.mxu0 %v511
    %2633 = vmatpush.bf16.msra.mxu0 %v507
    %2634 = vmatpush.bf16.msra.mxu0 %v503
    %2635 = vmatmul.bf16.gmra.mxu0 %v2445
    %v2636 = vpop.f32.mrf.mxu0
    %v2637 = vadd.f32 0.0, %v2636
    %v2638 = vpop.f32.mrf.mxu0
    %2639 = vdwg.mxu0
    %2640 = vmatpush.bf16.msra.mxu0 %v532
    %2641 = vmatpush.bf16.msra.mxu0 %v528
    %2642 = vmatpush.bf16.msra.mxu0 %v524
    %2643 = vmatpush.bf16.msra.mxu0 %v520
    %2644 = vmatpush.bf16.msra.mxu0 %v516
    %2645 = vmatpush.bf16.msra.mxu0 %v512
    %2646 = vmatpush.bf16.msra.mxu0 %v508
    %2647 = vmatpush.bf16.msra.mxu0 %v504
    %2648 = vmatmul.bf16.gmra.mxu0 %v2445
    %v2649 = vpop.f32.mrf.mxu0
    %v2650 = vadd.f32 0.0, %v2649
    %v2651 = vpop.f32.mrf.mxu0
    %2652 = vdwg.mxu0
    %2653 = vmatpush.bf16.msra.mxu0 %v533
    %2654 = vmatpush.bf16.msra.mxu0 %v529
    %2655 = vmatpush.bf16.msra.mxu0 %v525
    %2656 = vmatpush.bf16.msra.mxu0 %v521
    %2657 = vmatpush.bf16.msra.mxu0 %v517
    %2658 = vmatpush.bf16.msra.mxu0 %v513
    %2659 = vmatpush.bf16.msra.mxu0 %v509
    %2660 = vmatpush.bf16.msra.mxu0 %v505
    %2661 = vmatmul.bf16.gmra.mxu0 %v2445
    %v2662 = vpop.f32.mrf.mxu0
    %v2663 = vadd.f32 0.0, %v2662
    %v2664 = vpop.f32.mrf.mxu0
    %2665 = vdwg.mxu0
    %v2666 = vadd.f32 %v172, %v2624
    %v2667 = vadd.f32 %v213, %v2637
    %v2668 = vadd.f32 %v254, %v2650
    %v2669 = vadd.f32 %v295, %v2663
    %v2670 = vxor.u32 %v2666, 2147483648
    %v2671 = vmul.f32 %v2670, 1.442695
    %v2672 = vpow.pop %v2671
    %v2673 = vadd.f32 %v2672, 1.0
    %v2674 = vrcp.pop %v2673
    %v2675 = vmul.f32 %v2673, %v2674
    %v2676 = vsub.f32 1.0, %v2675
    %v2677 = vmul.f32 %v2674, %v2676
    %v2678 = vadd.f32 %v2674, %v2677
    %vm2679 = vweird.f32 %v2673
    %vm2680 = vweird.f32 %v2674
    %vm2681 = vmor %vm2679, %vm2680
    %v2682 = vsel %vm2681, %v2674, %v2678
    %v2683 = vand.u32 2147483647, %v2673
    %vm2684 = vcmp.eq.f32.partialorder %v2683, 8.507059e+37
    %v2685 = vand.u32 %v2673, 2147483648
    %v2686 = vor.u32 1.1754944e-38, %v2685
    %v2687 = vsel %vm2684, %v2686, %v2682
    %v2688 = vmul.f32 1.0, %v2687
    %v2689 = vxor.u32 %v2667, 2147483648
    %v2690 = vmul.f32 %v2689, 1.442695
    %v2691 = vpow.pop %v2690
    %v2692 = vadd.f32 %v2691, 1.0
    %v2693 = vrcp.pop %v2692
    %v2694 = vmul.f32 %v2692, %v2693
    %v2695 = vsub.f32 1.0, %v2694
    %v2696 = vmul.f32 %v2693, %v2695
    %v2697 = vadd.f32 %v2693, %v2696
    %vm2698 = vweird.f32 %v2692
    %vm2699 = vweird.f32 %v2693
    %vm2700 = vmor %vm2698, %vm2699
    %v2701 = vsel %vm2700, %v2693, %v2697
    %v2702 = vand.u32 2147483647, %v2692
    %vm2703 = vcmp.eq.f32.partialorder %v2702, 8.507059e+37
    %v2704 = vand.u32 %v2692, 2147483648
    %v2705 = vor.u32 1.1754944e-38, %v2704
    %v2706 = vsel %vm2703, %v2705, %v2701
    %v2707 = vmul.f32 1.0, %v2706
    %v2708 = vtanh.pop %v2668
    %v2709 = vxor.u32 %v2669, 2147483648
    %v2710 = vmul.f32 %v2709, 1.442695
    %v2711 = vpow.pop %v2710
    %v2712 = vadd.f32 %v2711, 1.0
    %v2713 = vrcp.pop %v2712
    %v2714 = vmul.f32 %v2712, %v2713
    %v2715 = vsub.f32 1.0, %v2714
    %v2716 = vmul.f32 %v2713, %v2715
    %v2717 = vadd.f32 %v2713, %v2716
    %vm2718 = vweird.f32 %v2712
    %vm2719 = vweird.f32 %v2713
    %vm2720 = vmor %vm2718, %vm2719
    %v2721 = vsel %vm2720, %v2713, %v2717
    %v2722 = vand.u32 2147483647, %v2712
    %vm2723 = vcmp.eq.f32.partialorder %v2722, 8.507059e+37
    %v2724 = vand.u32 %v2712, 2147483648
    %v2725 = vor.u32 1.1754944e-38, %v2724
    %v2726 = vsel %vm2723, %v2725, %v2721
    %v2727 = vmul.f32 1.0, %v2726
    %v2728 = vmul.f32 %v2707, %v2442
    %v2729 = vmul.f32 %v2688, %v2708
    %v2730 = vadd.f32 %v2728, %v2729
    %v2731 = vtanh.pop %v2730
    %v2732 = vmul.f32 %v2727, %v2731
    %v2733 = vpack.c.bf16 %v2732, %v2732
    %2734 = vmatpush.bf16.msra.mxu0 %v906
    %2735 = vmatpush.bf16.msra.mxu0 %v902
    %2736 = vmatpush.bf16.msra.mxu0 %v898
    %2737 = vmatpush.bf16.msra.mxu0 %v894
    %2738 = vmatpush.bf16.msra.mxu0 %v890
    %2739 = vmatpush.bf16.msra.mxu0 %v886
    %2740 = vmatpush.bf16.msra.mxu0 %v882
    %2741 = vmatpush.bf16.msra.mxu0 %v878
    %2742 = vmatmul.bf16.gmra.mxu0 %v2733
    %v2743 = vpop.f32.mrf.mxu0
    %v2744 = vadd.f32 %v398, %v2743
    %v2745 = vpop.f32.mrf.mxu0
    %2746 = vdwg.mxu0
    %2747 = vmatpush.bf16.msra.mxu0 %v938
    %2748 = vmatpush.bf16.msra.mxu0 %v934
    %2749 = vmatpush.bf16.msra.mxu0 %v930
    %2750 = vmatpush.bf16.msra.mxu0 %v926
    %2751 = vmatpush.bf16.msra.mxu0 %v922
    %2752 = vmatpush.bf16.msra.mxu0 %v918
    %2753 = vmatpush.bf16.msra.mxu0 %v914
    %2754 = vmatpush.bf16.msra.mxu0 %v910
    %2755 = vmatmul.bf16.gmra.mxu0 %v2613
    %v2756 = vpop.f32.mrf.mxu0
    %v2757 = vadd.f32 %v2744, %v2756
    %v2758 = vpop.f32.mrf.mxu0
    %2759 = vdwg.mxu0
    %2760 = vmatpush.bf16.msra.mxu0 %v907
    %2761 = vmatpush.bf16.msra.mxu0 %v903
    %2762 = vmatpush.bf16.msra.mxu0 %v899
    %2763 = vmatpush.bf16.msra.mxu0 %v895
    %2764 = vmatpush.bf16.msra.mxu0 %v891
    %2765 = vmatpush.bf16.msra.mxu0 %v887
    %2766 = vmatpush.bf16.msra.mxu0 %v883
    %2767 = vmatpush.bf16.msra.mxu0 %v879
    %2768 = vmatmul.bf16.gmra.mxu0 %v2733
    %v2769 = vpop.f32.mrf.mxu0
    %v2770 = vadd.f32 %v399, %v2769
    %v2771 = vpop.f32.mrf.mxu0
    %2772 = vdwg.mxu0
    %2773 = vmatpush.bf16.msra.mxu0 %v939
    %2774 = vmatpush.bf16.msra.mxu0 %v935
    %2775 = vmatpush.bf16.msra.mxu0 %v931
    %2776 = vmatpush.bf16.msra.mxu0 %v927
    %2777 = vmatpush.bf16.msra.mxu0 %v923
    %2778 = vmatpush.bf16.msra.mxu0 %v919
    %2779 = vmatpush.bf16.msra.mxu0 %v915
    %2780 = vmatpush.bf16.msra.mxu0 %v911
    %2781 = vmatmul.bf16.gmra.mxu0 %v2613
    %v2782 = vpop.f32.mrf.mxu0
    %v2783 = vadd.f32 %v2770, %v2782
    %v2784 = vpop.f32.mrf.mxu0
    %2785 = vdwg.mxu0
    %2786 = vmatpush.bf16.msra.mxu0 %v908
    %2787 = vmatpush.bf16.msra.mxu0 %v904
    %2788 = vmatpush.bf16.msra.mxu0 %v900
    %2789 = vmatpush.bf16.msra.mxu0 %v896
    %2790 = vmatpush.bf16.msra.mxu0 %v892
    %2791 = vmatpush.bf16.msra.mxu0 %v888
    %2792 = vmatpush.bf16.msra.mxu0 %v884
    %2793 = vmatpush.bf16.msra.mxu0 %v880
    %2794 = vmatmul.bf16.gmra.mxu0 %v2733
    %v2795 = vpop.f32.mrf.mxu0
    %v2796 = vadd.f32 %v400, %v2795
    %v2797 = vpop.f32.mrf.mxu0
    %2798 = vdwg.mxu0
    %2799 = vmatpush.bf16.msra.mxu0 %v940
    %2800 = vmatpush.bf16.msra.mxu0 %v936
    %2801 = vmatpush.bf16.msra.mxu0 %v932
    %2802 = vmatpush.bf16.msra.mxu0 %v928
    %2803 = vmatpush.bf16.msra.mxu0 %v924
    %2804 = vmatpush.bf16.msra.mxu0 %v920
    %2805 = vmatpush.bf16.msra.mxu0 %v916
    %2806 = vmatpush.bf16.msra.mxu0 %v912
    %2807 = vmatmul.bf16.gmra.mxu0 %v2613
    %v2808 = vpop.f32.mrf.mxu0
    %v2809 = vadd.f32 %v2796, %v2808
    %v2810 = vpop.f32.mrf.mxu0
    %2811 = vdwg.mxu0
    %2812 = vmatpush.bf16.msra.mxu0 %v909
    %2813 = vmatpush.bf16.msra.mxu0 %v905
    %2814 = vmatpush.bf16.msra.mxu0 %v901
    %2815 = vmatpush.bf16.msra.mxu0 %v897
    %2816 = vmatpush.bf16.msra.mxu0 %v893
    %2817 = vmatpush.bf16.msra.mxu0 %v889
    %2818 = vmatpush.bf16.msra.mxu0 %v885
    %2819 = vmatpush.bf16.msra.mxu0 %v881
    %2820 = vmatmul.bf16.gmra.mxu0 %v2733
    %v2821 = vpop.f32.mrf.mxu0
    %v2822 = vadd.f32 %v401, %v2821
    %v2823 = vpop.f32.mrf.mxu0
    %2824 = vdwg.mxu0
    %2825 = vmatpush.bf16.msra.mxu0 %v941
    %2826 = vmatpush.bf16.msra.mxu0 %v937
    %2827 = vmatpush.bf16.msra.mxu0 %v933
    %2828 = vmatpush.bf16.msra.mxu0 %v929
    %2829 = vmatpush.bf16.msra.mxu0 %v925
    %2830 = vmatpush.bf16.msra.mxu0 %v921
    %2831 = vmatpush.bf16.msra.mxu0 %v917
    %2832 = vmatpush.bf16.msra.mxu0 %v913
    %2833 = vmatmul.bf16.gmra.mxu0 %v2613
    %v2834 = vpop.f32.mrf.mxu0
    %v2835 = vadd.f32 %v2822, %v2834
    %v2836 = vpop.f32.mrf.mxu0
    %2837 = vdwg.mxu0
    %v2838 = vxor.u32 %v2757, 2147483648
    %v2839 = vmul.f32 %v2838, 1.442695
    %v2840 = vpow.pop %v2839
    %v2841 = vadd.f32 %v2840, 1.0
    %v2842 = vrcp.pop %v2841
    %v2843 = vmul.f32 %v2841, %v2842
    %v2844 = vsub.f32 1.0, %v2843
    %v2845 = vmul.f32 %v2842, %v2844
    %v2846 = vadd.f32 %v2842, %v2845
    %vm2847 = vweird.f32 %v2841
    %vm2848 = vweird.f32 %v2842
    %vm2849 = vmor %vm2847, %vm2848
    %v2850 = vsel %vm2849, %v2842, %v2846
    %v2851 = vand.u32 2147483647, %v2841
    %vm2852 = vcmp.eq.f32.partialorder %v2851, 8.507059e+37
    %v2853 = vand.u32 %v2841, 2147483648
    %v2854 = vor.u32 1.1754944e-38, %v2853
    %v2855 = vsel %vm2852, %v2854, %v2850
    %v2856 = vmul.f32 1.0, %v2855
    %v2857 = vxor.u32 %v2783, 2147483648
    %v2858 = vmul.f32 %v2857, 1.442695
    %v2859 = vpow.pop %v2858
    %v2860 = vadd.f32 %v2859, 1.0
    %v2861 = vrcp.pop %v2860
    %v2862 = vmul.f32 %v2860, %v2861
    %v2863 = vsub.f32 1.0, %v2862
    %v2864 = vmul.f32 %v2861, %v2863
    %v2865 = vadd.f32 %v2861, %v2864
    %vm2866 = vweird.f32 %v2860
    %vm2867 = vweird.f32 %v2861
    %vm2868 = vmor %vm2866, %vm2867
    %v2869 = vsel %vm2868, %v2861, %v2865
    %v2870 = vand.u32 2147483647, %v2860
    %vm2871 = vcmp.eq.f32.partialorder %v2870, 8.507059e+37
    %v2872 = vand.u32 %v2860, 2147483648
    %v2873 = vor.u32 1.1754944e-38, %v2872
    %v2874 = vsel %vm2871, %v2873, %v2869
    %v2875 = vmul.f32 1.0, %v2874
    %v2876 = vtanh.pop %v2809
    %v2877 = vxor.u32 %v2835, 2147483648
    %v2878 = vmul.f32 %v2877, 1.442695
    %v2879 = vpow.pop %v2878
    %v2880 = vadd.f32 %v2879, 1.0
    %v2881 = vrcp.pop %v2880
    %v2882 = vmul.f32 %v2880, %v2881
    %v2883 = vsub.f32 1.0, %v2882
    %v2884 = vmul.f32 %v2881, %v2883
    %v2885 = vadd.f32 %v2881, %v2884
    %vm2886 = vweird.f32 %v2880
    %vm2887 = vweird.f32 %v2881
    %vm2888 = vmor %vm2886, %vm2887
    %v2889 = vsel %vm2888, %v2881, %v2885
    %v2890 = vand.u32 2147483647, %v2880
    %vm2891 = vcmp.eq.f32.partialorder %v2890, 8.507059e+37
    %v2892 = vand.u32 %v2880, 2147483648
    %v2893 = vor.u32 1.1754944e-38, %v2892
    %v2894 = vsel %vm2891, %v2893, %v2889
    %v2895 = vmul.f32 1.0, %v2894
    %v2896 = vmul.f32 %v2875, %v2610
    %v2897 = vmul.f32 %v2856, %v2876
    %v2898 = vadd.f32 %v2896, %v2897
    %v2899 = vtanh.pop %v2898
    %v2900 = vmul.f32 %v2895, %v2899
    %v2901 = vpack.c.bf16 %v2900, %v2900
    %2902 = vmatpush.bf16.msra.mxu0 %v530
    %2903 = vmatpush.bf16.msra.mxu0 %v526
    %2904 = vmatpush.bf16.msra.mxu0 %v522
    %2905 = vmatpush.bf16.msra.mxu0 %v518
    %2906 = vmatpush.bf16.msra.mxu0 %v514
    %2907 = vmatpush.bf16.msra.mxu0 %v510
    %2908 = vmatpush.bf16.msra.mxu0 %v506
    %2909 = vmatpush.bf16.msra.mxu0 %v502
    %2910 = vmatmul.bf16.gmra.mxu0 %v2733
    %v2911 = vpop.f32.mrf.mxu0
    %v2912 = vadd.f32 0.0, %v2911
    %v2913 = vpop.f32.mrf.mxu0
    %2914 = vdwg.mxu0
    %2915 = vmatpush.bf16.msra.mxu0 %v531
    %2916 = vmatpush.bf16.msra.mxu0 %v527
    %2917 = vmatpush.bf16.msra.mxu0 %v523
    %2918 = vmatpush.bf16.msra.mxu0 %v519
    %2919 = vmatpush.bf16.msra.mxu0 %v515
    %2920 = vmatpush.bf16.msra.mxu0 %v511
    %2921 = vmatpush.bf16.msra.mxu0 %v507
    %2922 = vmatpush.bf16.msra.mxu0 %v503
    %2923 = vmatmul.bf16.gmra.mxu0 %v2733
    %v2924 = vpop.f32.mrf.mxu0
    %v2925 = vadd.f32 0.0, %v2924
    %v2926 = vpop.f32.mrf.mxu0
    %2927 = vdwg.mxu0
    %2928 = vmatpush.bf16.msra.mxu0 %v532
    %2929 = vmatpush.bf16.msra.mxu0 %v528
    %2930 = vmatpush.bf16.msra.mxu0 %v524
    %2931 = vmatpush.bf16.msra.mxu0 %v520
    %2932 = vmatpush.bf16.msra.mxu0 %v516
    %2933 = vmatpush.bf16.msra.mxu0 %v512
    %2934 = vmatpush.bf16.msra.mxu0 %v508
    %2935 = vmatpush.bf16.msra.mxu0 %v504
    %2936 = vmatmul.bf16.gmra.mxu0 %v2733
    %v2937 = vpop.f32.mrf.mxu0
    %v2938 = vadd.f32 0.0, %v2937
    %v2939 = vpop.f32.mrf.mxu0
    %2940 = vdwg.mxu0
    %2941 = vmatpush.bf16.msra.mxu0 %v533
    %2942 = vmatpush.bf16.msra.mxu0 %v529
    %2943 = vmatpush.bf16.msra.mxu0 %v525
    %2944 = vmatpush.bf16.msra.mxu0 %v521
    %2945 = vmatpush.bf16.msra.mxu0 %v517
    %2946 = vmatpush.bf16.msra.mxu0 %v513
    %2947 = vmatpush.bf16.msra.mxu0 %v509
    %2948 = vmatpush.bf16.msra.mxu0 %v505
    %2949 = vmatmul.bf16.gmra.mxu0 %v2733
    %v2950 = vpop.f32.mrf.mxu0
    %v2951 = vadd.f32 0.0, %v2950
    %v2952 = vpop.f32.mrf.mxu0
    %2953 = vdwg.mxu0
    %v2954 = vadd.f32 %v175, %v2912
    %v2955 = vadd.f32 %v216, %v2925
    %v2956 = vadd.f32 %v257, %v2938
    %v2957 = vadd.f32 %v298, %v2951
    %v2958 = vxor.u32 %v2954, 2147483648
    %v2959 = vmul.f32 %v2958, 1.442695
    %v2960 = vpow.pop %v2959
    %v2961 = vadd.f32 %v2960, 1.0
    %v2962 = vrcp.pop %v2961
    %v2963 = vmul.f32 %v2961, %v2962
    %v2964 = vsub.f32 1.0, %v2963
    %v2965 = vmul.f32 %v2962, %v2964
    %v2966 = vadd.f32 %v2962, %v2965
    %vm2967 = vweird.f32 %v2961
    %vm2968 = vweird.f32 %v2962
    %vm2969 = vmor %vm2967, %vm2968
    %v2970 = vsel %vm2969, %v2962, %v2966
    %v2971 = vand.u32 2147483647, %v2961
    %vm2972 = vcmp.eq.f32.partialorder %v2971, 8.507059e+37
    %v2973 = vand.u32 %v2961, 2147483648
    %v2974 = vor.u32 1.1754944e-38, %v2973
    %v2975 = vsel %vm2972, %v2974, %v2970
    %v2976 = vmul.f32 1.0, %v2975
    %v2977 = vxor.u32 %v2955, 2147483648
    %v2978 = vmul.f32 %v2977, 1.442695
    %v2979 = vpow.pop %v2978
    %v2980 = vadd.f32 %v2979, 1.0
    %v2981 = vrcp.pop %v2980
    %v2982 = vmul.f32 %v2980, %v2981
    %v2983 = vsub.f32 1.0, %v2982
    %v2984 = vmul.f32 %v2981, %v2983
    %v2985 = vadd.f32 %v2981, %v2984
    %vm2986 = vweird.f32 %v2980
    %vm2987 = vweird.f32 %v2981
    %vm2988 = vmor %vm2986, %vm2987
    %v2989 = vsel %vm2988, %v2981, %v2985
    %v2990 = vand.u32 2147483647, %v2980
    %vm2991 = vcmp.eq.f32.partialorder %v2990, 8.507059e+37
    %v2992 = vand.u32 %v2980, 2147483648
    %v2993 = vor.u32 1.1754944e-38, %v2992
    %v2994 = vsel %vm2991, %v2993, %v2989
    %v2995 = vmul.f32 1.0, %v2994
    %v2996 = vtanh.pop %v2956
    %v2997 = vxor.u32 %v2957, 2147483648
    %v2998 = vmul.f32 %v2997, 1.442695
    %v2999 = vpow.pop %v2998
    %v3000 = vadd.f32 %v2999, 1.0
    %v3001 = vrcp.pop %v3000
    %v3002 = vmul.f32 %v3000, %v3001
    %v3003 = vsub.f32 1.0, %v3002
    %v3004 = vmul.f32 %v3001, %v3003
    %v3005 = vadd.f32 %v3001, %v3004
    %vm3006 = vweird.f32 %v3000
    %vm3007 = vweird.f32 %v3001
    %vm3008 = vmor %vm3006, %vm3007
    %v3009 = vsel %vm3008, %v3001, %v3005
    %v3010 = vand.u32 2147483647, %v3000
    %vm3011 = vcmp.eq.f32.partialorder %v3010, 8.507059e+37
    %v3012 = vand.u32 %v3000, 2147483648
    %v3013 = vor.u32 1.1754944e-38, %v3012
    %v3014 = vsel %vm3011, %v3013, %v3009
    %v3015 = vmul.f32 1.0, %v3014
    %v3016 = vmul.f32 %v2995, %v2730
    %v3017 = vmul.f32 %v2976, %v2996
    %v3018 = vadd.f32 %v3016, %v3017
    %v3019 = vtanh.pop %v3018
    %v3020 = vmul.f32 %v3015, %v3019
    %v3021 = vpack.c.bf16 %v3020, %v3020
    %3022 = vmatpush.bf16.msra.mxu0 %v906
    %3023 = vmatpush.bf16.msra.mxu0 %v902
    %3024 = vmatpush.bf16.msra.mxu0 %v898
    %3025 = vmatpush.bf16.msra.mxu0 %v894
    %3026 = vmatpush.bf16.msra.mxu0 %v890
    %3027 = vmatpush.bf16.msra.mxu0 %v886
    %3028 = vmatpush.bf16.msra.mxu0 %v882
    %3029 = vmatpush.bf16.msra.mxu0 %v878
    %3030 = vmatmul.bf16.gmra.mxu0 %v3021
    %v3031 = vpop.f32.mrf.mxu0
    %v3032 = vadd.f32 %v398, %v3031
    %v3033 = vpop.f32.mrf.mxu0
    %3034 = vdwg.mxu0
    %3035 = vmatpush.bf16.msra.mxu0 %v938
    %3036 = vmatpush.bf16.msra.mxu0 %v934
    %3037 = vmatpush.bf16.msra.mxu0 %v930
    %3038 = vmatpush.bf16.msra.mxu0 %v926
    %3039 = vmatpush.bf16.msra.mxu0 %v922
    %3040 = vmatpush.bf16.msra.mxu0 %v918
    %3041 = vmatpush.bf16.msra.mxu0 %v914
    %3042 = vmatpush.bf16.msra.mxu0 %v910
    %3043 = vmatmul.bf16.gmra.mxu0 %v2901
    %v3044 = vpop.f32.mrf.mxu0
    %v3045 = vadd.f32 %v3032, %v3044
    %v3046 = vpop.f32.mrf.mxu0
    %3047 = vdwg.mxu0
    %3048 = vmatpush.bf16.msra.mxu0 %v907
    %3049 = vmatpush.bf16.msra.mxu0 %v903
    %3050 = vmatpush.bf16.msra.mxu0 %v899
    %3051 = vmatpush.bf16.msra.mxu0 %v895
    %3052 = vmatpush.bf16.msra.mxu0 %v891
    %3053 = vmatpush.bf16.msra.mxu0 %v887
    %3054 = vmatpush.bf16.msra.mxu0 %v883
    %3055 = vmatpush.bf16.msra.mxu0 %v879
    %3056 = vmatmul.bf16.gmra.mxu0 %v3021
    %v3057 = vpop.f32.mrf.mxu0
    %v3058 = vadd.f32 %v399, %v3057
    %v3059 = vpop.f32.mrf.mxu0
    %3060 = vdwg.mxu0
    %3061 = vmatpush.bf16.msra.mxu0 %v939
    %3062 = vmatpush.bf16.msra.mxu0 %v935
    %3063 = vmatpush.bf16.msra.mxu0 %v931
    %3064 = vmatpush.bf16.msra.mxu0 %v927
    %3065 = vmatpush.bf16.msra.mxu0 %v923
    %3066 = vmatpush.bf16.msra.mxu0 %v919
    %3067 = vmatpush.bf16.msra.mxu0 %v915
    %3068 = vmatpush.bf16.msra.mxu0 %v911
    %3069 = vmatmul.bf16.gmra.mxu0 %v2901
    %v3070 = vpop.f32.mrf.mxu0
    %v3071 = vadd.f32 %v3058, %v3070
    %v3072 = vpop.f32.mrf.mxu0
    %3073 = vdwg.mxu0
    %3074 = vmatpush.bf16.msra.mxu0 %v908
    %3075 = vmatpush.bf16.msra.mxu0 %v904
    %3076 = vmatpush.bf16.msra.mxu0 %v900
    %3077 = vmatpush.bf16.msra.mxu0 %v896
    %3078 = vmatpush.bf16.msra.mxu0 %v892
    %3079 = vmatpush.bf16.msra.mxu0 %v888
    %3080 = vmatpush.bf16.msra.mxu0 %v884
    %3081 = vmatpush.bf16.msra.mxu0 %v880
    %3082 = vmatmul.bf16.gmra.mxu0 %v3021
    %v3083 = vpop.f32.mrf.mxu0
    %v3084 = vadd.f32 %v400, %v3083
    %v3085 = vpop.f32.mrf.mxu0
    %3086 = vdwg.mxu0
    %3087 = vmatpush.bf16.msra.mxu0 %v940
    %3088 = vmatpush.bf16.msra.mxu0 %v936
    %3089 = vmatpush.bf16.msra.mxu0 %v932
    %3090 = vmatpush.bf16.msra.mxu0 %v928
    %3091 = vmatpush.bf16.msra.mxu0 %v924
    %3092 = vmatpush.bf16.msra.mxu0 %v920
    %3093 = vmatpush.bf16.msra.mxu0 %v916
    %3094 = vmatpush.bf16.msra.mxu0 %v912
    %3095 = vmatmul.bf16.gmra.mxu0 %v2901
    %v3096 = vpop.f32.mrf.mxu0
    %v3097 = vadd.f32 %v3084, %v3096
    %v3098 = vpop.f32.mrf.mxu0
    %3099 = vdwg.mxu0
    %3100 = vmatpush.bf16.msra.mxu0 %v909
    %3101 = vmatpush.bf16.msra.mxu0 %v905
    %3102 = vmatpush.bf16.msra.mxu0 %v901
    %3103 = vmatpush.bf16.msra.mxu0 %v897
    %3104 = vmatpush.bf16.msra.mxu0 %v893
    %3105 = vmatpush.bf16.msra.mxu0 %v889
    %3106 = vmatpush.bf16.msra.mxu0 %v885
    %3107 = vmatpush.bf16.msra.mxu0 %v881
    %3108 = vmatmul.bf16.gmra.mxu0 %v3021
    %v3109 = vpop.f32.mrf.mxu0
    %v3110 = vadd.f32 %v401, %v3109
    %v3111 = vpop.f32.mrf.mxu0
    %3112 = vdwg.mxu0
    %3113 = vmatpush.bf16.msra.mxu0 %v941
    %3114 = vmatpush.bf16.msra.mxu0 %v937
    %3115 = vmatpush.bf16.msra.mxu0 %v933
    %3116 = vmatpush.bf16.msra.mxu0 %v929
    %3117 = vmatpush.bf16.msra.mxu0 %v925
    %3118 = vmatpush.bf16.msra.mxu0 %v921
    %3119 = vmatpush.bf16.msra.mxu0 %v917
    %3120 = vmatpush.bf16.msra.mxu0 %v913
    %3121 = vmatmul.bf16.gmra.mxu0 %v2901
    %v3122 = vpop.f32.mrf.mxu0
    %v3123 = vadd.f32 %v3110, %v3122
    %v3124 = vpop.f32.mrf.mxu0
    %3125 = vdwg.mxu0
    %v3126 = vxor.u32 %v3045, 2147483648
    %v3127 = vmul.f32 %v3126, 1.442695
    %v3128 = vpow.pop %v3127
    %v3129 = vadd.f32 %v3128, 1.0
    %v3130 = vrcp.pop %v3129
    %v3131 = vmul.f32 %v3129, %v3130
    %v3132 = vsub.f32 1.0, %v3131
    %v3133 = vmul.f32 %v3130, %v3132
    %v3134 = vadd.f32 %v3130, %v3133
    %vm3135 = vweird.f32 %v3129
    %vm3136 = vweird.f32 %v3130
    %vm3137 = vmor %vm3135, %vm3136
    %v3138 = vsel %vm3137, %v3130, %v3134
    %v3139 = vand.u32 2147483647, %v3129
    %vm3140 = vcmp.eq.f32.partialorder %v3139, 8.507059e+37
    %v3141 = vand.u32 %v3129, 2147483648
    %v3142 = vor.u32 1.1754944e-38, %v3141
    %v3143 = vsel %vm3140, %v3142, %v3138
    %v3144 = vmul.f32 1.0, %v3143
    %v3145 = vxor.u32 %v3071, 2147483648
    %v3146 = vmul.f32 %v3145, 1.442695
    %v3147 = vpow.pop %v3146
    %v3148 = vadd.f32 %v3147, 1.0
    %v3149 = vrcp.pop %v3148
    %v3150 = vmul.f32 %v3148, %v3149
    %v3151 = vsub.f32 1.0, %v3150
    %v3152 = vmul.f32 %v3149, %v3151
    %v3153 = vadd.f32 %v3149, %v3152
    %vm3154 = vweird.f32 %v3148
    %vm3155 = vweird.f32 %v3149
    %vm3156 = vmor %vm3154, %vm3155
    %v3157 = vsel %vm3156, %v3149, %v3153
    %v3158 = vand.u32 2147483647, %v3148
    %vm3159 = vcmp.eq.f32.partialorder %v3158, 8.507059e+37
    %v3160 = vand.u32 %v3148, 2147483648
    %v3161 = vor.u32 1.1754944e-38, %v3160
    %v3162 = vsel %vm3159, %v3161, %v3157
    %v3163 = vmul.f32 1.0, %v3162
    %v3164 = vtanh.pop %v3097
    %v3165 = vxor.u32 %v3123, 2147483648
    %v3166 = vmul.f32 %v3165, 1.442695
    %v3167 = vpow.pop %v3166
    %v3168 = vadd.f32 %v3167, 1.0
    %v3169 = vrcp.pop %v3168
    %v3170 = vmul.f32 %v3168, %v3169
    %v3171 = vsub.f32 1.0, %v3170
    %v3172 = vmul.f32 %v3169, %v3171
    %v3173 = vadd.f32 %v3169, %v3172
    %vm3174 = vweird.f32 %v3168
    %vm3175 = vweird.f32 %v3169
    %vm3176 = vmor %vm3174, %vm3175
    %v3177 = vsel %vm3176, %v3169, %v3173
    %v3178 = vand.u32 2147483647, %v3168
    %vm3179 = vcmp.eq.f32.partialorder %v3178, 8.507059e+37
    %v3180 = vand.u32 %v3168, 2147483648
    %v3181 = vor.u32 1.1754944e-38, %v3180
    %v3182 = vsel %vm3179, %v3181, %v3177
    %v3183 = vmul.f32 1.0, %v3182
    %v3184 = vmul.f32 %v3163, %v2898
    %v3185 = vmul.f32 %v3144, %v3164
    %v3186 = vadd.f32 %v3184, %v3185
    %v3187 = vtanh.pop %v3186
    %v3188 = vmul.f32 %v3183, %v3187
    %v3189 = vpack.c.bf16 %v3188, %v3188
    %v3190 = vld [vmem:[%s6] sm:$0xf]
    %v3191 = vld [vmem:[%s6 + $0x4] sm:$0xf]
    %v3192 = vld [vmem:[%s6 + $0x8] sm:$0xf]
    %v3193 = vld [vmem:[%s6 + $0xc] sm:$0xf]
    %v3194 = vld [vmem:[%s6 + $0x10] sm:$0xf]
    %v3195 = vld [vmem:[%s6 + $0x14] sm:$0xf]
    %v3196 = vld [vmem:[%s6 + $0x18] sm:$0xf]
    %v3197 = vld [vmem:[%s6 + $0x1c] sm:$0xf]
    %v3198 = vld [vmem:[%s6 + $0x20] sm:$0xf]
    %v3199 = vld [vmem:[%s6 + $0x24] sm:$0xf]
    %v3200 = vld [vmem:[%s6 + $0x28] sm:$0xf]
    %v3201 = vld [vmem:[%s6 + $0x2c] sm:$0xf]
    %v3202 = vld [vmem:[%s6 + $0x30] sm:$0xf]
    %v3203 = vld [vmem:[%s6 + $0x34] sm:$0xf]
    %v3204 = vld [vmem:[%s6 + $0x38] sm:$0xf]
    %v3205 = vld [vmem:[%s6 + $0x3c] sm:$0xf]
    %v3206 = vld [vmem:[%s7] sm:$0x1]
    %v3208 = vperm.slane %v3206, 0
    %v3226 = vunpack.c.l.b16 %v3190
    %v3227 = vunpack.c.l.b16 %v3191
    %v3228 = vunpack.c.l.b16 %v3192
    %v3229 = vunpack.c.l.b16 %v3193
    %v3230 = vunpack.c.l.b16 %v3194
    %v3231 = vunpack.c.l.b16 %v3195
    %v3232 = vunpack.c.l.b16 %v3196
    %v3233 = vunpack.c.l.b16 %v3197
    %v3234 = vunpack.c.l.b16 %v3198
    %v3235 = vunpack.c.l.b16 %v3199
    %v3236 = vunpack.c.l.b16 %v3200
    %v3237 = vunpack.c.l.b16 %v3201
    %v3238 = vunpack.c.l.b16 %v3202
    %v3239 = vunpack.c.l.b16 %v3203
    %v3240 = vunpack.c.l.b16 %v3204
    %v3241 = vunpack.c.l.b16 %v3205
    %v3242 = vpack.c.b16 %v3227, %v3226
    %v3243 = vpack.c.b16 %v3229, %v3228
    %v3244 = vpack.c.b16 %v3231, %v3230
    %v3245 = vpack.c.b16 %v3233, %v3232
    %v3246 = vpack.c.b16 %v3235, %v3234
    %v3247 = vpack.c.b16 %v3237, %v3236
    %v3248 = vpack.c.b16 %v3239, %v3238
    %v3249 = vpack.c.b16 %v3241, %v3240
    %3258 = vmatpush.bf16.msra.mxu0 %v3249
    %3259 = vmatpush.bf16.msra.mxu0 %v3248
    %3260 = vmatpush.bf16.msra.mxu0 %v3247
    %3261 = vmatpush.bf16.msra.mxu0 %v3246
    %3262 = vmatpush.bf16.msra.mxu0 %v3245
    %3263 = vmatpush.bf16.msra.mxu0 %v3244
    %3264 = vmatpush.bf16.msra.mxu0 %v3243
    %3265 = vmatpush.bf16.msra.mxu0 %v3242
    %3266 = vmatmul.bf16.gmra.mxu0 %v3189
    %v3267 = vpop.f32.mrf.mxu0
    %v3268 = vadd.f32 %v3208, %v3267
    %v3269 = vpop.f32.mrf.mxu0
    %3270 = vdwg.mxu0
    %3271 = vst [vmem:[#allocation8] sm:$0xff] %v3268
    // Predicated region
    $region46: #{tpu_custom_call.1} parent=1 // pred_check
      _
    $region47: #{tpu_custom_call.1} parent=1 // pred_check_branch
      %3273 = sbr.rel (0) target = $region49
    $region48: #{tpu_custom_call.1} parent=1 // pred_region
      %3275 = vsyncadd [#allocation4], 0
      %s3277 = sshll.u32 [#allocation8], 4
      %s3278 = int_to_ptr.vmem [resolvable:$true] %s3277
      %s3279 = sshll.u32 %s8, 4
      %s3280 = int_to_ptr.hbm [resolvable:$true] %s3279
      %3282 = dma.vmem_to_hbm [thread:$0]  %s3278, 128, %s3280, [#allocation4]
    $region49: #{tpu_custom_call.1} parent=1 // pred_fallthru
      _
    // Predicated region
    $region50: #{tpu_custom_call.1} parent=1 // pred_check
      _
    $region51: #{tpu_custom_call.1} parent=1 // pred_check_branch
      %3284 = sbr.rel (0) target = $region53
    $region52: #{tpu_custom_call.1} parent=1 // pred_region
      %3286 = dma.done [#allocation4], 128
    $region53: #{tpu_custom_call.1} parent=1 // pred_fallthru
      _
    %3287 = vsyncpa [#allocation3], 1
    %3288 = vsyncpa [#allocation6], 1
    %3289 = vsyncpa [#allocation4], 1

</llo_original>
